<compile_context>
chip_gen: v7x
topology: tpu7x:2x2x1
jax: 0.10.0
libtpu: 0.0.40
codegen_flags: <defaults>
</compile_context>

<pallas_src>
import jax
import jax.numpy as jnp
from jax.experimental import pallas as pl
from jax.experimental.pallas import tpu as pltpu

# ----------------------------------------------------------------------------
# Synthetic module configuration (small, consistent with the PyTorch __init__)
# ----------------------------------------------------------------------------
B = 2                       # batch_size
NS = 4                      # num_parallel_samples
HIST = 16                   # history_length
CTX = 8                     # context_length
PRED = 4                    # prediction_length
LAGS = [1, 2, 4]            # lags_seq
SHIFTED = [l - 1 for l in LAGS]
WINDOWS = [2, 4]            # moving_avg_windows
HC = 32                     # num_cells
F_TIME = 3                  # num time features
CARD = [3, 4]               # static categorical cardinalities
EMB = [2, 2]                # static embedding dims
DC_CARD = [5]               # dynamic categorical cardinalities
DC_EMB = [2]                # dynamic embedding dims
F_STATIC_REAL = 1
F_DP = 1                    # feat_dynamic_past feature dim

L = len(LAGS)
NW = len(WINDOWS)
F_LAGS = L * (1 + NW)                          # 9
F_STAT = sum(EMB) + F_STATIC_REAL              # 5  (scaling=True: scale not appended)
F_DC = sum(DC_EMB)                             # 2
F_TFDCE = F_TIME + F_DC                        # 5
D_IN = F_LAGS + F_TFDCE + F_STAT + F_DP        # 20 == rnn input_size
R = B * NS                                     # rows after repeat_interleave
G4 = 4 * HC                                    # 128 gate columns

W_TGT = max(SHIFTED) + 1                       # target window needed by decoder lags
W_ACC = max(SHIFTED) + max(WINDOWS) + 1        # accumulated-sum window needed

# padded matmul K dims (zero-padded columns / weight rows)
K_ENC = 32                                     # encoder input projection K
K_INV = 16                                     # decoder invariant (tfdce+stat) K
K_DX = 16                                      # decoder dynamic (lags+fdp) K

# bf16 weight-slab row offsets (all multiples of 16 -> clean bf16 sublane tiles)
ROW_ENC_IH = 0                                 # wih0 (D_IN rows, zero-padded)
ROW_HH0 = 32                                   # whh0
ROW_IH1 = 64                                   # wih1
ROW_HH1 = 96                                   # whh1
ROW_INV = 128                                  # [tfdce | stat] rows of wih0, padded
ROW_DX = 144                                   # [lags | fdp] rows of wih0, padded
ROW_HEAD = 160                                 # [mu | sigma] head, padded to 128 cols
W_ROWS = 192

# f32 per-row data slab column offsets
COL_SCALE = 0
COL_FDP = 1
COL_TGT = 2                                    # width W_TGT  (target / scale)
COL_ACC = COL_TGT + W_TGT                      # width W_ACC  (acc target / scale)
COL_EPS = COL_ACC + W_ACC                      # width PRED   (standard-normal draws)
ROW_COLS = COL_EPS + PRED                      # 18


# ----------------------------------------------------------------------------
# Kernel helper: LSTM cell from pre-computed gates, packed [i | f | o | g]
# ----------------------------------------------------------------------------
def _lstm_cell(gates, c):
    ifo = jax.nn.sigmoid(gates[:, :3 * HC])        # one EUP slab for i, f, o
    g = jnp.tanh(gates[:, 3 * HC:])
    c_new = ifo[:, HC:2 * HC] * c + ifo[:, :HC] * g
    h_new = ifo[:, 2 * HC:3 * HC] * jnp.tanh(c_new)
    return h_new, c_new


# ----------------------------------------------------------------------------
# Fused encoder + sampling-decoder kernel (grid=(1,), everything in VMEM)
# ----------------------------------------------------------------------------
def fused_kernel(enc_x_ref, dec_inv_ref, row_ref, w_ref, b_ref, out_ref):
    f32 = jnp.float32
    bf16 = jnp.bfloat16

    b0 = b_ref[0:1, :]                              # (1, 4HC) f32
    b1 = b_ref[1:2, :]
    bh = b_ref[2:3, :]                              # head bias (cols 0,1 valid)

    # ---- batched, loop-invariant precomputes (single MXU pushes, off the
    #      recurrent critical path) ----------------------------------------
    # encoder layer-0 input projection for all CTX steps at once
    gx_enc = jnp.dot(enc_x_ref[...], w_ref[ROW_ENC_IH:ROW_ENC_IH + K_ENC, :],
                     preferred_element_type=f32) + b0          # (CTX*R, 4HC)
    # decoder loop-invariant gate contribution (time feat + dyn-cat emb + static)
    g_inv = jnp.dot(dec_inv_ref[...], w_ref[ROW_INV:ROW_INV + K_INV, :],
                    preferred_element_type=f32) + b0           # (PRED*R, 4HC)

    scale = row_ref[:, COL_SCALE:COL_SCALE + 1]                # (R, 1) f32
    thr = 0.5 / scale        # "raw sample > 0.5" test in scale-normalised units

    # -------------------------- encoder (CTX steps) ------------------------
    z = jnp.zeros((R, HC), f32)
    h0, c0, h1, c1 = z, z, z, z
    for t in range(CTX):
        g0 = gx_enc[t * R:(t + 1) * R, :] + jnp.dot(
            h0.astype(bf16), w_ref[ROW_HH0:ROW_HH0 + HC, :],
            preferred_element_type=f32)
        h0, c0 = _lstm_cell(g0, c0)
        g1 = (b1
              + jnp.dot(h0.astype(bf16), w_ref[ROW_IH1:ROW_IH1 + HC, :],
                        preferred_element_type=f32)
              + jnp.dot(h1.astype(bf16), w_ref[ROW_HH1:ROW_HH1 + HC, :],
                        preferred_element_type=f32))
        h1, c1 = _lstm_cell(g1, c1)

    # ------------------- autoregressive sampling decoder -------------------
    zpad = jnp.zeros((R, K_DX - F_LAGS - F_DP), f32)           # (R, 6) padding
    gen_tgt = []          # generated samples, already divided by scale
    gen_acc = []          # generated accumulated target / scale
    fdp_cur = row_ref[:, COL_FDP:COL_FDP + 1]                  # (R, 1)
    sample_cols = []

    def tgt_col(pos, k):
        """(target_history + generated)[-1 - pos] at decode step k (scaled)."""
        if pos < k:
            return gen_tgt[k - 1 - pos]
        j = COL_TGT + W_TGT - 1 - pos + k
        return row_ref[:, j:j + 1]

    def acc_col(pos, k):
        if pos < k:
            return gen_acc[k - 1 - pos]
        j = COL_ACC + W_ACC - 1 - pos + k
        return row_ref[:, j:j + 1]

    for k in range(PRED):
        # lag features (channel-major, lag-minor to match the wih0 row order):
        # target lags, then one moving-average channel per window.
        cols = [tgt_col(sl, k) for sl in SHIFTED]
        for w in WINDOWS:
            inv_w = 1.0 / float(w)
            for sl in SHIFTED:
                cols.append((acc_col(sl, k) - acc_col(sl + w, k)) * inv_w)
        cols.append(fdp_cur)
        cols.append(zpad)
        x_dyn = jnp.concatenate(cols, axis=-1)                 # (R, K_DX)

        # layer-0 gates = invariant part + dynamic-x part + recurrent part.
        # (step 0's x_dyn is fully history-resident, so its push can be hoisted
        #  by the scheduler ahead of the decode chain.)
        g0 = (g_inv[k * R:(k + 1) * R, :]
              + jnp.dot(x_dyn.astype(bf16), w_ref[ROW_DX:ROW_DX + K_DX, :],
                        preferred_element_type=f32)
              + jnp.dot(h0.astype(bf16), w_ref[ROW_HH0:ROW_HH0 + HC, :],
                        preferred_element_type=f32))
        h0, c0 = _lstm_cell(g0, c0)
        g1 = (b1
              + jnp.dot(h0.astype(bf16), w_ref[ROW_IH1:ROW_IH1 + HC, :],
                        preferred_element_type=f32)
              + jnp.dot(h1.astype(bf16), w_ref[ROW_HH1:ROW_HH1 + HC, :],
                        preferred_element_type=f32))
        h1, c1 = _lstm_cell(g1, c1)

        # fused Gaussian head (mu in col 0, pre-softplus sigma in col 1)
        head = jnp.dot(h1.astype(bf16), w_ref[ROW_HEAD:ROW_HEAD + HC, :],
                       preferred_element_type=f32) + bh        # (R, 4HC)
        mu = head[:, 0:1]
        sigma = jax.nn.softplus(head[:, 1:2])
        u = mu + sigma * row_ref[:, COL_EPS + k:COL_EPS + k + 1]   # sample / scale

        sample_cols.append(u)
        gen_tgt.append(u)
        acc_last = gen_acc[-1] if gen_acc else acc_col(0, 0)
        gen_acc.append(acc_last + u)
        # reference: fdp resets to 0 where raw sample > 0.5, else +1
        fdp_cur = jnp.where(u > thr, 0.0, fdp_cur + 1.0)

    # single lane-dense store of all (re-scaled) samples
    out_ref[...] = jnp.concatenate(sample_cols, axis=-1) * scale     # (R, PRED)


# ----------------------------------------------------------------------------
# Pallas call wrapper (grid=(1,), whole arrays resident in VMEM)
# ----------------------------------------------------------------------------
def _full_spec(a):
    nd = a.ndim
    return pl.BlockSpec(a.shape, (lambda n: (lambda i: (0,) * n))(nd))


def run_fused(enc_x, dec_inv, row, w_slab, b_slab):
    args = (enc_x, dec_inv, row, w_slab, b_slab)
    return pl.pallas_call(
        fused_kernel,
        grid=(1,),
        in_specs=[_full_spec(a) for a in args],
        out_specs=pl.BlockSpec((R, PRED), lambda i: (0, 0)),
        out_shape=jax.ShapeDtypeStruct((R, PRED), jnp.float32),
        compiler_params=pltpu.CompilerParams(
            dimension_semantics=("arbitrary",)),
    )(*args)


# ----------------------------------------------------------------------------
# Plain-JAX glue (embedders, scaler, encoder-input construction, weight packing)
# ----------------------------------------------------------------------------
def feature_embedder(cat, tables):
    parts = [jnp.take(tables[i], cat[..., i], axis=0) for i in range(len(tables))]
    return jnp.concatenate(parts, axis=-1)


def mean_scaler(data, weights, minimum_scale=1e-10):
    """GluonTS MeanScaler, keepdim=True. data/weights: (B, T) -> scale (B, 1)."""
    num_observed = weights.sum(axis=1)
    sum_observed = (jnp.abs(data) * weights).sum(axis=1)
    total_observed = num_observed.sum(axis=0)
    default_scale = sum_observed.sum(axis=0) / jnp.maximum(total_observed, 1.0)
    scale = sum_observed / jnp.maximum(num_observed, 1.0)
    scale = jnp.maximum(minimum_scale,
                        jnp.where(sum_observed > 0, scale, default_scale))
    return scale[:, None]


def build_encoder_inputs(inputs, params, scale, static_feat):
    """Encoder inputs, batch-major (B, CTX, D_IN)."""
    past_time_feat = inputs["past_time_feat"]
    past_feat_dynamic_cat = inputs["past_feat_dynamic_cat"]
    past_feat_dynamic_past = inputs["past_feat_dynamic_past"]
    past_target = inputs["past_target"]
    past_acc = inputs["past_accumulated_target"]

    time_feat = past_time_feat[:, HIST - CTX:, :]                    # (B, CTX, F_TIME)
    feat_dyn_cat = past_feat_dynamic_cat[:, HIST - CTX:, :]          # (B, CTX, 1)

    # feat_dynamic_past lags with indices=[min(lags_seq)], subseq_len=CTX
    min_lag = min(LAGS)
    fdp_lags = past_feat_dynamic_past[:, HIST - min_lag - CTX:HIST - min_lag, :]

    # moving averages over the accumulated sequence (NaN-prefixed); the lag
    # slicing below must never reach the NaN prefix.
    assert HIST - max(LAGS) - CTX >= max(WINDOWS), (
        "moving-average NaN prefix would leak into encoder lag features")
    mv_list = []
    for w in WINDOWS:
        mv = jnp.full_like(past_acc, jnp.nan)
        mv = mv.at[:, w:].set((past_acc[:, w:] - past_acc[:, :-w]) / float(w))
        mv_list.append(mv)
    moving_avg = jnp.stack(mv_list, axis=-1)                         # (B, HIST, NW)
    merged = jnp.concatenate([past_target[..., None], moving_avg], axis=-1)

    lag_list = []
    for lag in LAGS:
        lag_list.append(merged[:, HIST - lag - CTX:HIST - lag, :])
    lags = jnp.stack(lag_list, axis=-1)                              # (B, CTX, 1+NW, L)
    input_lags = lags.reshape(B, CTX, F_LAGS) / scale[:, :, None]

    emb_dc = feature_embedder(feat_dyn_cat, params["dc_tables"])     # (B, CTX, F_DC)
    rep_static = jnp.broadcast_to(static_feat[:, None, :], (B, CTX, F_STAT))

    return jnp.concatenate(
        [input_lags, time_feat, emb_dc, rep_static, fdp_lags], axis=-1)  # (B,CTX,D_IN)


def _reorder_gates(w):
    """PyTorch LSTM gate order [i|f|g|o] -> kernel order [i|f|o|g]."""
    return jnp.concatenate(
        [w[..., :2 * HC], w[..., 3 * HC:], w[..., 2 * HC:3 * HC]], axis=-1)


def _pad_rows(w, n):
    pad = n - w.shape[0]
    if pad == 0:
        return w
    return jnp.concatenate([w, jnp.zeros((pad, w.shape[1]), w.dtype)], axis=0)


def prepare_weights(p):
    """Re-pack PyTorch-layout LSTM / head weights into one bf16 slab + f32 biases."""
    wih0 = _reorder_gates(p["wih0"])                 # (D_IN, 4HC)
    whh0 = _reorder_gates(p["whh0"])                 # (HC, 4HC)
    wih1 = _reorder_gates(p["wih1"])
    whh1 = _reorder_gates(p["whh1"])
    b0 = _reorder_gates(p["b0"])                     # (1, 4HC)
    b1 = _reorder_gates(p["b1"])

    lag_rows = wih0[0:F_LAGS]
    tfdce_rows = wih0[F_LAGS:F_LAGS + F_TFDCE]
    stat_rows = wih0[F_LAGS + F_TFDCE:F_LAGS + F_TFDCE + F_STAT]
    fdp_rows = wih0[D_IN - F_DP:D_IN]

    w_head = jnp.concatenate([p["wmu"], p["wsig"]], axis=1)          # (HC, 2)
    w_head = jnp.concatenate(
        [w_head, jnp.zeros((HC, G4 - 2), jnp.float32)], axis=1)      # (HC, 4HC)
    b_head = jnp.concatenate([p["bmu"], p["bsig"]], axis=1)
    b_head = jnp.concatenate(
        [b_head, jnp.zeros((1, G4 - 2), jnp.float32)], axis=1)       # (1, 4HC)

    w_slab = jnp.concatenate([
        _pad_rows(wih0, K_ENC),                                      # rows   0: 32
        whh0,                                                        # rows  32: 64
        wih1,                                                        # rows  64: 96
        whh1,                                                        # rows  96:128
        _pad_rows(jnp.concatenate([tfdce_rows, stat_rows], 0), K_INV),  # 128:144
        _pad_rows(jnp.concatenate([lag_rows, fdp_rows], 0), K_DX),   # rows 144:160
        w_head,                                                      # rows 160:192
    ], axis=0).astype(jnp.bfloat16)                                  # (192, 128)

    b_slab = jnp.concatenate([b0, b1, b_head], axis=0)               # (3, 128) f32
    return w_slab, b_slab


def deepar_prediction_forward(params, inputs, sample_key):
    # ----------------- unroll_encoder prep (plain-JAX glue) -----------------
    scale = mean_scaler(inputs["past_target"][:, -CTX:],
                        inputs["past_observed_values"][:, -CTX:])    # (B, 1)
    embedded_cat = feature_embedder(inputs["feat_static_cat"],
                                    params["static_tables"])         # (B, sum(EMB))
    static_feat = jnp.concatenate([embedded_cat, inputs["feat_static_real"]], axis=1)
    enc_inputs = build_encoder_inputs(inputs, params, scale, static_feat)  # (B,CTX,D_IN)

    rep = lambda x: jnp.repeat(x, NS, axis=0)

    # encoder runs directly on the repeat_interleave'd rows (row-wise LSTM math
    # is identical, so state repetition is implicit); time-major, zero-padded
    # to K_ENC columns and pre-cast to bf16 (MXU operand).
    enc_x = jnp.transpose(rep(enc_inputs), (1, 0, 2)).reshape(CTX * R, D_IN)
    enc_x = jnp.concatenate(
        [enc_x, jnp.zeros((CTX * R, K_ENC - D_IN), jnp.float32)], axis=-1)
    enc_x = enc_x.astype(jnp.bfloat16)                               # (CTX*R, 32)

    # decoder loop-invariant input columns: [time_feat | dyn-cat emb | static]
    dce = feature_embedder(inputs["future_feat_dynamic_cat"], params["dc_tables"])
    tfdce = jnp.concatenate([inputs["future_time_feat"], dce], axis=-1)   # (B,PRED,5)
    stat_b = jnp.broadcast_to(static_feat[:, None, :], (B, PRED, F_STAT))
    dec_inv = jnp.concatenate([tfdce, stat_b], axis=-1)                   # (B,PRED,10)
    dec_inv = jnp.transpose(rep(dec_inv), (1, 0, 2)).reshape(PRED * R, F_TFDCE + F_STAT)
    dec_inv = jnp.concatenate(
        [dec_inv, jnp.zeros((PRED * R, K_INV - F_TFDCE - F_STAT), jnp.float32)],
        axis=-1).astype(jnp.bfloat16)                                # (PRED*R, 16)

    # per-row data slab: [scale | fdp_last | target/scale | acc/scale | eps]
    rep_scale = rep(scale)                                           # (R, 1)
    inv_scale = 1.0 / rep_scale
    tgt_s = rep(inputs["past_target"][:, -W_TGT:]) * inv_scale       # (R, W_TGT)
    acc_s = rep(inputs["past_accumulated_target"][:, -W_ACC:]) * inv_scale  # (R, W_ACC)
    fdp0 = rep(inputs["past_feat_dynamic_past"][:, -1, :])           # (R, 1)
    eps = jax.random.normal(sample_key, (R, PRED), dtype=jnp.float32)
    row = jnp.concatenate([rep_scale, fdp0, tgt_s, acc_s, eps], axis=-1)  # (R, 18)

    w_slab, b_slab = prepare_weights(params)
    out = run_fused(enc_x, dec_inv, row, w_slab, b_slab)             # (R, PRED)
    return out.reshape(B, NS, PRED)


# ----------------------------------------------------------------------------
# Deterministic parameter / input construction
# ----------------------------------------------------------------------------
def make_params(key):
    ks = iter(jax.random.split(key, 32))
    init = lambda k, s, sc: (jax.random.normal(k, s, dtype=jnp.float32) * sc)
    s = 1.0 / jnp.sqrt(float(HC))
    return {
        "static_tables": [init(next(ks), (CARD[i], EMB[i]), 0.1) for i in range(len(CARD))],
        "dc_tables": [init(next(ks), (DC_CARD[i], DC_EMB[i]), 0.1) for i in range(len(DC_CARD))],
        # layer 0 (input_size = D_IN), layer 1 (input = HC). Stored transposed,
        # PyTorch gate order [i|f|g|o]; b* are b_ih + b_hh combined.
        "wih0": init(next(ks), (D_IN, 4 * HC), s),
        "whh0": init(next(ks), (HC, 4 * HC), s),
        "b0": init(next(ks), (1, 4 * HC), s),
        "wih1": init(next(ks), (HC, 4 * HC), s),
        "whh1": init(next(ks), (HC, 4 * HC), s),
        "b1": init(next(ks), (1, 4 * HC), s),
        # Gaussian head projection
        "wmu": init(next(ks), (HC, 1), s),
        "bmu": init(next(ks), (1, 1), s),
        "wsig": init(next(ks), (HC, 1), s),
        "bsig": init(next(ks), (1, 1), s),
    }


def make_inputs(key):
    ks = iter(jax.random.split(key, 16))
    past_target = jnp.abs(jax.random.normal(next(ks), (B, HIST), dtype=jnp.float32))
    return {
        "feat_static_cat": jax.random.randint(next(ks), (B, len(CARD)), 0, min(CARD)),
        "feat_static_real": jax.random.normal(next(ks), (B, F_STATIC_REAL), dtype=jnp.float32),
        "past_time_feat": jax.random.normal(next(ks), (B, HIST, F_TIME), dtype=jnp.float32),
        "past_target": past_target,
        "past_accumulated_target": jnp.cumsum(past_target, axis=1),
        "past_observed_values": jnp.ones((B, HIST), dtype=jnp.float32),
        "past_feat_dynamic_cat": jax.random.randint(next(ks), (B, HIST, len(DC_CARD)), 0, min(DC_CARD)),
        "past_feat_dynamic_past": jax.random.randint(next(ks), (B, HIST, F_DP), 0, 5).astype(jnp.float32),
        "future_feat_dynamic_cat": jax.random.randint(next(ks), (B, PRED, len(DC_CARD)), 0, min(DC_CARD)),
        "future_time_feat": jax.random.normal(next(ks), (B, PRED, F_TIME), dtype=jnp.float32),
    }


if __name__ == "__main__":
    root = jax.random.PRNGKey(0)
    k_params, k_inputs, k_sample = jax.random.split(root, 3)
    params = make_params(k_params)
    inputs = make_inputs(k_inputs)

    fwd = jax.jit(deepar_prediction_forward)
    samples = jax.block_until_ready(fwd(params, inputs, k_sample))

    assert samples.shape == (B, NS, PRED), samples.shape
    assert bool(jnp.all(jnp.isfinite(samples)))
    print("KERNEL_OK")
</pallas_src>

<mosaic_0001>
module attributes {stable_mosaic.version = 11 : i64} {
  func.func @fused_kernel(%arg0: i32, %arg1: memref<64x32xbf16, #tpu.memory_space<vmem>>, %arg2: memref<32x16xbf16, #tpu.memory_space<vmem>>, %arg3: memref<8x18xf32, #tpu.memory_space<vmem>>, %arg4: memref<192x128xbf16, #tpu.memory_space<vmem>>, %arg5: memref<3x128xf32, #tpu.memory_space<vmem>>, %arg6: memref<8x4xf32, #tpu.memory_space<vmem>>) attributes {dimension_semantics = [#tpu.dimension_semantics<arbitrary>], iteration_bounds = array<i64: 1>, scalar_prefetch = 0 : i64, scratch_operands = 0 : i64, tpu.core_type = #tpu.core_type<tc>, window_params = [{pipeline_mode = #tpu.pipeline_mode<synchronous>, transform_indices = @transform_0, window_bounds = array<i64: 64, 32>}, {pipeline_mode = #tpu.pipeline_mode<synchronous>, transform_indices = @transform_1, window_bounds = array<i64: 32, 16>}, {pipeline_mode = #tpu.pipeline_mode<synchronous>, transform_indices = @transform_2, window_bounds = array<i64: 8, 18>}, {pipeline_mode = #tpu.pipeline_mode<synchronous>, transform_indices = @transform_3, window_bounds = array<i64: 192, 128>}, {pipeline_mode = #tpu.pipeline_mode<synchronous>, transform_indices = @transform_4, window_bounds = array<i64: 3, 128>}, {pipeline_mode = #tpu.pipeline_mode<synchronous>, transform_indices = @transform_5, window_bounds = array<i64: 8, 4>}]} {
    %c0 = arith.constant 0 : index
    %c0_0 = arith.constant 0 : index
    %0 = vector.load %arg5[%c0, %c0_0] : memref<3x128xf32, #tpu.memory_space<vmem>>, vector<1x128xf32>
    %c1 = arith.constant 1 : index
    %c0_1 = arith.constant 0 : index
    %1 = vector.load %arg5[%c1, %c0_1] : memref<3x128xf32, #tpu.memory_space<vmem>>, vector<1x128xf32>
    %c2 = arith.constant 2 : index
    %c0_2 = arith.constant 0 : index
    %2 = vector.load %arg5[%c2, %c0_2] : memref<3x128xf32, #tpu.memory_space<vmem>>, vector<1x128xf32>
    %c0_3 = arith.constant 0 : index
    %c0_4 = arith.constant 0 : index
    %3 = vector.load %arg1[%c0_3, %c0_4] : memref<64x32xbf16, #tpu.memory_space<vmem>>, vector<64x32xbf16>
    %c0_5 = arith.constant 0 : index
    %c0_6 = arith.constant 0 : index
    %4 = vector.load %arg4[%c0_5, %c0_6] : memref<192x128xbf16, #tpu.memory_space<vmem>>, vector<32x128xbf16>
    %cst = arith.constant dense<0.000000e+00> : vector<64x128xf32>
    %5 = tpu.matmul %3, %4, %cst {dimension_numbers = #tpu.dot_dimension_numbers<[1], [0], [0], [1], [0, 0, 1, 1], [], []>} : vector<64x32xbf16>, vector<32x128xbf16>, vector<64x128xf32> -> vector<64x128xf32>
    %6 = vector.broadcast %0 : vector<1x128xf32> to vector<64x128xf32>
    %7 = arith.addf %5, %6 : vector<64x128xf32>
    %c0_7 = arith.constant 0 : index
    %c0_8 = arith.constant 0 : index
    %8 = vector.load %arg2[%c0_7, %c0_8] : memref<32x16xbf16, #tpu.memory_space<vmem>>, vector<32x16xbf16>
    %c128 = arith.constant 128 : index
    %c0_9 = arith.constant 0 : index
    %9 = vector.load %arg4[%c128, %c0_9] : memref<192x128xbf16, #tpu.memory_space<vmem>>, vector<16x128xbf16>
    %cst_10 = arith.constant dense<0.000000e+00> : vector<32x128xf32>
    %10 = tpu.matmul %8, %9, %cst_10 {dimension_numbers = #tpu.dot_dimension_numbers<[1], [0], [0], [1], [0, 0, 1, 1], [], []>} : vector<32x16xbf16>, vector<16x128xbf16>, vector<32x128xf32> -> vector<32x128xf32>
    %11 = vector.broadcast %0 : vector<1x128xf32> to vector<32x128xf32>
    %12 = arith.addf %10, %11 : vector<32x128xf32>
    %c0_11 = arith.constant 0 : index
    %c0_12 = arith.constant 0 : index
    %13 = vector.load %arg3[%c0_11, %c0_12] : memref<8x18xf32, #tpu.memory_space<vmem>>, vector<8x1xf32>
    %cst_13 = arith.constant 5.000000e-01 : f32
    %14 = vector.broadcast %cst_13 : f32 to vector<8x1xf32>
    %15 = arith.divf %14, %13 : vector<8x1xf32>
    %cst_14 = arith.constant 0.000000e+00 : f32
    %16 = vector.broadcast %cst_14 : f32 to vector<8x32xf32>
    %17 = vector.extract_strided_slice %7 {offsets = [0, 0], sizes = [8, 128], strides = [1, 1]} : vector<64x128xf32> to vector<8x128xf32>
    %18 = arith.truncf %16 : vector<8x32xf32> to vector<8x32xbf16>
    %c32 = arith.constant 32 : index
    %c0_15 = arith.constant 0 : index
    %19 = vector.load %arg4[%c32, %c0_15] : memref<192x128xbf16, #tpu.memory_space<vmem>>, vector<32x128xbf16>
    %cst_16 = arith.constant dense<0.000000e+00> : vector<8x128xf32>
    %20 = tpu.matmul %18, %19, %cst_16 {dimension_numbers = #tpu.dot_dimension_numbers<[1], [0], [0], [1], [0, 0, 1, 1], [], []>} : vector<8x32xbf16>, vector<32x128xbf16>, vector<8x128xf32> -> vector<8x128xf32>
    %21 = arith.addf %17, %20 : vector<8x128xf32>
    %22 = vector.extract_strided_slice %21 {offsets = [0, 0], sizes = [8, 96], strides = [1, 1]} : vector<8x128xf32> to vector<8x96xf32>
    %23 = arith.negf %22 : vector<8x96xf32>
    %24 = math.exp %23 : vector<8x96xf32>
    %cst_17 = arith.constant 1.000000e+00 : f32
    %25 = vector.broadcast %cst_17 : f32 to vector<8x96xf32>
    %26 = arith.addf %25, %24 : vector<8x96xf32>
    %27 = arith.divf %25, %26 : vector<8x96xf32>
    %28 = vector.extract_strided_slice %21 {offsets = [0, 96], sizes = [8, 32], strides = [1, 1]} : vector<8x128xf32> to vector<8x32xf32>
    %29 = math.tanh %28 : vector<8x32xf32>
    %30 = vector.extract_strided_slice %27 {offsets = [0, 32], sizes = [8, 32], strides = [1, 1]} : vector<8x96xf32> to vector<8x32xf32>
    %31 = arith.mulf %30, %16 : vector<8x32xf32>
    %32 = vector.extract_strided_slice %27 {offsets = [0, 0], sizes = [8, 32], strides = [1, 1]} : vector<8x96xf32> to vector<8x32xf32>
    %33 = arith.mulf %32, %29 : vector<8x32xf32>
    %34 = arith.addf %31, %33 : vector<8x32xf32>
    %35 = vector.extract_strided_slice %27 {offsets = [0, 64], sizes = [8, 32], strides = [1, 1]} : vector<8x96xf32> to vector<8x32xf32>
    %36 = math.tanh %34 : vector<8x32xf32>
    %37 = arith.mulf %35, %36 : vector<8x32xf32>
    %38 = arith.truncf %37 : vector<8x32xf32> to vector<8x32xbf16>
    %c64 = arith.constant 64 : index
    %c0_18 = arith.constant 0 : index
    %39 = vector.load %arg4[%c64, %c0_18] : memref<192x128xbf16, #tpu.memory_space<vmem>>, vector<32x128xbf16>
    %cst_19 = arith.constant dense<0.000000e+00> : vector<8x128xf32>
    %40 = tpu.matmul %38, %39, %cst_19 {dimension_numbers = #tpu.dot_dimension_numbers<[1], [0], [0], [1], [0, 0, 1, 1], [], []>} : vector<8x32xbf16>, vector<32x128xbf16>, vector<8x128xf32> -> vector<8x128xf32>
    %41 = vector.broadcast %1 : vector<1x128xf32> to vector<8x128xf32>
    %42 = arith.addf %41, %40 : vector<8x128xf32>
    %43 = arith.truncf %16 : vector<8x32xf32> to vector<8x32xbf16>
    %c96 = arith.constant 96 : index
    %c0_20 = arith.constant 0 : index
    %44 = vector.load %arg4[%c96, %c0_20] : memref<192x128xbf16, #tpu.memory_space<vmem>>, vector<32x128xbf16>
    %cst_21 = arith.constant dense<0.000000e+00> : vector<8x128xf32>
    %45 = tpu.matmul %43, %44, %cst_21 {dimension_numbers = #tpu.dot_dimension_numbers<[1], [0], [0], [1], [0, 0, 1, 1], [], []>} : vector<8x32xbf16>, vector<32x128xbf16>, vector<8x128xf32> -> vector<8x128xf32>
    %46 = arith.addf %42, %45 : vector<8x128xf32>
    %47 = vector.extract_strided_slice %46 {offsets = [0, 0], sizes = [8, 96], strides = [1, 1]} : vector<8x128xf32> to vector<8x96xf32>
    %48 = arith.negf %47 : vector<8x96xf32>
    %49 = math.exp %48 : vector<8x96xf32>
    %cst_22 = arith.constant 1.000000e+00 : f32
    %50 = vector.broadcast %cst_22 : f32 to vector<8x96xf32>
    %51 = arith.addf %50, %49 : vector<8x96xf32>
    %52 = arith.divf %50, %51 : vector<8x96xf32>
    %53 = vector.extract_strided_slice %46 {offsets = [0, 96], sizes = [8, 32], strides = [1, 1]} : vector<8x128xf32> to vector<8x32xf32>
    %54 = math.tanh %53 : vector<8x32xf32>
    %55 = vector.extract_strided_slice %52 {offsets = [0, 32], sizes = [8, 32], strides = [1, 1]} : vector<8x96xf32> to vector<8x32xf32>
    %56 = arith.mulf %55, %16 : vector<8x32xf32>
    %57 = vector.extract_strided_slice %52 {offsets = [0, 0], sizes = [8, 32], strides = [1, 1]} : vector<8x96xf32> to vector<8x32xf32>
    %58 = arith.mulf %57, %54 : vector<8x32xf32>
    %59 = arith.addf %56, %58 : vector<8x32xf32>
    %60 = vector.extract_strided_slice %52 {offsets = [0, 64], sizes = [8, 32], strides = [1, 1]} : vector<8x96xf32> to vector<8x32xf32>
    %61 = math.tanh %59 : vector<8x32xf32>
    %62 = arith.mulf %60, %61 : vector<8x32xf32>
    %63 = vector.extract_strided_slice %7 {offsets = [8, 0], sizes = [8, 128], strides = [1, 1]} : vector<64x128xf32> to vector<8x128xf32>
    %64 = arith.truncf %37 : vector<8x32xf32> to vector<8x32xbf16>
    %c32_23 = arith.constant 32 : index
    %c0_24 = arith.constant 0 : index
    %65 = vector.load %arg4[%c32_23, %c0_24] : memref<192x128xbf16, #tpu.memory_space<vmem>>, vector<32x128xbf16>
    %cst_25 = arith.constant dense<0.000000e+00> : vector<8x128xf32>
    %66 = tpu.matmul %64, %65, %cst_25 {dimension_numbers = #tpu.dot_dimension_numbers<[1], [0], [0], [1], [0, 0, 1, 1], [], []>} : vector<8x32xbf16>, vector<32x128xbf16>, vector<8x128xf32> -> vector<8x128xf32>
    %67 = arith.addf %63, %66 : vector<8x128xf32>
    %68 = vector.extract_strided_slice %67 {offsets = [0, 0], sizes = [8, 96], strides = [1, 1]} : vector<8x128xf32> to vector<8x96xf32>
    %69 = arith.negf %68 : vector<8x96xf32>
    %70 = math.exp %69 : vector<8x96xf32>
    %cst_26 = arith.constant 1.000000e+00 : f32
    %71 = vector.broadcast %cst_26 : f32 to vector<8x96xf32>
    %72 = arith.addf %71, %70 : vector<8x96xf32>
    %73 = arith.divf %71, %72 : vector<8x96xf32>
    %74 = vector.extract_strided_slice %67 {offsets = [0, 96], sizes = [8, 32], strides = [1, 1]} : vector<8x128xf32> to vector<8x32xf32>
    %75 = math.tanh %74 : vector<8x32xf32>
    %76 = vector.extract_strided_slice %73 {offsets = [0, 32], sizes = [8, 32], strides = [1, 1]} : vector<8x96xf32> to vector<8x32xf32>
    %77 = arith.mulf %76, %34 : vector<8x32xf32>
    %78 = vector.extract_strided_slice %73 {offsets = [0, 0], sizes = [8, 32], strides = [1, 1]} : vector<8x96xf32> to vector<8x32xf32>
    %79 = arith.mulf %78, %75 : vector<8x32xf32>
    %80 = arith.addf %77, %79 : vector<8x32xf32>
    %81 = vector.extract_strided_slice %73 {offsets = [0, 64], sizes = [8, 32], strides = [1, 1]} : vector<8x96xf32> to vector<8x32xf32>
    %82 = math.tanh %80 : vector<8x32xf32>
    %83 = arith.mulf %81, %82 : vector<8x32xf32>
    %84 = arith.truncf %83 : vector<8x32xf32> to vector<8x32xbf16>
    %c64_27 = arith.constant 64 : index
    %c0_28 = arith.constant 0 : index
    %85 = vector.load %arg4[%c64_27, %c0_28] : memref<192x128xbf16, #tpu.memory_space<vmem>>, vector<32x128xbf16>
    %cst_29 = arith.constant dense<0.000000e+00> : vector<8x128xf32>
    %86 = tpu.matmul %84, %85, %cst_29 {dimension_numbers = #tpu.dot_dimension_numbers<[1], [0], [0], [1], [0, 0, 1, 1], [], []>} : vector<8x32xbf16>, vector<32x128xbf16>, vector<8x128xf32> -> vector<8x128xf32>
    %87 = vector.broadcast %1 : vector<1x128xf32> to vector<8x128xf32>
    %88 = arith.addf %87, %86 : vector<8x128xf32>
    %89 = arith.truncf %62 : vector<8x32xf32> to vector<8x32xbf16>
    %c96_30 = arith.constant 96 : index
    %c0_31 = arith.constant 0 : index
    %90 = vector.load %arg4[%c96_30, %c0_31] : memref<192x128xbf16, #tpu.memory_space<vmem>>, vector<32x128xbf16>
    %cst_32 = arith.constant dense<0.000000e+00> : vector<8x128xf32>
    %91 = tpu.matmul %89, %90, %cst_32 {dimension_numbers = #tpu.dot_dimension_numbers<[1], [0], [0], [1], [0, 0, 1, 1], [], []>} : vector<8x32xbf16>, vector<32x128xbf16>, vector<8x128xf32> -> vector<8x128xf32>
    %92 = arith.addf %88, %91 : vector<8x128xf32>
    %93 = vector.extract_strided_slice %92 {offsets = [0, 0], sizes = [8, 96], strides = [1, 1]} : vector<8x128xf32> to vector<8x96xf32>
    %94 = arith.negf %93 : vector<8x96xf32>
    %95 = math.exp %94 : vector<8x96xf32>
    %cst_33 = arith.constant 1.000000e+00 : f32
    %96 = vector.broadcast %cst_33 : f32 to vector<8x96xf32>
    %97 = arith.addf %96, %95 : vector<8x96xf32>
    %98 = arith.divf %96, %97 : vector<8x96xf32>
    %99 = vector.extract_strided_slice %92 {offsets = [0, 96], sizes = [8, 32], strides = [1, 1]} : vector<8x128xf32> to vector<8x32xf32>
    %100 = math.tanh %99 : vector<8x32xf32>
    %101 = vector.extract_strided_slice %98 {offsets = [0, 32], sizes = [8, 32], strides = [1, 1]} : vector<8x96xf32> to vector<8x32xf32>
    %102 = arith.mulf %101, %59 : vector<8x32xf32>
    %103 = vector.extract_strided_slice %98 {offsets = [0, 0], sizes = [8, 32], strides = [1, 1]} : vector<8x96xf32> to vector<8x32xf32>
    %104 = arith.mulf %103, %100 : vector<8x32xf32>
    %105 = arith.addf %102, %104 : vector<8x32xf32>
    %106 = vector.extract_strided_slice %98 {offsets = [0, 64], sizes = [8, 32], strides = [1, 1]} : vector<8x96xf32> to vector<8x32xf32>
    %107 = math.tanh %105 : vector<8x32xf32>
    %108 = arith.mulf %106, %107 : vector<8x32xf32>
    %109 = vector.extract_strided_slice %7 {offsets = [16, 0], sizes = [8, 128], strides = [1, 1]} : vector<64x128xf32> to vector<8x128xf32>
    %110 = arith.truncf %83 : vector<8x32xf32> to vector<8x32xbf16>
    %c32_34 = arith.constant 32 : index
    %c0_35 = arith.constant 0 : index
    %111 = vector.load %arg4[%c32_34, %c0_35] : memref<192x128xbf16, #tpu.memory_space<vmem>>, vector<32x128xbf16>
    %cst_36 = arith.constant dense<0.000000e+00> : vector<8x128xf32>
    %112 = tpu.matmul %110, %111, %cst_36 {dimension_numbers = #tpu.dot_dimension_numbers<[1], [0], [0], [1], [0, 0, 1, 1], [], []>} : vector<8x32xbf16>, vector<32x128xbf16>, vector<8x128xf32> -> vector<8x128xf32>
    %113 = arith.addf %109, %112 : vector<8x128xf32>
    %114 = vector.extract_strided_slice %113 {offsets = [0, 0], sizes = [8, 96], strides = [1, 1]} : vector<8x128xf32> to vector<8x96xf32>
    %115 = arith.negf %114 : vector<8x96xf32>
    %116 = math.exp %115 : vector<8x96xf32>
    %cst_37 = arith.constant 1.000000e+00 : f32
    %117 = vector.broadcast %cst_37 : f32 to vector<8x96xf32>
    %118 = arith.addf %117, %116 : vector<8x96xf32>
    %119 = arith.divf %117, %118 : vector<8x96xf32>
    %120 = vector.extract_strided_slice %113 {offsets = [0, 96], sizes = [8, 32], strides = [1, 1]} : vector<8x128xf32> to vector<8x32xf32>
    %121 = math.tanh %120 : vector<8x32xf32>
    %122 = vector.extract_strided_slice %119 {offsets = [0, 32], sizes = [8, 32], strides = [1, 1]} : vector<8x96xf32> to vector<8x32xf32>
    %123 = arith.mulf %122, %80 : vector<8x32xf32>
    %124 = vector.extract_strided_slice %119 {offsets = [0, 0], sizes = [8, 32], strides = [1, 1]} : vector<8x96xf32> to vector<8x32xf32>
    %125 = arith.mulf %124, %121 : vector<8x32xf32>
    %126 = arith.addf %123, %125 : vector<8x32xf32>
    %127 = vector.extract_strided_slice %119 {offsets = [0, 64], sizes = [8, 32], strides = [1, 1]} : vector<8x96xf32> to vector<8x32xf32>
    %128 = math.tanh %126 : vector<8x32xf32>
    %129 = arith.mulf %127, %128 : vector<8x32xf32>
    %130 = arith.truncf %129 : vector<8x32xf32> to vector<8x32xbf16>
    %c64_38 = arith.constant 64 : index
    %c0_39 = arith.constant 0 : index
    %131 = vector.load %arg4[%c64_38, %c0_39] : memref<192x128xbf16, #tpu.memory_space<vmem>>, vector<32x128xbf16>
    %cst_40 = arith.constant dense<0.000000e+00> : vector<8x128xf32>
    %132 = tpu.matmul %130, %131, %cst_40 {dimension_numbers = #tpu.dot_dimension_numbers<[1], [0], [0], [1], [0, 0, 1, 1], [], []>} : vector<8x32xbf16>, vector<32x128xbf16>, vector<8x128xf32> -> vector<8x128xf32>
    %133 = vector.broadcast %1 : vector<1x128xf32> to vector<8x128xf32>
    %134 = arith.addf %133, %132 : vector<8x128xf32>
    %135 = arith.truncf %108 : vector<8x32xf32> to vector<8x32xbf16>
    %c96_41 = arith.constant 96 : index
    %c0_42 = arith.constant 0 : index
    %136 = vector.load %arg4[%c96_41, %c0_42] : memref<192x128xbf16, #tpu.memory_space<vmem>>, vector<32x128xbf16>
    %cst_43 = arith.constant dense<0.000000e+00> : vector<8x128xf32>
    %137 = tpu.matmul %135, %136, %cst_43 {dimension_numbers = #tpu.dot_dimension_numbers<[1], [0], [0], [1], [0, 0, 1, 1], [], []>} : vector<8x32xbf16>, vector<32x128xbf16>, vector<8x128xf32> -> vector<8x128xf32>
    %138 = arith.addf %134, %137 : vector<8x128xf32>
    %139 = vector.extract_strided_slice %138 {offsets = [0, 0], sizes = [8, 96], strides = [1, 1]} : vector<8x128xf32> to vector<8x96xf32>
    %140 = arith.negf %139 : vector<8x96xf32>
    %141 = math.exp %140 : vector<8x96xf32>
    %cst_44 = arith.constant 1.000000e+00 : f32
    %142 = vector.broadcast %cst_44 : f32 to vector<8x96xf32>
    %143 = arith.addf %142, %141 : vector<8x96xf32>
    %144 = arith.divf %142, %143 : vector<8x96xf32>
    %145 = vector.extract_strided_slice %138 {offsets = [0, 96], sizes = [8, 32], strides = [1, 1]} : vector<8x128xf32> to vector<8x32xf32>
    %146 = math.tanh %145 : vector<8x32xf32>
    %147 = vector.extract_strided_slice %144 {offsets = [0, 32], sizes = [8, 32], strides = [1, 1]} : vector<8x96xf32> to vector<8x32xf32>
    %148 = arith.mulf %147, %105 : vector<8x32xf32>
    %149 = vector.extract_strided_slice %144 {offsets = [0, 0], sizes = [8, 32], strides = [1, 1]} : vector<8x96xf32> to vector<8x32xf32>
    %150 = arith.mulf %149, %146 : vector<8x32xf32>
    %151 = arith.addf %148, %150 : vector<8x32xf32>
    %152 = vector.extract_strided_slice %144 {offsets = [0, 64], sizes = [8, 32], strides = [1, 1]} : vector<8x96xf32> to vector<8x32xf32>
    %153 = math.tanh %151 : vector<8x32xf32>
    %154 = arith.mulf %152, %153 : vector<8x32xf32>
    %155 = vector.extract_strided_slice %7 {offsets = [24, 0], sizes = [8, 128], strides = [1, 1]} : vector<64x128xf32> to vector<8x128xf32>
    %156 = arith.truncf %129 : vector<8x32xf32> to vector<8x32xbf16>
    %c32_45 = arith.constant 32 : index
    %c0_46 = arith.constant 0 : index
    %157 = vector.load %arg4[%c32_45, %c0_46] : memref<192x128xbf16, #tpu.memory_space<vmem>>, vector<32x128xbf16>
    %cst_47 = arith.constant dense<0.000000e+00> : vector<8x128xf32>
    %158 = tpu.matmul %156, %157, %cst_47 {dimension_numbers = #tpu.dot_dimension_numbers<[1], [0], [0], [1], [0, 0, 1, 1], [], []>} : vector<8x32xbf16>, vector<32x128xbf16>, vector<8x128xf32> -> vector<8x128xf32>
    %159 = arith.addf %155, %158 : vector<8x128xf32>
    %160 = vector.extract_strided_slice %159 {offsets = [0, 0], sizes = [8, 96], strides = [1, 1]} : vector<8x128xf32> to vector<8x96xf32>
    %161 = arith.negf %160 : vector<8x96xf32>
    %162 = math.exp %161 : vector<8x96xf32>
    %cst_48 = arith.constant 1.000000e+00 : f32
    %163 = vector.broadcast %cst_48 : f32 to vector<8x96xf32>
    %164 = arith.addf %163, %162 : vector<8x96xf32>
    %165 = arith.divf %163, %164 : vector<8x96xf32>
    %166 = vector.extract_strided_slice %159 {offsets = [0, 96], sizes = [8, 32], strides = [1, 1]} : vector<8x128xf32> to vector<8x32xf32>
    %167 = math.tanh %166 : vector<8x32xf32>
    %168 = vector.extract_strided_slice %165 {offsets = [0, 32], sizes = [8, 32], strides = [1, 1]} : vector<8x96xf32> to vector<8x32xf32>
    %169 = arith.mulf %168, %126 : vector<8x32xf32>
    %170 = vector.extract_strided_slice %165 {offsets = [0, 0], sizes = [8, 32], strides = [1, 1]} : vector<8x96xf32> to vector<8x32xf32>
    %171 = arith.mulf %170, %167 : vector<8x32xf32>
    %172 = arith.addf %169, %171 : vector<8x32xf32>
    %173 = vector.extract_strided_slice %165 {offsets = [0, 64], sizes = [8, 32], strides = [1, 1]} : vector<8x96xf32> to vector<8x32xf32>
    %174 = math.tanh %172 : vector<8x32xf32>
    %175 = arith.mulf %173, %174 : vector<8x32xf32>
    %176 = arith.truncf %175 : vector<8x32xf32> to vector<8x32xbf16>
    %c64_49 = arith.constant 64 : index
    %c0_50 = arith.constant 0 : index
    %177 = vector.load %arg4[%c64_49, %c0_50] : memref<192x128xbf16, #tpu.memory_space<vmem>>, vector<32x128xbf16>
    %cst_51 = arith.constant dense<0.000000e+00> : vector<8x128xf32>
    %178 = tpu.matmul %176, %177, %cst_51 {dimension_numbers = #tpu.dot_dimension_numbers<[1], [0], [0], [1], [0, 0, 1, 1], [], []>} : vector<8x32xbf16>, vector<32x128xbf16>, vector<8x128xf32> -> vector<8x128xf32>
    %179 = vector.broadcast %1 : vector<1x128xf32> to vector<8x128xf32>
    %180 = arith.addf %179, %178 : vector<8x128xf32>
    %181 = arith.truncf %154 : vector<8x32xf32> to vector<8x32xbf16>
    %c96_52 = arith.constant 96 : index
    %c0_53 = arith.constant 0 : index
    %182 = vector.load %arg4[%c96_52, %c0_53] : memref<192x128xbf16, #tpu.memory_space<vmem>>, vector<32x128xbf16>
    %cst_54 = arith.constant dense<0.000000e+00> : vector<8x128xf32>
    %183 = tpu.matmul %181, %182, %cst_54 {dimension_numbers = #tpu.dot_dimension_numbers<[1], [0], [0], [1], [0, 0, 1, 1], [], []>} : vector<8x32xbf16>, vector<32x128xbf16>, vector<8x128xf32> -> vector<8x128xf32>
    %184 = arith.addf %180, %183 : vector<8x128xf32>
    %185 = vector.extract_strided_slice %184 {offsets = [0, 0], sizes = [8, 96], strides = [1, 1]} : vector<8x128xf32> to vector<8x96xf32>
    %186 = arith.negf %185 : vector<8x96xf32>
    %187 = math.exp %186 : vector<8x96xf32>
    %cst_55 = arith.constant 1.000000e+00 : f32
    %188 = vector.broadcast %cst_55 : f32 to vector<8x96xf32>
    %189 = arith.addf %188, %187 : vector<8x96xf32>
    %190 = arith.divf %188, %189 : vector<8x96xf32>
    %191 = vector.extract_strided_slice %184 {offsets = [0, 96], sizes = [8, 32], strides = [1, 1]} : vector<8x128xf32> to vector<8x32xf32>
    %192 = math.tanh %191 : vector<8x32xf32>
    %193 = vector.extract_strided_slice %190 {offsets = [0, 32], sizes = [8, 32], strides = [1, 1]} : vector<8x96xf32> to vector<8x32xf32>
    %194 = arith.mulf %193, %151 : vector<8x32xf32>
    %195 = vector.extract_strided_slice %190 {offsets = [0, 0], sizes = [8, 32], strides = [1, 1]} : vector<8x96xf32> to vector<8x32xf32>
    %196 = arith.mulf %195, %192 : vector<8x32xf32>
    %197 = arith.addf %194, %196 : vector<8x32xf32>
    %198 = vector.extract_strided_slice %190 {offsets = [0, 64], sizes = [8, 32], strides = [1, 1]} : vector<8x96xf32> to vector<8x32xf32>
    %199 = math.tanh %197 : vector<8x32xf32>
    %200 = arith.mulf %198, %199 : vector<8x32xf32>
    %201 = vector.extract_strided_slice %7 {offsets = [32, 0], sizes = [8, 128], strides = [1, 1]} : vector<64x128xf32> to vector<8x128xf32>
    %202 = arith.truncf %175 : vector<8x32xf32> to vector<8x32xbf16>
    %c32_56 = arith.constant 32 : index
    %c0_57 = arith.constant 0 : index
    %203 = vector.load %arg4[%c32_56, %c0_57] : memref<192x128xbf16, #tpu.memory_space<vmem>>, vector<32x128xbf16>
    %cst_58 = arith.constant dense<0.000000e+00> : vector<8x128xf32>
    %204 = tpu.matmul %202, %203, %cst_58 {dimension_numbers = #tpu.dot_dimension_numbers<[1], [0], [0], [1], [0, 0, 1, 1], [], []>} : vector<8x32xbf16>, vector<32x128xbf16>, vector<8x128xf32> -> vector<8x128xf32>
    %205 = arith.addf %201, %204 : vector<8x128xf32>
    %206 = vector.extract_strided_slice %205 {offsets = [0, 0], sizes = [8, 96], strides = [1, 1]} : vector<8x128xf32> to vector<8x96xf32>
    %207 = arith.negf %206 : vector<8x96xf32>
    %208 = math.exp %207 : vector<8x96xf32>
    %cst_59 = arith.constant 1.000000e+00 : f32
    %209 = vector.broadcast %cst_59 : f32 to vector<8x96xf32>
    %210 = arith.addf %209, %208 : vector<8x96xf32>
    %211 = arith.divf %209, %210 : vector<8x96xf32>
    %212 = vector.extract_strided_slice %205 {offsets = [0, 96], sizes = [8, 32], strides = [1, 1]} : vector<8x128xf32> to vector<8x32xf32>
    %213 = math.tanh %212 : vector<8x32xf32>
    %214 = vector.extract_strided_slice %211 {offsets = [0, 32], sizes = [8, 32], strides = [1, 1]} : vector<8x96xf32> to vector<8x32xf32>
    %215 = arith.mulf %214, %172 : vector<8x32xf32>
    %216 = vector.extract_strided_slice %211 {offsets = [0, 0], sizes = [8, 32], strides = [1, 1]} : vector<8x96xf32> to vector<8x32xf32>
    %217 = arith.mulf %216, %213 : vector<8x32xf32>
    %218 = arith.addf %215, %217 : vector<8x32xf32>
    %219 = vector.extract_strided_slice %211 {offsets = [0, 64], sizes = [8, 32], strides = [1, 1]} : vector<8x96xf32> to vector<8x32xf32>
    %220 = math.tanh %218 : vector<8x32xf32>
    %221 = arith.mulf %219, %220 : vector<8x32xf32>
    %222 = arith.truncf %221 : vector<8x32xf32> to vector<8x32xbf16>
    %c64_60 = arith.constant 64 : index
    %c0_61 = arith.constant 0 : index
    %223 = vector.load %arg4[%c64_60, %c0_61] : memref<192x128xbf16, #tpu.memory_space<vmem>>, vector<32x128xbf16>
    %cst_62 = arith.constant dense<0.000000e+00> : vector<8x128xf32>
    %224 = tpu.matmul %222, %223, %cst_62 {dimension_numbers = #tpu.dot_dimension_numbers<[1], [0], [0], [1], [0, 0, 1, 1], [], []>} : vector<8x32xbf16>, vector<32x128xbf16>, vector<8x128xf32> -> vector<8x128xf32>
    %225 = vector.broadcast %1 : vector<1x128xf32> to vector<8x128xf32>
    %226 = arith.addf %225, %224 : vector<8x128xf32>
    %227 = arith.truncf %200 : vector<8x32xf32> to vector<8x32xbf16>
    %c96_63 = arith.constant 96 : index
    %c0_64 = arith.constant 0 : index
    %228 = vector.load %arg4[%c96_63, %c0_64] : memref<192x128xbf16, #tpu.memory_space<vmem>>, vector<32x128xbf16>
    %cst_65 = arith.constant dense<0.000000e+00> : vector<8x128xf32>
    %229 = tpu.matmul %227, %228, %cst_65 {dimension_numbers = #tpu.dot_dimension_numbers<[1], [0], [0], [1], [0, 0, 1, 1], [], []>} : vector<8x32xbf16>, vector<32x128xbf16>, vector<8x128xf32> -> vector<8x128xf32>
    %230 = arith.addf %226, %229 : vector<8x128xf32>
    %231 = vector.extract_strided_slice %230 {offsets = [0, 0], sizes = [8, 96], strides = [1, 1]} : vector<8x128xf32> to vector<8x96xf32>
    %232 = arith.negf %231 : vector<8x96xf32>
    %233 = math.exp %232 : vector<8x96xf32>
    %cst_66 = arith.constant 1.000000e+00 : f32
    %234 = vector.broadcast %cst_66 : f32 to vector<8x96xf32>
    %235 = arith.addf %234, %233 : vector<8x96xf32>
    %236 = arith.divf %234, %235 : vector<8x96xf32>
    %237 = vector.extract_strided_slice %230 {offsets = [0, 96], sizes = [8, 32], strides = [1, 1]} : vector<8x128xf32> to vector<8x32xf32>
    %238 = math.tanh %237 : vector<8x32xf32>
    %239 = vector.extract_strided_slice %236 {offsets = [0, 32], sizes = [8, 32], strides = [1, 1]} : vector<8x96xf32> to vector<8x32xf32>
    %240 = arith.mulf %239, %197 : vector<8x32xf32>
    %241 = vector.extract_strided_slice %236 {offsets = [0, 0], sizes = [8, 32], strides = [1, 1]} : vector<8x96xf32> to vector<8x32xf32>
    %242 = arith.mulf %241, %238 : vector<8x32xf32>
    %243 = arith.addf %240, %242 : vector<8x32xf32>
    %244 = vector.extract_strided_slice %236 {offsets = [0, 64], sizes = [8, 32], strides = [1, 1]} : vector<8x96xf32> to vector<8x32xf32>
    %245 = math.tanh %243 : vector<8x32xf32>
    %246 = arith.mulf %244, %245 : vector<8x32xf32>
    %247 = vector.extract_strided_slice %7 {offsets = [40, 0], sizes = [8, 128], strides = [1, 1]} : vector<64x128xf32> to vector<8x128xf32>
    %248 = arith.truncf %221 : vector<8x32xf32> to vector<8x32xbf16>
    %c32_67 = arith.constant 32 : index
    %c0_68 = arith.constant 0 : index
    %249 = vector.load %arg4[%c32_67, %c0_68] : memref<192x128xbf16, #tpu.memory_space<vmem>>, vector<32x128xbf16>
    %cst_69 = arith.constant dense<0.000000e+00> : vector<8x128xf32>
    %250 = tpu.matmul %248, %249, %cst_69 {dimension_numbers = #tpu.dot_dimension_numbers<[1], [0], [0], [1], [0, 0, 1, 1], [], []>} : vector<8x32xbf16>, vector<32x128xbf16>, vector<8x128xf32> -> vector<8x128xf32>
    %251 = arith.addf %247, %250 : vector<8x128xf32>
    %252 = vector.extract_strided_slice %251 {offsets = [0, 0], sizes = [8, 96], strides = [1, 1]} : vector<8x128xf32> to vector<8x96xf32>
    %253 = arith.negf %252 : vector<8x96xf32>
    %254 = math.exp %253 : vector<8x96xf32>
    %cst_70 = arith.constant 1.000000e+00 : f32
    %255 = vector.broadcast %cst_70 : f32 to vector<8x96xf32>
    %256 = arith.addf %255, %254 : vector<8x96xf32>
    %257 = arith.divf %255, %256 : vector<8x96xf32>
    %258 = vector.extract_strided_slice %251 {offsets = [0, 96], sizes = [8, 32], strides = [1, 1]} : vector<8x128xf32> to vector<8x32xf32>
    %259 = math.tanh %258 : vector<8x32xf32>
    %260 = vector.extract_strided_slice %257 {offsets = [0, 32], sizes = [8, 32], strides = [1, 1]} : vector<8x96xf32> to vector<8x32xf32>
    %261 = arith.mulf %260, %218 : vector<8x32xf32>
    %262 = vector.extract_strided_slice %257 {offsets = [0, 0], sizes = [8, 32], strides = [1, 1]} : vector<8x96xf32> to vector<8x32xf32>
    %263 = arith.mulf %262, %259 : vector<8x32xf32>
    %264 = arith.addf %261, %263 : vector<8x32xf32>
    %265 = vector.extract_strided_slice %257 {offsets = [0, 64], sizes = [8, 32], strides = [1, 1]} : vector<8x96xf32> to vector<8x32xf32>
    %266 = math.tanh %264 : vector<8x32xf32>
    %267 = arith.mulf %265, %266 : vector<8x32xf32>
    %268 = arith.truncf %267 : vector<8x32xf32> to vector<8x32xbf16>
    %c64_71 = arith.constant 64 : index
    %c0_72 = arith.constant 0 : index
    %269 = vector.load %arg4[%c64_71, %c0_72] : memref<192x128xbf16, #tpu.memory_space<vmem>>, vector<32x128xbf16>
    %cst_73 = arith.constant dense<0.000000e+00> : vector<8x128xf32>
    %270 = tpu.matmul %268, %269, %cst_73 {dimension_numbers = #tpu.dot_dimension_numbers<[1], [0], [0], [1], [0, 0, 1, 1], [], []>} : vector<8x32xbf16>, vector<32x128xbf16>, vector<8x128xf32> -> vector<8x128xf32>
    %271 = vector.broadcast %1 : vector<1x128xf32> to vector<8x128xf32>
    %272 = arith.addf %271, %270 : vector<8x128xf32>
    %273 = arith.truncf %246 : vector<8x32xf32> to vector<8x32xbf16>
    %c96_74 = arith.constant 96 : index
    %c0_75 = arith.constant 0 : index
    %274 = vector.load %arg4[%c96_74, %c0_75] : memref<192x128xbf16, #tpu.memory_space<vmem>>, vector<32x128xbf16>
    %cst_76 = arith.constant dense<0.000000e+00> : vector<8x128xf32>
    %275 = tpu.matmul %273, %274, %cst_76 {dimension_numbers = #tpu.dot_dimension_numbers<[1], [0], [0], [1], [0, 0, 1, 1], [], []>} : vector<8x32xbf16>, vector<32x128xbf16>, vector<8x128xf32> -> vector<8x128xf32>
    %276 = arith.addf %272, %275 : vector<8x128xf32>
    %277 = vector.extract_strided_slice %276 {offsets = [0, 0], sizes = [8, 96], strides = [1, 1]} : vector<8x128xf32> to vector<8x96xf32>
    %278 = arith.negf %277 : vector<8x96xf32>
    %279 = math.exp %278 : vector<8x96xf32>
    %cst_77 = arith.constant 1.000000e+00 : f32
    %280 = vector.broadcast %cst_77 : f32 to vector<8x96xf32>
    %281 = arith.addf %280, %279 : vector<8x96xf32>
    %282 = arith.divf %280, %281 : vector<8x96xf32>
    %283 = vector.extract_strided_slice %276 {offsets = [0, 96], sizes = [8, 32], strides = [1, 1]} : vector<8x128xf32> to vector<8x32xf32>
    %284 = math.tanh %283 : vector<8x32xf32>
    %285 = vector.extract_strided_slice %282 {offsets = [0, 32], sizes = [8, 32], strides = [1, 1]} : vector<8x96xf32> to vector<8x32xf32>
    %286 = arith.mulf %285, %243 : vector<8x32xf32>
    %287 = vector.extract_strided_slice %282 {offsets = [0, 0], sizes = [8, 32], strides = [1, 1]} : vector<8x96xf32> to vector<8x32xf32>
    %288 = arith.mulf %287, %284 : vector<8x32xf32>
    %289 = arith.addf %286, %288 : vector<8x32xf32>
    %290 = vector.extract_strided_slice %282 {offsets = [0, 64], sizes = [8, 32], strides = [1, 1]} : vector<8x96xf32> to vector<8x32xf32>
    %291 = math.tanh %289 : vector<8x32xf32>
    %292 = arith.mulf %290, %291 : vector<8x32xf32>
    %293 = vector.extract_strided_slice %7 {offsets = [48, 0], sizes = [8, 128], strides = [1, 1]} : vector<64x128xf32> to vector<8x128xf32>
    %294 = arith.truncf %267 : vector<8x32xf32> to vector<8x32xbf16>
    %c32_78 = arith.constant 32 : index
    %c0_79 = arith.constant 0 : index
    %295 = vector.load %arg4[%c32_78, %c0_79] : memref<192x128xbf16, #tpu.memory_space<vmem>>, vector<32x128xbf16>
    %cst_80 = arith.constant dense<0.000000e+00> : vector<8x128xf32>
    %296 = tpu.matmul %294, %295, %cst_80 {dimension_numbers = #tpu.dot_dimension_numbers<[1], [0], [0], [1], [0, 0, 1, 1], [], []>} : vector<8x32xbf16>, vector<32x128xbf16>, vector<8x128xf32> -> vector<8x128xf32>
    %297 = arith.addf %293, %296 : vector<8x128xf32>
    %298 = vector.extract_strided_slice %297 {offsets = [0, 0], sizes = [8, 96], strides = [1, 1]} : vector<8x128xf32> to vector<8x96xf32>
    %299 = arith.negf %298 : vector<8x96xf32>
    %300 = math.exp %299 : vector<8x96xf32>
    %cst_81 = arith.constant 1.000000e+00 : f32
    %301 = vector.broadcast %cst_81 : f32 to vector<8x96xf32>
    %302 = arith.addf %301, %300 : vector<8x96xf32>
    %303 = arith.divf %301, %302 : vector<8x96xf32>
    %304 = vector.extract_strided_slice %297 {offsets = [0, 96], sizes = [8, 32], strides = [1, 1]} : vector<8x128xf32> to vector<8x32xf32>
    %305 = math.tanh %304 : vector<8x32xf32>
    %306 = vector.extract_strided_slice %303 {offsets = [0, 32], sizes = [8, 32], strides = [1, 1]} : vector<8x96xf32> to vector<8x32xf32>
    %307 = arith.mulf %306, %264 : vector<8x32xf32>
    %308 = vector.extract_strided_slice %303 {offsets = [0, 0], sizes = [8, 32], strides = [1, 1]} : vector<8x96xf32> to vector<8x32xf32>
    %309 = arith.mulf %308, %305 : vector<8x32xf32>
    %310 = arith.addf %307, %309 : vector<8x32xf32>
    %311 = vector.extract_strided_slice %303 {offsets = [0, 64], sizes = [8, 32], strides = [1, 1]} : vector<8x96xf32> to vector<8x32xf32>
    %312 = math.tanh %310 : vector<8x32xf32>
    %313 = arith.mulf %311, %312 : vector<8x32xf32>
    %314 = arith.truncf %313 : vector<8x32xf32> to vector<8x32xbf16>
    %c64_82 = arith.constant 64 : index
    %c0_83 = arith.constant 0 : index
    %315 = vector.load %arg4[%c64_82, %c0_83] : memref<192x128xbf16, #tpu.memory_space<vmem>>, vector<32x128xbf16>
    %cst_84 = arith.constant dense<0.000000e+00> : vector<8x128xf32>
    %316 = tpu.matmul %314, %315, %cst_84 {dimension_numbers = #tpu.dot_dimension_numbers<[1], [0], [0], [1], [0, 0, 1, 1], [], []>} : vector<8x32xbf16>, vector<32x128xbf16>, vector<8x128xf32> -> vector<8x128xf32>
    %317 = vector.broadcast %1 : vector<1x128xf32> to vector<8x128xf32>
    %318 = arith.addf %317, %316 : vector<8x128xf32>
    %319 = arith.truncf %292 : vector<8x32xf32> to vector<8x32xbf16>
    %c96_85 = arith.constant 96 : index
    %c0_86 = arith.constant 0 : index
    %320 = vector.load %arg4[%c96_85, %c0_86] : memref<192x128xbf16, #tpu.memory_space<vmem>>, vector<32x128xbf16>
    %cst_87 = arith.constant dense<0.000000e+00> : vector<8x128xf32>
    %321 = tpu.matmul %319, %320, %cst_87 {dimension_numbers = #tpu.dot_dimension_numbers<[1], [0], [0], [1], [0, 0, 1, 1], [], []>} : vector<8x32xbf16>, vector<32x128xbf16>, vector<8x128xf32> -> vector<8x128xf32>
    %322 = arith.addf %318, %321 : vector<8x128xf32>
    %323 = vector.extract_strided_slice %322 {offsets = [0, 0], sizes = [8, 96], strides = [1, 1]} : vector<8x128xf32> to vector<8x96xf32>
    %324 = arith.negf %323 : vector<8x96xf32>
    %325 = math.exp %324 : vector<8x96xf32>
    %cst_88 = arith.constant 1.000000e+00 : f32
    %326 = vector.broadcast %cst_88 : f32 to vector<8x96xf32>
    %327 = arith.addf %326, %325 : vector<8x96xf32>
    %328 = arith.divf %326, %327 : vector<8x96xf32>
    %329 = vector.extract_strided_slice %322 {offsets = [0, 96], sizes = [8, 32], strides = [1, 1]} : vector<8x128xf32> to vector<8x32xf32>
    %330 = math.tanh %329 : vector<8x32xf32>
    %331 = vector.extract_strided_slice %328 {offsets = [0, 32], sizes = [8, 32], strides = [1, 1]} : vector<8x96xf32> to vector<8x32xf32>
    %332 = arith.mulf %331, %289 : vector<8x32xf32>
    %333 = vector.extract_strided_slice %328 {offsets = [0, 0], sizes = [8, 32], strides = [1, 1]} : vector<8x96xf32> to vector<8x32xf32>
    %334 = arith.mulf %333, %330 : vector<8x32xf32>
    %335 = arith.addf %332, %334 : vector<8x32xf32>
    %336 = vector.extract_strided_slice %328 {offsets = [0, 64], sizes = [8, 32], strides = [1, 1]} : vector<8x96xf32> to vector<8x32xf32>
    %337 = math.tanh %335 : vector<8x32xf32>
    %338 = arith.mulf %336, %337 : vector<8x32xf32>
    %339 = vector.extract_strided_slice %7 {offsets = [56, 0], sizes = [8, 128], strides = [1, 1]} : vector<64x128xf32> to vector<8x128xf32>
    %340 = arith.truncf %313 : vector<8x32xf32> to vector<8x32xbf16>
    %c32_89 = arith.constant 32 : index
    %c0_90 = arith.constant 0 : index
    %341 = vector.load %arg4[%c32_89, %c0_90] : memref<192x128xbf16, #tpu.memory_space<vmem>>, vector<32x128xbf16>
    %cst_91 = arith.constant dense<0.000000e+00> : vector<8x128xf32>
    %342 = tpu.matmul %340, %341, %cst_91 {dimension_numbers = #tpu.dot_dimension_numbers<[1], [0], [0], [1], [0, 0, 1, 1], [], []>} : vector<8x32xbf16>, vector<32x128xbf16>, vector<8x128xf32> -> vector<8x128xf32>
    %343 = arith.addf %339, %342 : vector<8x128xf32>
    %344 = vector.extract_strided_slice %343 {offsets = [0, 0], sizes = [8, 96], strides = [1, 1]} : vector<8x128xf32> to vector<8x96xf32>
    %345 = arith.negf %344 : vector<8x96xf32>
    %346 = math.exp %345 : vector<8x96xf32>
    %cst_92 = arith.constant 1.000000e+00 : f32
    %347 = vector.broadcast %cst_92 : f32 to vector<8x96xf32>
    %348 = arith.addf %347, %346 : vector<8x96xf32>
    %349 = arith.divf %347, %348 : vector<8x96xf32>
    %350 = vector.extract_strided_slice %343 {offsets = [0, 96], sizes = [8, 32], strides = [1, 1]} : vector<8x128xf32> to vector<8x32xf32>
    %351 = math.tanh %350 : vector<8x32xf32>
    %352 = vector.extract_strided_slice %349 {offsets = [0, 32], sizes = [8, 32], strides = [1, 1]} : vector<8x96xf32> to vector<8x32xf32>
    %353 = arith.mulf %352, %310 : vector<8x32xf32>
    %354 = vector.extract_strided_slice %349 {offsets = [0, 0], sizes = [8, 32], strides = [1, 1]} : vector<8x96xf32> to vector<8x32xf32>
    %355 = arith.mulf %354, %351 : vector<8x32xf32>
    %356 = arith.addf %353, %355 : vector<8x32xf32>
    %357 = vector.extract_strided_slice %349 {offsets = [0, 64], sizes = [8, 32], strides = [1, 1]} : vector<8x96xf32> to vector<8x32xf32>
    %358 = math.tanh %356 : vector<8x32xf32>
    %359 = arith.mulf %357, %358 : vector<8x32xf32>
    %360 = arith.truncf %359 : vector<8x32xf32> to vector<8x32xbf16>
    %c64_93 = arith.constant 64 : index
    %c0_94 = arith.constant 0 : index
    %361 = vector.load %arg4[%c64_93, %c0_94] : memref<192x128xbf16, #tpu.memory_space<vmem>>, vector<32x128xbf16>
    %cst_95 = arith.constant dense<0.000000e+00> : vector<8x128xf32>
    %362 = tpu.matmul %360, %361, %cst_95 {dimension_numbers = #tpu.dot_dimension_numbers<[1], [0], [0], [1], [0, 0, 1, 1], [], []>} : vector<8x32xbf16>, vector<32x128xbf16>, vector<8x128xf32> -> vector<8x128xf32>
    %363 = vector.broadcast %1 : vector<1x128xf32> to vector<8x128xf32>
    %364 = arith.addf %363, %362 : vector<8x128xf32>
    %365 = arith.truncf %338 : vector<8x32xf32> to vector<8x32xbf16>
    %c96_96 = arith.constant 96 : index
    %c0_97 = arith.constant 0 : index
    %366 = vector.load %arg4[%c96_96, %c0_97] : memref<192x128xbf16, #tpu.memory_space<vmem>>, vector<32x128xbf16>
    %cst_98 = arith.constant dense<0.000000e+00> : vector<8x128xf32>
    %367 = tpu.matmul %365, %366, %cst_98 {dimension_numbers = #tpu.dot_dimension_numbers<[1], [0], [0], [1], [0, 0, 1, 1], [], []>} : vector<8x32xbf16>, vector<32x128xbf16>, vector<8x128xf32> -> vector<8x128xf32>
    %368 = arith.addf %364, %367 : vector<8x128xf32>
    %369 = vector.extract_strided_slice %368 {offsets = [0, 0], sizes = [8, 96], strides = [1, 1]} : vector<8x128xf32> to vector<8x96xf32>
    %370 = arith.negf %369 : vector<8x96xf32>
    %371 = math.exp %370 : vector<8x96xf32>
    %cst_99 = arith.constant 1.000000e+00 : f32
    %372 = vector.broadcast %cst_99 : f32 to vector<8x96xf32>
    %373 = arith.addf %372, %371 : vector<8x96xf32>
    %374 = arith.divf %372, %373 : vector<8x96xf32>
    %375 = vector.extract_strided_slice %368 {offsets = [0, 96], sizes = [8, 32], strides = [1, 1]} : vector<8x128xf32> to vector<8x32xf32>
    %376 = math.tanh %375 : vector<8x32xf32>
    %377 = vector.extract_strided_slice %374 {offsets = [0, 32], sizes = [8, 32], strides = [1, 1]} : vector<8x96xf32> to vector<8x32xf32>
    %378 = arith.mulf %377, %335 : vector<8x32xf32>
    %379 = vector.extract_strided_slice %374 {offsets = [0, 0], sizes = [8, 32], strides = [1, 1]} : vector<8x96xf32> to vector<8x32xf32>
    %380 = arith.mulf %379, %376 : vector<8x32xf32>
    %381 = arith.addf %378, %380 : vector<8x32xf32>
    %382 = vector.extract_strided_slice %374 {offsets = [0, 64], sizes = [8, 32], strides = [1, 1]} : vector<8x96xf32> to vector<8x32xf32>
    %383 = math.tanh %381 : vector<8x32xf32>
    %384 = arith.mulf %382, %383 : vector<8x32xf32>
    %cst_100 = arith.constant 0.000000e+00 : f32
    %385 = vector.broadcast %cst_100 : f32 to vector<8x6xf32>
    %c0_101 = arith.constant 0 : index
    %c1_102 = arith.constant 1 : index
    %386 = vector.load %arg3[%c0_101, %c1_102] : memref<8x18xf32, #tpu.memory_space<vmem>>, vector<8x1xf32>
    %c0_103 = arith.constant 0 : index
    %c5 = arith.constant 5 : index
    %387 = vector.load %arg3[%c0_103, %c5] : memref<8x18xf32, #tpu.memory_space<vmem>>, vector<8x1xf32>
    %c0_104 = arith.constant 0 : index
    %c4 = arith.constant 4 : index
    %388 = vector.load %arg3[%c0_104, %c4] : memref<8x18xf32, #tpu.memory_space<vmem>>, vector<8x1xf32>
    %c0_105 = arith.constant 0 : index
    %c2_106 = arith.constant 2 : index
    %389 = vector.load %arg3[%c0_105, %c2_106] : memref<8x18xf32, #tpu.memory_space<vmem>>, vector<8x1xf32>
    %c0_107 = arith.constant 0 : index
    %c13 = arith.constant 13 : index
    %390 = vector.load %arg3[%c0_107, %c13] : memref<8x18xf32, #tpu.memory_space<vmem>>, vector<8x1xf32>
    %c0_108 = arith.constant 0 : index
    %c11 = arith.constant 11 : index
    %391 = vector.load %arg3[%c0_108, %c11] : memref<8x18xf32, #tpu.memory_space<vmem>>, vector<8x1xf32>
    %392 = arith.subf %390, %391 : vector<8x1xf32>
    %cst_109 = arith.constant 5.000000e-01 : f32
    %393 = vector.broadcast %cst_109 : f32 to vector<8x1xf32>
    %394 = arith.mulf %392, %393 : vector<8x1xf32>
    %c0_110 = arith.constant 0 : index
    %c12 = arith.constant 12 : index
    %395 = vector.load %arg3[%c0_110, %c12] : memref<8x18xf32, #tpu.memory_space<vmem>>, vector<8x1xf32>
    %c0_111 = arith.constant 0 : index
    %c10 = arith.constant 10 : index
    %396 = vector.load %arg3[%c0_111, %c10] : memref<8x18xf32, #tpu.memory_space<vmem>>, vector<8x1xf32>
    %397 = arith.subf %395, %396 : vector<8x1xf32>
    %cst_112 = arith.constant 5.000000e-01 : f32
    %398 = vector.broadcast %cst_112 : f32 to vector<8x1xf32>
    %399 = arith.mulf %397, %398 : vector<8x1xf32>
    %c0_113 = arith.constant 0 : index
    %c10_114 = arith.constant 10 : index
    %400 = vector.load %arg3[%c0_113, %c10_114] : memref<8x18xf32, #tpu.memory_space<vmem>>, vector<8x1xf32>
    %c0_115 = arith.constant 0 : index
    %c8 = arith.constant 8 : index
    %401 = vector.load %arg3[%c0_115, %c8] : memref<8x18xf32, #tpu.memory_space<vmem>>, vector<8x1xf32>
    %402 = arith.subf %400, %401 : vector<8x1xf32>
    %cst_116 = arith.constant 5.000000e-01 : f32
    %403 = vector.broadcast %cst_116 : f32 to vector<8x1xf32>
    %404 = arith.mulf %402, %403 : vector<8x1xf32>
    %c0_117 = arith.constant 0 : index
    %c13_118 = arith.constant 13 : index
    %405 = vector.load %arg3[%c0_117, %c13_118] : memref<8x18xf32, #tpu.memory_space<vmem>>, vector<8x1xf32>
    %c0_119 = arith.constant 0 : index
    %c9 = arith.constant 9 : index
    %406 = vector.load %arg3[%c0_119, %c9] : memref<8x18xf32, #tpu.memory_space<vmem>>, vector<8x1xf32>
    %407 = arith.subf %405, %406 : vector<8x1xf32>
    %cst_120 = arith.constant 2.500000e-01 : f32
    %408 = vector.broadcast %cst_120 : f32 to vector<8x1xf32>
    %409 = arith.mulf %407, %408 : vector<8x1xf32>
    %c0_121 = arith.constant 0 : index
    %c12_122 = arith.constant 12 : index
    %410 = vector.load %arg3[%c0_121, %c12_122] : memref<8x18xf32, #tpu.memory_space<vmem>>, vector<8x1xf32>
    %c0_123 = arith.constant 0 : index
    %c8_124 = arith.constant 8 : index
    %411 = vector.load %arg3[%c0_123, %c8_124] : memref<8x18xf32, #tpu.memory_space<vmem>>, vector<8x1xf32>
    %412 = arith.subf %410, %411 : vector<8x1xf32>
    %cst_125 = arith.constant 2.500000e-01 : f32
    %413 = vector.broadcast %cst_125 : f32 to vector<8x1xf32>
    %414 = arith.mulf %412, %413 : vector<8x1xf32>
    %c0_126 = arith.constant 0 : index
    %c10_127 = arith.constant 10 : index
    %415 = vector.load %arg3[%c0_126, %c10_127] : memref<8x18xf32, #tpu.memory_space<vmem>>, vector<8x1xf32>
    %c0_128 = arith.constant 0 : index
    %c6 = arith.constant 6 : index
    %416 = vector.load %arg3[%c0_128, %c6] : memref<8x18xf32, #tpu.memory_space<vmem>>, vector<8x1xf32>
    %417 = arith.subf %415, %416 : vector<8x1xf32>
    %cst_129 = arith.constant 2.500000e-01 : f32
    %418 = vector.broadcast %cst_129 : f32 to vector<8x1xf32>
    %419 = arith.mulf %417, %418 : vector<8x1xf32>
    %420 = tpu.concatenate %387, %388, %389, %394, %399, %404, %409, %414, %419, %386, %385 in 1 : vector<8x1xf32>, vector<8x1xf32>, vector<8x1xf32>, vector<8x1xf32>, vector<8x1xf32>, vector<8x1xf32>, vector<8x1xf32>, vector<8x1xf32>, vector<8x1xf32>, vector<8x1xf32>, vector<8x6xf32> -> vector<8x16xf32>
    %421 = vector.extract_strided_slice %12 {offsets = [0, 0], sizes = [8, 128], strides = [1, 1]} : vector<32x128xf32> to vector<8x128xf32>
    %422 = arith.truncf %420 : vector<8x16xf32> to vector<8x16xbf16>
    %c144 = arith.constant 144 : index
    %c0_130 = arith.constant 0 : index
    %423 = vector.load %arg4[%c144, %c0_130] : memref<192x128xbf16, #tpu.memory_space<vmem>>, vector<16x128xbf16>
    %cst_131 = arith.constant dense<0.000000e+00> : vector<8x128xf32>
    %424 = tpu.matmul %422, %423, %cst_131 {dimension_numbers = #tpu.dot_dimension_numbers<[1], [0], [0], [1], [0, 0, 1, 1], [], []>} : vector<8x16xbf16>, vector<16x128xbf16>, vector<8x128xf32> -> vector<8x128xf32>
    %425 = arith.addf %421, %424 : vector<8x128xf32>
    %426 = arith.truncf %359 : vector<8x32xf32> to vector<8x32xbf16>
    %c32_132 = arith.constant 32 : index
    %c0_133 = arith.constant 0 : index
    %427 = vector.load %arg4[%c32_132, %c0_133] : memref<192x128xbf16, #tpu.memory_space<vmem>>, vector<32x128xbf16>
    %cst_134 = arith.constant dense<0.000000e+00> : vector<8x128xf32>
    %428 = tpu.matmul %426, %427, %cst_134 {dimension_numbers = #tpu.dot_dimension_numbers<[1], [0], [0], [1], [0, 0, 1, 1], [], []>} : vector<8x32xbf16>, vector<32x128xbf16>, vector<8x128xf32> -> vector<8x128xf32>
    %429 = arith.addf %425, %428 : vector<8x128xf32>
    %430 = vector.extract_strided_slice %429 {offsets = [0, 0], sizes = [8, 96], strides = [1, 1]} : vector<8x128xf32> to vector<8x96xf32>
    %431 = arith.negf %430 : vector<8x96xf32>
    %432 = math.exp %431 : vector<8x96xf32>
    %cst_135 = arith.constant 1.000000e+00 : f32
    %433 = vector.broadcast %cst_135 : f32 to vector<8x96xf32>
    %434 = arith.addf %433, %432 : vector<8x96xf32>
    %435 = arith.divf %433, %434 : vector<8x96xf32>
    %436 = vector.extract_strided_slice %429 {offsets = [0, 96], sizes = [8, 32], strides = [1, 1]} : vector<8x128xf32> to vector<8x32xf32>
    %437 = math.tanh %436 : vector<8x32xf32>
    %438 = vector.extract_strided_slice %435 {offsets = [0, 32], sizes = [8, 32], strides = [1, 1]} : vector<8x96xf32> to vector<8x32xf32>
    %439 = arith.mulf %438, %356 : vector<8x32xf32>
    %440 = vector.extract_strided_slice %435 {offsets = [0, 0], sizes = [8, 32], strides = [1, 1]} : vector<8x96xf32> to vector<8x32xf32>
    %441 = arith.mulf %440, %437 : vector<8x32xf32>
    %442 = arith.addf %439, %441 : vector<8x32xf32>
    %443 = vector.extract_strided_slice %435 {offsets = [0, 64], sizes = [8, 32], strides = [1, 1]} : vector<8x96xf32> to vector<8x32xf32>
    %444 = math.tanh %442 : vector<8x32xf32>
    %445 = arith.mulf %443, %444 : vector<8x32xf32>
    %446 = arith.truncf %445 : vector<8x32xf32> to vector<8x32xbf16>
    %c64_136 = arith.constant 64 : index
    %c0_137 = arith.constant 0 : index
    %447 = vector.load %arg4[%c64_136, %c0_137] : memref<192x128xbf16, #tpu.memory_space<vmem>>, vector<32x128xbf16>
    %cst_138 = arith.constant dense<0.000000e+00> : vector<8x128xf32>
    %448 = tpu.matmul %446, %447, %cst_138 {dimension_numbers = #tpu.dot_dimension_numbers<[1], [0], [0], [1], [0, 0, 1, 1], [], []>} : vector<8x32xbf16>, vector<32x128xbf16>, vector<8x128xf32> -> vector<8x128xf32>
    %449 = vector.broadcast %1 : vector<1x128xf32> to vector<8x128xf32>
    %450 = arith.addf %449, %448 : vector<8x128xf32>
    %451 = arith.truncf %384 : vector<8x32xf32> to vector<8x32xbf16>
    %c96_139 = arith.constant 96 : index
    %c0_140 = arith.constant 0 : index
    %452 = vector.load %arg4[%c96_139, %c0_140] : memref<192x128xbf16, #tpu.memory_space<vmem>>, vector<32x128xbf16>
    %cst_141 = arith.constant dense<0.000000e+00> : vector<8x128xf32>
    %453 = tpu.matmul %451, %452, %cst_141 {dimension_numbers = #tpu.dot_dimension_numbers<[1], [0], [0], [1], [0, 0, 1, 1], [], []>} : vector<8x32xbf16>, vector<32x128xbf16>, vector<8x128xf32> -> vector<8x128xf32>
    %454 = arith.addf %450, %453 : vector<8x128xf32>
    %455 = vector.extract_strided_slice %454 {offsets = [0, 0], sizes = [8, 96], strides = [1, 1]} : vector<8x128xf32> to vector<8x96xf32>
    %456 = arith.negf %455 : vector<8x96xf32>
    %457 = math.exp %456 : vector<8x96xf32>
    %cst_142 = arith.constant 1.000000e+00 : f32
    %458 = vector.broadcast %cst_142 : f32 to vector<8x96xf32>
    %459 = arith.addf %458, %457 : vector<8x96xf32>
    %460 = arith.divf %458, %459 : vector<8x96xf32>
    %461 = vector.extract_strided_slice %454 {offsets = [0, 96], sizes = [8, 32], strides = [1, 1]} : vector<8x128xf32> to vector<8x32xf32>
    %462 = math.tanh %461 : vector<8x32xf32>
    %463 = vector.extract_strided_slice %460 {offsets = [0, 32], sizes = [8, 32], strides = [1, 1]} : vector<8x96xf32> to vector<8x32xf32>
    %464 = arith.mulf %463, %381 : vector<8x32xf32>
    %465 = vector.extract_strided_slice %460 {offsets = [0, 0], sizes = [8, 32], strides = [1, 1]} : vector<8x96xf32> to vector<8x32xf32>
    %466 = arith.mulf %465, %462 : vector<8x32xf32>
    %467 = arith.addf %464, %466 : vector<8x32xf32>
    %468 = vector.extract_strided_slice %460 {offsets = [0, 64], sizes = [8, 32], strides = [1, 1]} : vector<8x96xf32> to vector<8x32xf32>
    %469 = math.tanh %467 : vector<8x32xf32>
    %470 = arith.mulf %468, %469 : vector<8x32xf32>
    %471 = arith.truncf %470 : vector<8x32xf32> to vector<8x32xbf16>
    %c160 = arith.constant 160 : index
    %c0_143 = arith.constant 0 : index
    %472 = vector.load %arg4[%c160, %c0_143] : memref<192x128xbf16, #tpu.memory_space<vmem>>, vector<32x128xbf16>
    %cst_144 = arith.constant dense<0.000000e+00> : vector<8x128xf32>
    %473 = tpu.matmul %471, %472, %cst_144 {dimension_numbers = #tpu.dot_dimension_numbers<[1], [0], [0], [1], [0, 0, 1, 1], [], []>} : vector<8x32xbf16>, vector<32x128xbf16>, vector<8x128xf32> -> vector<8x128xf32>
    %474 = vector.broadcast %2 : vector<1x128xf32> to vector<8x128xf32>
    %475 = arith.addf %473, %474 : vector<8x128xf32>
    %476 = vector.extract_strided_slice %475 {offsets = [0, 0], sizes = [8, 1], strides = [1, 1]} : vector<8x128xf32> to vector<8x1xf32>
    %477 = vector.extract_strided_slice %475 {offsets = [0, 1], sizes = [8, 1], strides = [1, 1]} : vector<8x128xf32> to vector<8x1xf32>
    %cst_145 = arith.constant 0.000000e+00 : f32
    %478 = vector.broadcast %cst_145 : f32 to vector<8x1xf32>
    %479 = arith.maximumf %477, %478 : vector<8x1xf32>
    %480 = vector.broadcast %cst_145 : f32 to vector<8x1xf32>
    %481 = arith.subf %477, %480 : vector<8x1xf32>
    %482 = arith.cmpf one, %481, %481 : vector<8x1xf32>
    %483 = vector.broadcast %cst_145 : f32 to vector<8x1xf32>
    %484 = arith.addf %477, %483 : vector<8x1xf32>
    %485 = math.absf %481 : vector<8x1xf32>
    %cst_146 = arith.constant 0.000000e+00 : f32
    %486 = vector.broadcast %cst_146 : f32 to vector<8x1xf32>
    %487 = arith.subf %486, %485 : vector<8x1xf32>
    %488 = math.exp %487 : vector<8x1xf32>
    %489 = math.log1p %488 : vector<8x1xf32>
    %490 = arith.addf %479, %489 : vector<8x1xf32>
    %491 = arith.select %482, %484, %490 : vector<8x1xi1>, vector<8x1xf32>
    %c0_147 = arith.constant 0 : index
    %c14 = arith.constant 14 : index
    %492 = vector.load %arg3[%c0_147, %c14] : memref<8x18xf32, #tpu.memory_space<vmem>>, vector<8x1xf32>
    %493 = arith.mulf %491, %492 : vector<8x1xf32>
    %494 = arith.addf %476, %493 : vector<8x1xf32>
    %c0_148 = arith.constant 0 : index
    %c13_149 = arith.constant 13 : index
    %495 = vector.load %arg3[%c0_148, %c13_149] : memref<8x18xf32, #tpu.memory_space<vmem>>, vector<8x1xf32>
    %496 = arith.addf %495, %494 : vector<8x1xf32>
    %497 = arith.cmpf ogt, %494, %15 : vector<8x1xf32>
    %cst_150 = arith.constant 1.000000e+00 : f32
    %498 = vector.broadcast %cst_150 : f32 to vector<8x1xf32>
    %499 = arith.addf %386, %498 : vector<8x1xf32>
    %cst_151 = arith.constant 0.000000e+00 : f32
    %500 = vector.broadcast %cst_151 : f32 to vector<8x1xf32>
    %501 = arith.select %497, %500, %499 : vector<8x1xi1>, vector<8x1xf32>
    %c0_152 = arith.constant 0 : index
    %c5_153 = arith.constant 5 : index
    %502 = vector.load %arg3[%c0_152, %c5_153] : memref<8x18xf32, #tpu.memory_space<vmem>>, vector<8x1xf32>
    %c0_154 = arith.constant 0 : index
    %c3 = arith.constant 3 : index
    %503 = vector.load %arg3[%c0_154, %c3] : memref<8x18xf32, #tpu.memory_space<vmem>>, vector<8x1xf32>
    %c0_155 = arith.constant 0 : index
    %c12_156 = arith.constant 12 : index
    %504 = vector.load %arg3[%c0_155, %c12_156] : memref<8x18xf32, #tpu.memory_space<vmem>>, vector<8x1xf32>
    %505 = arith.subf %496, %504 : vector<8x1xf32>
    %cst_157 = arith.constant 5.000000e-01 : f32
    %506 = vector.broadcast %cst_157 : f32 to vector<8x1xf32>
    %507 = arith.mulf %505, %506 : vector<8x1xf32>
    %c0_158 = arith.constant 0 : index
    %c13_159 = arith.constant 13 : index
    %508 = vector.load %arg3[%c0_158, %c13_159] : memref<8x18xf32, #tpu.memory_space<vmem>>, vector<8x1xf32>
    %c0_160 = arith.constant 0 : index
    %c11_161 = arith.constant 11 : index
    %509 = vector.load %arg3[%c0_160, %c11_161] : memref<8x18xf32, #tpu.memory_space<vmem>>, vector<8x1xf32>
    %510 = arith.subf %508, %509 : vector<8x1xf32>
    %cst_162 = arith.constant 5.000000e-01 : f32
    %511 = vector.broadcast %cst_162 : f32 to vector<8x1xf32>
    %512 = arith.mulf %510, %511 : vector<8x1xf32>
    %c0_163 = arith.constant 0 : index
    %c11_164 = arith.constant 11 : index
    %513 = vector.load %arg3[%c0_163, %c11_164] : memref<8x18xf32, #tpu.memory_space<vmem>>, vector<8x1xf32>
    %c0_165 = arith.constant 0 : index
    %c9_166 = arith.constant 9 : index
    %514 = vector.load %arg3[%c0_165, %c9_166] : memref<8x18xf32, #tpu.memory_space<vmem>>, vector<8x1xf32>
    %515 = arith.subf %513, %514 : vector<8x1xf32>
    %cst_167 = arith.constant 5.000000e-01 : f32
    %516 = vector.broadcast %cst_167 : f32 to vector<8x1xf32>
    %517 = arith.mulf %515, %516 : vector<8x1xf32>
    %c0_168 = arith.constant 0 : index
    %c10_169 = arith.constant 10 : index
    %518 = vector.load %arg3[%c0_168, %c10_169] : memref<8x18xf32, #tpu.memory_space<vmem>>, vector<8x1xf32>
    %519 = arith.subf %496, %518 : vector<8x1xf32>
    %cst_170 = arith.constant 2.500000e-01 : f32
    %520 = vector.broadcast %cst_170 : f32 to vector<8x1xf32>
    %521 = arith.mulf %519, %520 : vector<8x1xf32>
    %c0_171 = arith.constant 0 : index
    %c13_172 = arith.constant 13 : index
    %522 = vector.load %arg3[%c0_171, %c13_172] : memref<8x18xf32, #tpu.memory_space<vmem>>, vector<8x1xf32>
    %c0_173 = arith.constant 0 : index
    %c9_174 = arith.constant 9 : index
    %523 = vector.load %arg3[%c0_173, %c9_174] : memref<8x18xf32, #tpu.memory_space<vmem>>, vector<8x1xf32>
    %524 = arith.subf %522, %523 : vector<8x1xf32>
    %cst_175 = arith.constant 2.500000e-01 : f32
    %525 = vector.broadcast %cst_175 : f32 to vector<8x1xf32>
    %526 = arith.mulf %524, %525 : vector<8x1xf32>
    %c0_176 = arith.constant 0 : index
    %c11_177 = arith.constant 11 : index
    %527 = vector.load %arg3[%c0_176, %c11_177] : memref<8x18xf32, #tpu.memory_space<vmem>>, vector<8x1xf32>
    %c0_178 = arith.constant 0 : index
    %c7 = arith.constant 7 : index
    %528 = vector.load %arg3[%c0_178, %c7] : memref<8x18xf32, #tpu.memory_space<vmem>>, vector<8x1xf32>
    %529 = arith.subf %527, %528 : vector<8x1xf32>
    %cst_179 = arith.constant 2.500000e-01 : f32
    %530 = vector.broadcast %cst_179 : f32 to vector<8x1xf32>
    %531 = arith.mulf %529, %530 : vector<8x1xf32>
    %532 = tpu.concatenate %494, %502, %503, %507, %512, %517, %521, %526, %531, %501, %385 in 1 : vector<8x1xf32>, vector<8x1xf32>, vector<8x1xf32>, vector<8x1xf32>, vector<8x1xf32>, vector<8x1xf32>, vector<8x1xf32>, vector<8x1xf32>, vector<8x1xf32>, vector<8x1xf32>, vector<8x6xf32> -> vector<8x16xf32>
    %533 = vector.extract_strided_slice %12 {offsets = [8, 0], sizes = [8, 128], strides = [1, 1]} : vector<32x128xf32> to vector<8x128xf32>
    %534 = arith.truncf %532 : vector<8x16xf32> to vector<8x16xbf16>
    %c144_180 = arith.constant 144 : index
    %c0_181 = arith.constant 0 : index
    %535 = vector.load %arg4[%c144_180, %c0_181] : memref<192x128xbf16, #tpu.memory_space<vmem>>, vector<16x128xbf16>
    %cst_182 = arith.constant dense<0.000000e+00> : vector<8x128xf32>
    %536 = tpu.matmul %534, %535, %cst_182 {dimension_numbers = #tpu.dot_dimension_numbers<[1], [0], [0], [1], [0, 0, 1, 1], [], []>} : vector<8x16xbf16>, vector<16x128xbf16>, vector<8x128xf32> -> vector<8x128xf32>
    %537 = arith.addf %533, %536 : vector<8x128xf32>
    %538 = arith.truncf %445 : vector<8x32xf32> to vector<8x32xbf16>
    %c32_183 = arith.constant 32 : index
    %c0_184 = arith.constant 0 : index
    %539 = vector.load %arg4[%c32_183, %c0_184] : memref<192x128xbf16, #tpu.memory_space<vmem>>, vector<32x128xbf16>
    %cst_185 = arith.constant dense<0.000000e+00> : vector<8x128xf32>
    %540 = tpu.matmul %538, %539, %cst_185 {dimension_numbers = #tpu.dot_dimension_numbers<[1], [0], [0], [1], [0, 0, 1, 1], [], []>} : vector<8x32xbf16>, vector<32x128xbf16>, vector<8x128xf32> -> vector<8x128xf32>
    %541 = arith.addf %537, %540 : vector<8x128xf32>
    %542 = vector.extract_strided_slice %541 {offsets = [0, 0], sizes = [8, 96], strides = [1, 1]} : vector<8x128xf32> to vector<8x96xf32>
    %543 = arith.negf %542 : vector<8x96xf32>
    %544 = math.exp %543 : vector<8x96xf32>
    %cst_186 = arith.constant 1.000000e+00 : f32
    %545 = vector.broadcast %cst_186 : f32 to vector<8x96xf32>
    %546 = arith.addf %545, %544 : vector<8x96xf32>
    %547 = arith.divf %545, %546 : vector<8x96xf32>
    %548 = vector.extract_strided_slice %541 {offsets = [0, 96], sizes = [8, 32], strides = [1, 1]} : vector<8x128xf32> to vector<8x32xf32>
    %549 = math.tanh %548 : vector<8x32xf32>
    %550 = vector.extract_strided_slice %547 {offsets = [0, 32], sizes = [8, 32], strides = [1, 1]} : vector<8x96xf32> to vector<8x32xf32>
    %551 = arith.mulf %550, %442 : vector<8x32xf32>
    %552 = vector.extract_strided_slice %547 {offsets = [0, 0], sizes = [8, 32], strides = [1, 1]} : vector<8x96xf32> to vector<8x32xf32>
    %553 = arith.mulf %552, %549 : vector<8x32xf32>
    %554 = arith.addf %551, %553 : vector<8x32xf32>
    %555 = vector.extract_strided_slice %547 {offsets = [0, 64], sizes = [8, 32], strides = [1, 1]} : vector<8x96xf32> to vector<8x32xf32>
    %556 = math.tanh %554 : vector<8x32xf32>
    %557 = arith.mulf %555, %556 : vector<8x32xf32>
    %558 = arith.truncf %557 : vector<8x32xf32> to vector<8x32xbf16>
    %c64_187 = arith.constant 64 : index
    %c0_188 = arith.constant 0 : index
    %559 = vector.load %arg4[%c64_187, %c0_188] : memref<192x128xbf16, #tpu.memory_space<vmem>>, vector<32x128xbf16>
    %cst_189 = arith.constant dense<0.000000e+00> : vector<8x128xf32>
    %560 = tpu.matmul %558, %559, %cst_189 {dimension_numbers = #tpu.dot_dimension_numbers<[1], [0], [0], [1], [0, 0, 1, 1], [], []>} : vector<8x32xbf16>, vector<32x128xbf16>, vector<8x128xf32> -> vector<8x128xf32>
    %561 = vector.broadcast %1 : vector<1x128xf32> to vector<8x128xf32>
    %562 = arith.addf %561, %560 : vector<8x128xf32>
    %563 = arith.truncf %470 : vector<8x32xf32> to vector<8x32xbf16>
    %c96_190 = arith.constant 96 : index
    %c0_191 = arith.constant 0 : index
    %564 = vector.load %arg4[%c96_190, %c0_191] : memref<192x128xbf16, #tpu.memory_space<vmem>>, vector<32x128xbf16>
    %cst_192 = arith.constant dense<0.000000e+00> : vector<8x128xf32>
    %565 = tpu.matmul %563, %564, %cst_192 {dimension_numbers = #tpu.dot_dimension_numbers<[1], [0], [0], [1], [0, 0, 1, 1], [], []>} : vector<8x32xbf16>, vector<32x128xbf16>, vector<8x128xf32> -> vector<8x128xf32>
    %566 = arith.addf %562, %565 : vector<8x128xf32>
    %567 = vector.extract_strided_slice %566 {offsets = [0, 0], sizes = [8, 96], strides = [1, 1]} : vector<8x128xf32> to vector<8x96xf32>
    %568 = arith.negf %567 : vector<8x96xf32>
    %569 = math.exp %568 : vector<8x96xf32>
    %cst_193 = arith.constant 1.000000e+00 : f32
    %570 = vector.broadcast %cst_193 : f32 to vector<8x96xf32>
    %571 = arith.addf %570, %569 : vector<8x96xf32>
    %572 = arith.divf %570, %571 : vector<8x96xf32>
    %573 = vector.extract_strided_slice %566 {offsets = [0, 96], sizes = [8, 32], strides = [1, 1]} : vector<8x128xf32> to vector<8x32xf32>
    %574 = math.tanh %573 : vector<8x32xf32>
    %575 = vector.extract_strided_slice %572 {offsets = [0, 32], sizes = [8, 32], strides = [1, 1]} : vector<8x96xf32> to vector<8x32xf32>
    %576 = arith.mulf %575, %467 : vector<8x32xf32>
    %577 = vector.extract_strided_slice %572 {offsets = [0, 0], sizes = [8, 32], strides = [1, 1]} : vector<8x96xf32> to vector<8x32xf32>
    %578 = arith.mulf %577, %574 : vector<8x32xf32>
    %579 = arith.addf %576, %578 : vector<8x32xf32>
    %580 = vector.extract_strided_slice %572 {offsets = [0, 64], sizes = [8, 32], strides = [1, 1]} : vector<8x96xf32> to vector<8x32xf32>
    %581 = math.tanh %579 : vector<8x32xf32>
    %582 = arith.mulf %580, %581 : vector<8x32xf32>
    %583 = arith.truncf %582 : vector<8x32xf32> to vector<8x32xbf16>
    %c160_194 = arith.constant 160 : index
    %c0_195 = arith.constant 0 : index
    %584 = vector.load %arg4[%c160_194, %c0_195] : memref<192x128xbf16, #tpu.memory_space<vmem>>, vector<32x128xbf16>
    %cst_196 = arith.constant dense<0.000000e+00> : vector<8x128xf32>
    %585 = tpu.matmul %583, %584, %cst_196 {dimension_numbers = #tpu.dot_dimension_numbers<[1], [0], [0], [1], [0, 0, 1, 1], [], []>} : vector<8x32xbf16>, vector<32x128xbf16>, vector<8x128xf32> -> vector<8x128xf32>
    %586 = vector.broadcast %2 : vector<1x128xf32> to vector<8x128xf32>
    %587 = arith.addf %585, %586 : vector<8x128xf32>
    %588 = vector.extract_strided_slice %587 {offsets = [0, 0], sizes = [8, 1], strides = [1, 1]} : vector<8x128xf32> to vector<8x1xf32>
    %589 = vector.extract_strided_slice %587 {offsets = [0, 1], sizes = [8, 1], strides = [1, 1]} : vector<8x128xf32> to vector<8x1xf32>
    %cst_197 = arith.constant 0.000000e+00 : f32
    %590 = vector.broadcast %cst_197 : f32 to vector<8x1xf32>
    %591 = arith.maximumf %589, %590 : vector<8x1xf32>
    %592 = vector.broadcast %cst_197 : f32 to vector<8x1xf32>
    %593 = arith.subf %589, %592 : vector<8x1xf32>
    %594 = arith.cmpf one, %593, %593 : vector<8x1xf32>
    %595 = vector.broadcast %cst_197 : f32 to vector<8x1xf32>
    %596 = arith.addf %589, %595 : vector<8x1xf32>
    %597 = math.absf %593 : vector<8x1xf32>
    %cst_198 = arith.constant 0.000000e+00 : f32
    %598 = vector.broadcast %cst_198 : f32 to vector<8x1xf32>
    %599 = arith.subf %598, %597 : vector<8x1xf32>
    %600 = math.exp %599 : vector<8x1xf32>
    %601 = math.log1p %600 : vector<8x1xf32>
    %602 = arith.addf %591, %601 : vector<8x1xf32>
    %603 = arith.select %594, %596, %602 : vector<8x1xi1>, vector<8x1xf32>
    %c0_199 = arith.constant 0 : index
    %c15 = arith.constant 15 : index
    %604 = vector.load %arg3[%c0_199, %c15] : memref<8x18xf32, #tpu.memory_space<vmem>>, vector<8x1xf32>
    %605 = arith.mulf %603, %604 : vector<8x1xf32>
    %606 = arith.addf %588, %605 : vector<8x1xf32>
    %607 = arith.addf %496, %606 : vector<8x1xf32>
    %608 = arith.cmpf ogt, %606, %15 : vector<8x1xf32>
    %cst_200 = arith.constant 1.000000e+00 : f32
    %609 = vector.broadcast %cst_200 : f32 to vector<8x1xf32>
    %610 = arith.addf %501, %609 : vector<8x1xf32>
    %cst_201 = arith.constant 0.000000e+00 : f32
    %611 = vector.broadcast %cst_201 : f32 to vector<8x1xf32>
    %612 = arith.select %608, %611, %610 : vector<8x1xi1>, vector<8x1xf32>
    %c0_202 = arith.constant 0 : index
    %c4_203 = arith.constant 4 : index
    %613 = vector.load %arg3[%c0_202, %c4_203] : memref<8x18xf32, #tpu.memory_space<vmem>>, vector<8x1xf32>
    %c0_204 = arith.constant 0 : index
    %c13_205 = arith.constant 13 : index
    %614 = vector.load %arg3[%c0_204, %c13_205] : memref<8x18xf32, #tpu.memory_space<vmem>>, vector<8x1xf32>
    %615 = arith.subf %607, %614 : vector<8x1xf32>
    %cst_206 = arith.constant 5.000000e-01 : f32
    %616 = vector.broadcast %cst_206 : f32 to vector<8x1xf32>
    %617 = arith.mulf %615, %616 : vector<8x1xf32>
    %c0_207 = arith.constant 0 : index
    %c12_208 = arith.constant 12 : index
    %618 = vector.load %arg3[%c0_207, %c12_208] : memref<8x18xf32, #tpu.memory_space<vmem>>, vector<8x1xf32>
    %619 = arith.subf %496, %618 : vector<8x1xf32>
    %cst_209 = arith.constant 5.000000e-01 : f32
    %620 = vector.broadcast %cst_209 : f32 to vector<8x1xf32>
    %621 = arith.mulf %619, %620 : vector<8x1xf32>
    %c0_210 = arith.constant 0 : index
    %c12_211 = arith.constant 12 : index
    %622 = vector.load %arg3[%c0_210, %c12_211] : memref<8x18xf32, #tpu.memory_space<vmem>>, vector<8x1xf32>
    %c0_212 = arith.constant 0 : index
    %c10_213 = arith.constant 10 : index
    %623 = vector.load %arg3[%c0_212, %c10_213] : memref<8x18xf32, #tpu.memory_space<vmem>>, vector<8x1xf32>
    %624 = arith.subf %622, %623 : vector<8x1xf32>
    %cst_214 = arith.constant 5.000000e-01 : f32
    %625 = vector.broadcast %cst_214 : f32 to vector<8x1xf32>
    %626 = arith.mulf %624, %625 : vector<8x1xf32>
    %c0_215 = arith.constant 0 : index
    %c11_216 = arith.constant 11 : index
    %627 = vector.load %arg3[%c0_215, %c11_216] : memref<8x18xf32, #tpu.memory_space<vmem>>, vector<8x1xf32>
    %628 = arith.subf %607, %627 : vector<8x1xf32>
    %cst_217 = arith.constant 2.500000e-01 : f32
    %629 = vector.broadcast %cst_217 : f32 to vector<8x1xf32>
    %630 = arith.mulf %628, %629 : vector<8x1xf32>
    %c0_218 = arith.constant 0 : index
    %c10_219 = arith.constant 10 : index
    %631 = vector.load %arg3[%c0_218, %c10_219] : memref<8x18xf32, #tpu.memory_space<vmem>>, vector<8x1xf32>
    %632 = arith.subf %496, %631 : vector<8x1xf32>
    %cst_220 = arith.constant 2.500000e-01 : f32
    %633 = vector.broadcast %cst_220 : f32 to vector<8x1xf32>
    %634 = arith.mulf %632, %633 : vector<8x1xf32>
    %c0_221 = arith.constant 0 : index
    %c12_222 = arith.constant 12 : index
    %635 = vector.load %arg3[%c0_221, %c12_222] : memref<8x18xf32, #tpu.memory_space<vmem>>, vector<8x1xf32>
    %c0_223 = arith.constant 0 : index
    %c8_224 = arith.constant 8 : index
    %636 = vector.load %arg3[%c0_223, %c8_224] : memref<8x18xf32, #tpu.memory_space<vmem>>, vector<8x1xf32>
    %637 = arith.subf %635, %636 : vector<8x1xf32>
    %cst_225 = arith.constant 2.500000e-01 : f32
    %638 = vector.broadcast %cst_225 : f32 to vector<8x1xf32>
    %639 = arith.mulf %637, %638 : vector<8x1xf32>
    %640 = tpu.concatenate %606, %494, %613, %617, %621, %626, %630, %634, %639, %612, %385 in 1 : vector<8x1xf32>, vector<8x1xf32>, vector<8x1xf32>, vector<8x1xf32>, vector<8x1xf32>, vector<8x1xf32>, vector<8x1xf32>, vector<8x1xf32>, vector<8x1xf32>, vector<8x1xf32>, vector<8x6xf32> -> vector<8x16xf32>
    %641 = vector.extract_strided_slice %12 {offsets = [16, 0], sizes = [8, 128], strides = [1, 1]} : vector<32x128xf32> to vector<8x128xf32>
    %642 = arith.truncf %640 : vector<8x16xf32> to vector<8x16xbf16>
    %c144_226 = arith.constant 144 : index
    %c0_227 = arith.constant 0 : index
    %643 = vector.load %arg4[%c144_226, %c0_227] : memref<192x128xbf16, #tpu.memory_space<vmem>>, vector<16x128xbf16>
    %cst_228 = arith.constant dense<0.000000e+00> : vector<8x128xf32>
    %644 = tpu.matmul %642, %643, %cst_228 {dimension_numbers = #tpu.dot_dimension_numbers<[1], [0], [0], [1], [0, 0, 1, 1], [], []>} : vector<8x16xbf16>, vector<16x128xbf16>, vector<8x128xf32> -> vector<8x128xf32>
    %645 = arith.addf %641, %644 : vector<8x128xf32>
    %646 = arith.truncf %557 : vector<8x32xf32> to vector<8x32xbf16>
    %c32_229 = arith.constant 32 : index
    %c0_230 = arith.constant 0 : index
    %647 = vector.load %arg4[%c32_229, %c0_230] : memref<192x128xbf16, #tpu.memory_space<vmem>>, vector<32x128xbf16>
    %cst_231 = arith.constant dense<0.000000e+00> : vector<8x128xf32>
    %648 = tpu.matmul %646, %647, %cst_231 {dimension_numbers = #tpu.dot_dimension_numbers<[1], [0], [0], [1], [0, 0, 1, 1], [], []>} : vector<8x32xbf16>, vector<32x128xbf16>, vector<8x128xf32> -> vector<8x128xf32>
    %649 = arith.addf %645, %648 : vector<8x128xf32>
    %650 = vector.extract_strided_slice %649 {offsets = [0, 0], sizes = [8, 96], strides = [1, 1]} : vector<8x128xf32> to vector<8x96xf32>
    %651 = arith.negf %650 : vector<8x96xf32>
    %652 = math.exp %651 : vector<8x96xf32>
    %cst_232 = arith.constant 1.000000e+00 : f32
    %653 = vector.broadcast %cst_232 : f32 to vector<8x96xf32>
    %654 = arith.addf %653, %652 : vector<8x96xf32>
    %655 = arith.divf %653, %654 : vector<8x96xf32>
    %656 = vector.extract_strided_slice %649 {offsets = [0, 96], sizes = [8, 32], strides = [1, 1]} : vector<8x128xf32> to vector<8x32xf32>
    %657 = math.tanh %656 : vector<8x32xf32>
    %658 = vector.extract_strided_slice %655 {offsets = [0, 32], sizes = [8, 32], strides = [1, 1]} : vector<8x96xf32> to vector<8x32xf32>
    %659 = arith.mulf %658, %554 : vector<8x32xf32>
    %660 = vector.extract_strided_slice %655 {offsets = [0, 0], sizes = [8, 32], strides = [1, 1]} : vector<8x96xf32> to vector<8x32xf32>
    %661 = arith.mulf %660, %657 : vector<8x32xf32>
    %662 = arith.addf %659, %661 : vector<8x32xf32>
    %663 = vector.extract_strided_slice %655 {offsets = [0, 64], sizes = [8, 32], strides = [1, 1]} : vector<8x96xf32> to vector<8x32xf32>
    %664 = math.tanh %662 : vector<8x32xf32>
    %665 = arith.mulf %663, %664 : vector<8x32xf32>
    %666 = arith.truncf %665 : vector<8x32xf32> to vector<8x32xbf16>
    %c64_233 = arith.constant 64 : index
    %c0_234 = arith.constant 0 : index
    %667 = vector.load %arg4[%c64_233, %c0_234] : memref<192x128xbf16, #tpu.memory_space<vmem>>, vector<32x128xbf16>
    %cst_235 = arith.constant dense<0.000000e+00> : vector<8x128xf32>
    %668 = tpu.matmul %666, %667, %cst_235 {dimension_numbers = #tpu.dot_dimension_numbers<[1], [0], [0], [1], [0, 0, 1, 1], [], []>} : vector<8x32xbf16>, vector<32x128xbf16>, vector<8x128xf32> -> vector<8x128xf32>
    %669 = vector.broadcast %1 : vector<1x128xf32> to vector<8x128xf32>
    %670 = arith.addf %669, %668 : vector<8x128xf32>
    %671 = arith.truncf %582 : vector<8x32xf32> to vector<8x32xbf16>
    %c96_236 = arith.constant 96 : index
    %c0_237 = arith.constant 0 : index
    %672 = vector.load %arg4[%c96_236, %c0_237] : memref<192x128xbf16, #tpu.memory_space<vmem>>, vector<32x128xbf16>
    %cst_238 = arith.constant dense<0.000000e+00> : vector<8x128xf32>
    %673 = tpu.matmul %671, %672, %cst_238 {dimension_numbers = #tpu.dot_dimension_numbers<[1], [0], [0], [1], [0, 0, 1, 1], [], []>} : vector<8x32xbf16>, vector<32x128xbf16>, vector<8x128xf32> -> vector<8x128xf32>
    %674 = arith.addf %670, %673 : vector<8x128xf32>
    %675 = vector.extract_strided_slice %674 {offsets = [0, 0], sizes = [8, 96], strides = [1, 1]} : vector<8x128xf32> to vector<8x96xf32>
    %676 = arith.negf %675 : vector<8x96xf32>
    %677 = math.exp %676 : vector<8x96xf32>
    %cst_239 = arith.constant 1.000000e+00 : f32
    %678 = vector.broadcast %cst_239 : f32 to vector<8x96xf32>
    %679 = arith.addf %678, %677 : vector<8x96xf32>
    %680 = arith.divf %678, %679 : vector<8x96xf32>
    %681 = vector.extract_strided_slice %674 {offsets = [0, 96], sizes = [8, 32], strides = [1, 1]} : vector<8x128xf32> to vector<8x32xf32>
    %682 = math.tanh %681 : vector<8x32xf32>
    %683 = vector.extract_strided_slice %680 {offsets = [0, 32], sizes = [8, 32], strides = [1, 1]} : vector<8x96xf32> to vector<8x32xf32>
    %684 = arith.mulf %683, %579 : vector<8x32xf32>
    %685 = vector.extract_strided_slice %680 {offsets = [0, 0], sizes = [8, 32], strides = [1, 1]} : vector<8x96xf32> to vector<8x32xf32>
    %686 = arith.mulf %685, %682 : vector<8x32xf32>
    %687 = arith.addf %684, %686 : vector<8x32xf32>
    %688 = vector.extract_strided_slice %680 {offsets = [0, 64], sizes = [8, 32], strides = [1, 1]} : vector<8x96xf32> to vector<8x32xf32>
    %689 = math.tanh %687 : vector<8x32xf32>
    %690 = arith.mulf %688, %689 : vector<8x32xf32>
    %691 = arith.truncf %690 : vector<8x32xf32> to vector<8x32xbf16>
    %c160_240 = arith.constant 160 : index
    %c0_241 = arith.constant 0 : index
    %692 = vector.load %arg4[%c160_240, %c0_241] : memref<192x128xbf16, #tpu.memory_space<vmem>>, vector<32x128xbf16>
    %cst_242 = arith.constant dense<0.000000e+00> : vector<8x128xf32>
    %693 = tpu.matmul %691, %692, %cst_242 {dimension_numbers = #tpu.dot_dimension_numbers<[1], [0], [0], [1], [0, 0, 1, 1], [], []>} : vector<8x32xbf16>, vector<32x128xbf16>, vector<8x128xf32> -> vector<8x128xf32>
    %694 = vector.broadcast %2 : vector<1x128xf32> to vector<8x128xf32>
    %695 = arith.addf %693, %694 : vector<8x128xf32>
    %696 = vector.extract_strided_slice %695 {offsets = [0, 0], sizes = [8, 1], strides = [1, 1]} : vector<8x128xf32> to vector<8x1xf32>
    %697 = vector.extract_strided_slice %695 {offsets = [0, 1], sizes = [8, 1], strides = [1, 1]} : vector<8x128xf32> to vector<8x1xf32>
    %cst_243 = arith.constant 0.000000e+00 : f32
    %698 = vector.broadcast %cst_243 : f32 to vector<8x1xf32>
    %699 = arith.maximumf %697, %698 : vector<8x1xf32>
    %700 = vector.broadcast %cst_243 : f32 to vector<8x1xf32>
    %701 = arith.subf %697, %700 : vector<8x1xf32>
    %702 = arith.cmpf one, %701, %701 : vector<8x1xf32>
    %703 = vector.broadcast %cst_243 : f32 to vector<8x1xf32>
    %704 = arith.addf %697, %703 : vector<8x1xf32>
    %705 = math.absf %701 : vector<8x1xf32>
    %cst_244 = arith.constant 0.000000e+00 : f32
    %706 = vector.broadcast %cst_244 : f32 to vector<8x1xf32>
    %707 = arith.subf %706, %705 : vector<8x1xf32>
    %708 = math.exp %707 : vector<8x1xf32>
    %709 = math.log1p %708 : vector<8x1xf32>
    %710 = arith.addf %699, %709 : vector<8x1xf32>
    %711 = arith.select %702, %704, %710 : vector<8x1xi1>, vector<8x1xf32>
    %c0_245 = arith.constant 0 : index
    %c16 = arith.constant 16 : index
    %712 = vector.load %arg3[%c0_245, %c16] : memref<8x18xf32, #tpu.memory_space<vmem>>, vector<8x1xf32>
    %713 = arith.mulf %711, %712 : vector<8x1xf32>
    %714 = arith.addf %696, %713 : vector<8x1xf32>
    %715 = arith.addf %607, %714 : vector<8x1xf32>
    %716 = arith.cmpf ogt, %714, %15 : vector<8x1xf32>
    %cst_246 = arith.constant 1.000000e+00 : f32
    %717 = vector.broadcast %cst_246 : f32 to vector<8x1xf32>
    %718 = arith.addf %612, %717 : vector<8x1xf32>
    %cst_247 = arith.constant 0.000000e+00 : f32
    %719 = vector.broadcast %cst_247 : f32 to vector<8x1xf32>
    %720 = arith.select %716, %719, %718 : vector<8x1xi1>, vector<8x1xf32>
    %c0_248 = arith.constant 0 : index
    %c5_249 = arith.constant 5 : index
    %721 = vector.load %arg3[%c0_248, %c5_249] : memref<8x18xf32, #tpu.memory_space<vmem>>, vector<8x1xf32>
    %722 = arith.subf %715, %496 : vector<8x1xf32>
    %cst_250 = arith.constant 5.000000e-01 : f32
    %723 = vector.broadcast %cst_250 : f32 to vector<8x1xf32>
    %724 = arith.mulf %722, %723 : vector<8x1xf32>
    %c0_251 = arith.constant 0 : index
    %c13_252 = arith.constant 13 : index
    %725 = vector.load %arg3[%c0_251, %c13_252] : memref<8x18xf32, #tpu.memory_space<vmem>>, vector<8x1xf32>
    %726 = arith.subf %607, %725 : vector<8x1xf32>
    %cst_253 = arith.constant 5.000000e-01 : f32
    %727 = vector.broadcast %cst_253 : f32 to vector<8x1xf32>
    %728 = arith.mulf %726, %727 : vector<8x1xf32>
    %c0_254 = arith.constant 0 : index
    %c13_255 = arith.constant 13 : index
    %729 = vector.load %arg3[%c0_254, %c13_255] : memref<8x18xf32, #tpu.memory_space<vmem>>, vector<8x1xf32>
    %c0_256 = arith.constant 0 : index
    %c11_257 = arith.constant 11 : index
    %730 = vector.load %arg3[%c0_256, %c11_257] : memref<8x18xf32, #tpu.memory_space<vmem>>, vector<8x1xf32>
    %731 = arith.subf %729, %730 : vector<8x1xf32>
    %cst_258 = arith.constant 5.000000e-01 : f32
    %732 = vector.broadcast %cst_258 : f32 to vector<8x1xf32>
    %733 = arith.mulf %731, %732 : vector<8x1xf32>
    %c0_259 = arith.constant 0 : index
    %c12_260 = arith.constant 12 : index
    %734 = vector.load %arg3[%c0_259, %c12_260] : memref<8x18xf32, #tpu.memory_space<vmem>>, vector<8x1xf32>
    %735 = arith.subf %715, %734 : vector<8x1xf32>
    %cst_261 = arith.constant 2.500000e-01 : f32
    %736 = vector.broadcast %cst_261 : f32 to vector<8x1xf32>
    %737 = arith.mulf %735, %736 : vector<8x1xf32>
    %c0_262 = arith.constant 0 : index
    %c11_263 = arith.constant 11 : index
    %738 = vector.load %arg3[%c0_262, %c11_263] : memref<8x18xf32, #tpu.memory_space<vmem>>, vector<8x1xf32>
    %739 = arith.subf %607, %738 : vector<8x1xf32>
    %cst_264 = arith.constant 2.500000e-01 : f32
    %740 = vector.broadcast %cst_264 : f32 to vector<8x1xf32>
    %741 = arith.mulf %739, %740 : vector<8x1xf32>
    %c0_265 = arith.constant 0 : index
    %c13_266 = arith.constant 13 : index
    %742 = vector.load %arg3[%c0_265, %c13_266] : memref<8x18xf32, #tpu.memory_space<vmem>>, vector<8x1xf32>
    %c0_267 = arith.constant 0 : index
    %c9_268 = arith.constant 9 : index
    %743 = vector.load %arg3[%c0_267, %c9_268] : memref<8x18xf32, #tpu.memory_space<vmem>>, vector<8x1xf32>
    %744 = arith.subf %742, %743 : vector<8x1xf32>
    %cst_269 = arith.constant 2.500000e-01 : f32
    %745 = vector.broadcast %cst_269 : f32 to vector<8x1xf32>
    %746 = arith.mulf %744, %745 : vector<8x1xf32>
    %747 = tpu.concatenate %714, %606, %721, %724, %728, %733, %737, %741, %746, %720, %385 in 1 : vector<8x1xf32>, vector<8x1xf32>, vector<8x1xf32>, vector<8x1xf32>, vector<8x1xf32>, vector<8x1xf32>, vector<8x1xf32>, vector<8x1xf32>, vector<8x1xf32>, vector<8x1xf32>, vector<8x6xf32> -> vector<8x16xf32>
    %748 = vector.extract_strided_slice %12 {offsets = [24, 0], sizes = [8, 128], strides = [1, 1]} : vector<32x128xf32> to vector<8x128xf32>
    %749 = arith.truncf %747 : vector<8x16xf32> to vector<8x16xbf16>
    %c144_270 = arith.constant 144 : index
    %c0_271 = arith.constant 0 : index
    %750 = vector.load %arg4[%c144_270, %c0_271] : memref<192x128xbf16, #tpu.memory_space<vmem>>, vector<16x128xbf16>
    %cst_272 = arith.constant dense<0.000000e+00> : vector<8x128xf32>
    %751 = tpu.matmul %749, %750, %cst_272 {dimension_numbers = #tpu.dot_dimension_numbers<[1], [0], [0], [1], [0, 0, 1, 1], [], []>} : vector<8x16xbf16>, vector<16x128xbf16>, vector<8x128xf32> -> vector<8x128xf32>
    %752 = arith.addf %748, %751 : vector<8x128xf32>
    %753 = arith.truncf %665 : vector<8x32xf32> to vector<8x32xbf16>
    %c32_273 = arith.constant 32 : index
    %c0_274 = arith.constant 0 : index
    %754 = vector.load %arg4[%c32_273, %c0_274] : memref<192x128xbf16, #tpu.memory_space<vmem>>, vector<32x128xbf16>
    %cst_275 = arith.constant dense<0.000000e+00> : vector<8x128xf32>
    %755 = tpu.matmul %753, %754, %cst_275 {dimension_numbers = #tpu.dot_dimension_numbers<[1], [0], [0], [1], [0, 0, 1, 1], [], []>} : vector<8x32xbf16>, vector<32x128xbf16>, vector<8x128xf32> -> vector<8x128xf32>
    %756 = arith.addf %752, %755 : vector<8x128xf32>
    %757 = vector.extract_strided_slice %756 {offsets = [0, 0], sizes = [8, 96], strides = [1, 1]} : vector<8x128xf32> to vector<8x96xf32>
    %758 = arith.negf %757 : vector<8x96xf32>
    %759 = math.exp %758 : vector<8x96xf32>
    %cst_276 = arith.constant 1.000000e+00 : f32
    %760 = vector.broadcast %cst_276 : f32 to vector<8x96xf32>
    %761 = arith.addf %760, %759 : vector<8x96xf32>
    %762 = arith.divf %760, %761 : vector<8x96xf32>
    %763 = vector.extract_strided_slice %756 {offsets = [0, 96], sizes = [8, 32], strides = [1, 1]} : vector<8x128xf32> to vector<8x32xf32>
    %764 = math.tanh %763 : vector<8x32xf32>
    %765 = vector.extract_strided_slice %762 {offsets = [0, 32], sizes = [8, 32], strides = [1, 1]} : vector<8x96xf32> to vector<8x32xf32>
    %766 = arith.mulf %765, %662 : vector<8x32xf32>
    %767 = vector.extract_strided_slice %762 {offsets = [0, 0], sizes = [8, 32], strides = [1, 1]} : vector<8x96xf32> to vector<8x32xf32>
    %768 = arith.mulf %767, %764 : vector<8x32xf32>
    %769 = arith.addf %766, %768 : vector<8x32xf32>
    %770 = vector.extract_strided_slice %762 {offsets = [0, 64], sizes = [8, 32], strides = [1, 1]} : vector<8x96xf32> to vector<8x32xf32>
    %771 = math.tanh %769 : vector<8x32xf32>
    %772 = arith.mulf %770, %771 : vector<8x32xf32>
    %773 = arith.truncf %772 : vector<8x32xf32> to vector<8x32xbf16>
    %c64_277 = arith.constant 64 : index
    %c0_278 = arith.constant 0 : index
    %774 = vector.load %arg4[%c64_277, %c0_278] : memref<192x128xbf16, #tpu.memory_space<vmem>>, vector<32x128xbf16>
    %cst_279 = arith.constant dense<0.000000e+00> : vector<8x128xf32>
    %775 = tpu.matmul %773, %774, %cst_279 {dimension_numbers = #tpu.dot_dimension_numbers<[1], [0], [0], [1], [0, 0, 1, 1], [], []>} : vector<8x32xbf16>, vector<32x128xbf16>, vector<8x128xf32> -> vector<8x128xf32>
    %776 = vector.broadcast %1 : vector<1x128xf32> to vector<8x128xf32>
    %777 = arith.addf %776, %775 : vector<8x128xf32>
    %778 = arith.truncf %690 : vector<8x32xf32> to vector<8x32xbf16>
    %c96_280 = arith.constant 96 : index
    %c0_281 = arith.constant 0 : index
    %779 = vector.load %arg4[%c96_280, %c0_281] : memref<192x128xbf16, #tpu.memory_space<vmem>>, vector<32x128xbf16>
    %cst_282 = arith.constant dense<0.000000e+00> : vector<8x128xf32>
    %780 = tpu.matmul %778, %779, %cst_282 {dimension_numbers = #tpu.dot_dimension_numbers<[1], [0], [0], [1], [0, 0, 1, 1], [], []>} : vector<8x32xbf16>, vector<32x128xbf16>, vector<8x128xf32> -> vector<8x128xf32>
    %781 = arith.addf %777, %780 : vector<8x128xf32>
    %782 = vector.extract_strided_slice %781 {offsets = [0, 0], sizes = [8, 96], strides = [1, 1]} : vector<8x128xf32> to vector<8x96xf32>
    %783 = arith.negf %782 : vector<8x96xf32>
    %784 = math.exp %783 : vector<8x96xf32>
    %cst_283 = arith.constant 1.000000e+00 : f32
    %785 = vector.broadcast %cst_283 : f32 to vector<8x96xf32>
    %786 = arith.addf %785, %784 : vector<8x96xf32>
    %787 = arith.divf %785, %786 : vector<8x96xf32>
    %788 = vector.extract_strided_slice %781 {offsets = [0, 96], sizes = [8, 32], strides = [1, 1]} : vector<8x128xf32> to vector<8x32xf32>
    %789 = math.tanh %788 : vector<8x32xf32>
    %790 = vector.extract_strided_slice %787 {offsets = [0, 32], sizes = [8, 32], strides = [1, 1]} : vector<8x96xf32> to vector<8x32xf32>
    %791 = arith.mulf %790, %687 : vector<8x32xf32>
    %792 = vector.extract_strided_slice %787 {offsets = [0, 0], sizes = [8, 32], strides = [1, 1]} : vector<8x96xf32> to vector<8x32xf32>
    %793 = arith.mulf %792, %789 : vector<8x32xf32>
    %794 = arith.addf %791, %793 : vector<8x32xf32>
    %795 = vector.extract_strided_slice %787 {offsets = [0, 64], sizes = [8, 32], strides = [1, 1]} : vector<8x96xf32> to vector<8x32xf32>
    %796 = math.tanh %794 : vector<8x32xf32>
    %797 = arith.mulf %795, %796 : vector<8x32xf32>
    %798 = arith.truncf %797 : vector<8x32xf32> to vector<8x32xbf16>
    %c160_284 = arith.constant 160 : index
    %c0_285 = arith.constant 0 : index
    %799 = vector.load %arg4[%c160_284, %c0_285] : memref<192x128xbf16, #tpu.memory_space<vmem>>, vector<32x128xbf16>
    %cst_286 = arith.constant dense<0.000000e+00> : vector<8x128xf32>
    %800 = tpu.matmul %798, %799, %cst_286 {dimension_numbers = #tpu.dot_dimension_numbers<[1], [0], [0], [1], [0, 0, 1, 1], [], []>} : vector<8x32xbf16>, vector<32x128xbf16>, vector<8x128xf32> -> vector<8x128xf32>
    %801 = vector.broadcast %2 : vector<1x128xf32> to vector<8x128xf32>
    %802 = arith.addf %800, %801 : vector<8x128xf32>
    %803 = vector.extract_strided_slice %802 {offsets = [0, 0], sizes = [8, 1], strides = [1, 1]} : vector<8x128xf32> to vector<8x1xf32>
    %804 = vector.extract_strided_slice %802 {offsets = [0, 1], sizes = [8, 1], strides = [1, 1]} : vector<8x128xf32> to vector<8x1xf32>
    %cst_287 = arith.constant 0.000000e+00 : f32
    %805 = vector.broadcast %cst_287 : f32 to vector<8x1xf32>
    %806 = arith.maximumf %804, %805 : vector<8x1xf32>
    %807 = vector.broadcast %cst_287 : f32 to vector<8x1xf32>
    %808 = arith.subf %804, %807 : vector<8x1xf32>
    %809 = arith.cmpf one, %808, %808 : vector<8x1xf32>
    %810 = vector.broadcast %cst_287 : f32 to vector<8x1xf32>
    %811 = arith.addf %804, %810 : vector<8x1xf32>
    %812 = math.absf %808 : vector<8x1xf32>
    %cst_288 = arith.constant 0.000000e+00 : f32
    %813 = vector.broadcast %cst_288 : f32 to vector<8x1xf32>
    %814 = arith.subf %813, %812 : vector<8x1xf32>
    %815 = math.exp %814 : vector<8x1xf32>
    %816 = math.log1p %815 : vector<8x1xf32>
    %817 = arith.addf %806, %816 : vector<8x1xf32>
    %818 = arith.select %809, %811, %817 : vector<8x1xi1>, vector<8x1xf32>
    %c0_289 = arith.constant 0 : index
    %c17 = arith.constant 17 : index
    %819 = vector.load %arg3[%c0_289, %c17] : memref<8x18xf32, #tpu.memory_space<vmem>>, vector<8x1xf32>
    %820 = arith.mulf %818, %819 : vector<8x1xf32>
    %821 = arith.addf %803, %820 : vector<8x1xf32>
    %822 = tpu.concatenate %494, %606, %714, %821 in 1 : vector<8x1xf32>, vector<8x1xf32>, vector<8x1xf32>, vector<8x1xf32> -> vector<8x4xf32>
    %823 = vector.broadcast %13 : vector<8x1xf32> to vector<8x4xf32>
    %824 = arith.mulf %822, %823 : vector<8x4xf32>
    %c0_290 = arith.constant 0 : index
    %c0_291 = arith.constant 0 : index
    %825 = vector.load %arg6[%c0_290, %c0_291] : memref<8x4xf32, #tpu.memory_space<vmem>>, vector<8x4xf32>
    tpu.vector_store %arg6[%c0_290, %c0_291], %824 {strides = array<i32>} : memref<8x4xf32, #tpu.memory_space<vmem>>, vector<8x4xf32>,
    return
  }
  func.func @transform_0(%arg0: i32) -> (i32, i32) {
    %c0_i32 = arith.constant 0 : i32
    %c0_i32_0 = arith.constant 0 : i32
    %c0_i32_1 = arith.constant 0 : i32
    return %c0_i32, %c0_i32_0 : i32, i32
  }
  func.func @transform_1(%arg0: i32) -> (i32, i32) {
    %c0_i32 = arith.constant 0 : i32
    %c0_i32_0 = arith.constant 0 : i32
    %c0_i32_1 = arith.constant 0 : i32
    return %c0_i32, %c0_i32_0 : i32, i32
  }
  func.func @transform_2(%arg0: i32) -> (i32, i32) {
    %c0_i32 = arith.constant 0 : i32
    %c0_i32_0 = arith.constant 0 : i32
    %c0_i32_1 = arith.constant 0 : i32
    return %c0_i32, %c0_i32_0 : i32, i32
  }
  func.func @transform_3(%arg0: i32) -> (i32, i32) {
    %c0_i32 = arith.constant 0 : i32
    %c0_i32_0 = arith.constant 0 : i32
    %c0_i32_1 = arith.constant 0 : i32
    return %c0_i32, %c0_i32_0 : i32, i32
  }
  func.func @transform_4(%arg0: i32) -> (i32, i32) {
    %c0_i32 = arith.constant 0 : i32
    %c0_i32_0 = arith.constant 0 : i32
    %c0_i32_1 = arith.constant 0 : i32
    return %c0_i32, %c0_i32_0 : i32, i32
  }
  func.func @transform_5(%arg0: i32) -> (i32, i32) {
    %c0_i32 = arith.constant 0 : i32
    %c0_i32_0 = arith.constant 0 : i32
    %c0_i32_1 = arith.constant 0 : i32
    return %c0_i32, %c0_i32_0 : i32, i32
  }
}

</mosaic_0001>

<llo_original>
// kernel: deepar_prediction_forward.1
$region0: #{deepar_prediction_forward.1}
  #allocation0 [shape = 'u32[]', space=smem, size = 0x4, offset = 0x4, fixed_abs, tag = 'smem constant byte address 0x4 - core index']
  #allocation1 [shape = 'u32[144,128]{1,0:T(1,128)}', space=vmem, size = 0x12000, scoped, tag = 'internal scratch']
  %s0 = inlined_call_operand.vmem [shape: bf16[64,32], index: 0, kind: input, shape index: {}]
  %s1 = inlined_call_operand.vmem [shape: bf16[32,16], index: 1, kind: input, shape index: {}]
  %s2 = inlined_call_operand.vmem [shape: f32[8,18], index: 2, kind: input, shape index: {}]
  %s3 = inlined_call_operand.vmem [shape: bf16[192,128], index: 3, kind: input, shape index: {}]
  %s4 = inlined_call_operand.vmem [shape: f32[3,128], index: 4, kind: input, shape index: {}]
  %s5 = inlined_call_operand.hbm [shape: f32[8,4], index: 5, kind: output, shape index: {}]
  %s6 = sld [smem:[#allocation0]]
  $region30: #{deepar_prediction_forward.1} parent=0
    _
  %s8 = ssub.s32 1, %s6
  %s9 = scalar_select 0, %s8, %s6
  $region1: #{deepar_prediction_forward.1} parent=0
    #allocation2 [shape = 'u8[4096]{0}', space=vmem, size = 0x1000, scoped, tag = 'output window, operand 0, single buffered']
    #allocation3 [shape = 's32[1]{0}', space=sflag, size = 0x4, scoped, tag = 'scoped memory for deepar_prediction_forward.1']
    %10 = vsyncpa [#allocation3], 0
    // Predicated region
    $region2: #{deepar_prediction_forward.1} parent=1 // pred_check
      _
    $region3: #{deepar_prediction_forward.1} parent=1 // pred_check_branch
      %12 = sbr.rel (0) target = $region5
    $region4: #{deepar_prediction_forward.1} parent=1 // pred_region
      _
    $region5: #{deepar_prediction_forward.1} parent=1 // pred_fallthru
      _
    // Predicated region
    $region6: #{deepar_prediction_forward.1} parent=1 // pred_check
      _
    $region7: #{deepar_prediction_forward.1} parent=1 // pred_check_branch
      %14 = sbr.rel (0) target = $region9
    $region8: #{deepar_prediction_forward.1} parent=1 // pred_region
      _
    $region9: #{deepar_prediction_forward.1} parent=1 // pred_fallthru
      _
    // Predicated region
    $region10: #{deepar_prediction_forward.1} parent=1 // pred_check
      _
    $region11: #{deepar_prediction_forward.1} parent=1 // pred_check_branch
      %16 = sbr.rel (0) target = $region13
    $region12: #{deepar_prediction_forward.1} parent=1 // pred_region
      _
    $region13: #{deepar_prediction_forward.1} parent=1 // pred_fallthru
      _
    // Predicated region
    $region14: #{deepar_prediction_forward.1} parent=1 // pred_check
      _
    $region15: #{deepar_prediction_forward.1} parent=1 // pred_check_branch
      %18 = sbr.rel (0) target = $region17
    $region16: #{deepar_prediction_forward.1} parent=1 // pred_region
      _
    $region17: #{deepar_prediction_forward.1} parent=1 // pred_fallthru
      _
    // Predicated region
    $region18: #{deepar_prediction_forward.1} parent=1 // pred_check
      _
    $region19: #{deepar_prediction_forward.1} parent=1 // pred_check_branch
      %20 = sbr.rel (0) target = $region21
    $region20: #{deepar_prediction_forward.1} parent=1 // pred_region
      _
    $region21: #{deepar_prediction_forward.1} parent=1 // pred_fallthru
      _
    %v22 = vld [vmem:[%s4] sm:$0x1]
    %v23 = vld [vmem:[%s4 + $0x1] sm:$0x1]
    %v24 = vld [vmem:[%s4 + $0x2] sm:$0x1]
    %v25 = vld [vmem:[%s0] sm:$0xf]
    %v26 = vld [vmem:[%s0 + $0x4] sm:$0xf]
    %v27 = vld [vmem:[%s0 + $0x8] sm:$0xf]
    %v28 = vld [vmem:[%s0 + $0xc] sm:$0xf]
    %v29 = vld [vmem:[%s0 + $0x10] sm:$0xf]
    %v30 = vld [vmem:[%s0 + $0x14] sm:$0xf]
    %v31 = vld [vmem:[%s0 + $0x18] sm:$0xf]
    %v32 = vld [vmem:[%s0 + $0x1c] sm:$0xf]
    %v33 = vld [vmem:[%s3] sm:$0xf]
    %v34 = vld [vmem:[%s3 + $0x4] sm:$0xf]
    %v35 = vld [vmem:[%s3 + $0x8] sm:$0xf]
    %v36 = vld [vmem:[%s3 + $0xc] sm:$0xf]
    %v37 = vlaneseq
    %v38 = vshrl.u32 %v37, 7
    %v39 = vsub.s32 0, %v38
    %v40 = vrot.slane %v22, %v39
    %v49 = vunpack.c.l.b16 %v25
    %v50 = vunpack.c.l.b16 %v26
    %v51 = vunpack.c.l.b16 %v27
    %v52 = vunpack.c.l.b16 %v28
    %v53 = vunpack.c.l.b16 %v29
    %v54 = vunpack.c.l.b16 %v30
    %v55 = vunpack.c.l.b16 %v31
    %v56 = vunpack.c.l.b16 %v32
    %v57 = vpack.c.b16 %v50, %v49
    %v58 = vpack.c.b16 %v52, %v51
    %v59 = vpack.c.b16 %v54, %v53
    %v60 = vpack.c.b16 %v56, %v55
    %v65 = vunpack.c.l.b16 %v33
    %v66 = vunpack.c.l.b16 %v34
    %v67 = vunpack.c.l.b16 %v35
    %v68 = vunpack.c.l.b16 %v36
    %v69 = vpack.c.b16 %v66, %v65
    %v70 = vpack.c.b16 %v68, %v67
    %vm73 = vcmask 261120
    %v75 = vsel %vm73, %v57, 0
    %v78 = vsel %vm73, %v58, 0
    %v81 = vsel %vm73, %v59, 0
    %v84 = vsel %vm73, %v60, 0
    %86 = vmatprep.subr.bf16.mxu0 0
    %87 = vmatpush1.bf16.msra.mxu0 %v69
    %88 = vmatprep.subr.bf16.mxu0 0
    %89 = vmatpush1.bf16.msra.mxu0 %v70
    %90 = vmatprep.subr.bf16.mxu0 0
    %91 = vmatpush1.bf16.msra.mxu0 0
    %92 = vmatprep.subr.bf16.mxu0 0
    %93 = vmatpush1.bf16.msra.mxu0 0
    %94 = vmatprep.subr.bf16.mxu0 0
    %95 = vmatpush1.bf16.msra.mxu0 0
    %96 = vmatprep.subr.bf16.mxu0 0
    %97 = vmatpush1.bf16.msra.mxu0 0
    %98 = vmatprep.subr.bf16.mxu0 0
    %99 = vmatpush1.bf16.msra.mxu0 0
    %100 = vmatprep.subr.bf16.mxu0 0
    %101 = vmatpush1.bf16.msra.mxu0 0
    %102 = vmatprep.subr.bf16.mxu0 0
    %103 = vmatpush1.bf16.msra.mxu0 0
    %104 = vmatprep.subr.bf16.mxu0 0
    %105 = vmatpush1.bf16.msra.mxu0 0
    %106 = vmatprep.subr.bf16.mxu0 0
    %107 = vmatpush1.bf16.msra.mxu0 0
    %108 = vmatprep.subr.bf16.mxu0 0
    %109 = vmatpush1.bf16.msra.mxu0 0
    %110 = vmatprep.subr.bf16.mxu0 0
    %111 = vmatpush1.bf16.msra.mxu0 0
    %112 = vmatprep.subr.bf16.mxu0 0
    %113 = vmatpush1.bf16.msra.mxu0 0
    %114 = vmatprep.subr.bf16.mxu0 0
    %115 = vmatpush1.bf16.msra.mxu0 0
    %116 = vmatprep.subr.bf16.mxu0 0
    %117 = vmatpush1.bf16.msra.mxu0 0
    %118 = vmatprep.mubr.bf16.mxu0 0
    %119 = vmatmul.mubr.bf16.gmra.mrb[0].mxu0 %v75
    %v120 = vpop.f32.mrb[0].mxu0
    %v121 = vadd.f32 %v40, %v120
    %v122 = vpop.f32.mrb[0].mxu0
    %v123 = vpop.f32.mrb[0].mxu0
    %v124 = vadd.f32 %v40, %v123
    %v125 = vpop.f32.mrb[0].mxu0
    %126 = vmatprep.mubr.bf16.mxu0 0
    %127 = vmatmul.mubr.bf16.gmra.mrb[0].mxu0 %v78
    %v128 = vpop.f32.mrb[0].mxu0
    %v129 = vadd.f32 %v40, %v128
    %v130 = vpop.f32.mrb[0].mxu0
    %v131 = vpop.f32.mrb[0].mxu0
    %v132 = vadd.f32 %v40, %v131
    %v133 = vpop.f32.mrb[0].mxu0
    %134 = vmatprep.mubr.bf16.mxu0 0
    %135 = vmatmul.mubr.bf16.gmra.mrb[0].mxu0 %v81
    %v136 = vpop.f32.mrb[0].mxu0
    %v137 = vadd.f32 %v40, %v136
    %v138 = vpop.f32.mrb[0].mxu0
    %v139 = vpop.f32.mrb[0].mxu0
    %v140 = vadd.f32 %v40, %v139
    %v141 = vpop.f32.mrb[0].mxu0
    %142 = vmatprep.mubr.bf16.mxu0 0
    %143 = vmatmul.mubr.bf16.gmra.mrb[0].mxu0 %v84
    %v144 = vpop.f32.mrb[0].mxu0
    %v145 = vadd.f32 %v40, %v144
    %v146 = vpop.f32.mrb[0].mxu0
    %v147 = vpop.f32.mrb[0].mxu0
    %v148 = vadd.f32 %v40, %v147
    %v149 = vpop.f32.mrb[0].mxu0
    %150 = vdwg.mxu0
    %v151 = vld [vmem:[%s1] sm:$0xf]
    %v152 = vld [vmem:[%s1 + $0x4] sm:$0xf]
    %v153 = vld [vmem:[%s1 + $0x8] sm:$0xf]
    %v154 = vld [vmem:[%s1 + $0xc] sm:$0xf]
    %v155 = vld [vmem:[%s3 + $0x40] sm:$0xf]
    %v156 = vld [vmem:[%s3 + $0x44] sm:$0xf]
    %v161 = vunpack.c.l.b16 %v151
    %v162 = vunpack.c.l.b16 %v152
    %v163 = vunpack.c.l.b16 %v153
    %v164 = vunpack.c.l.b16 %v154
    %v165 = vpack.c.b16 %v162, %v161
    %v166 = vpack.c.b16 %v164, %v163
    %v169 = vunpack.c.l.b16 %v155
    %v170 = vunpack.c.l.b16 %v156
    %v171 = vpack.c.b16 %v170, %v169
    %vm173 = vcmask 130048
    %v175 = vsel %vm173, %v165, 0
    %v178 = vsel %vm173, %v166, 0
    %180 = vmatprep.subr.bf16.mxu0 0
    %181 = vmatpush1.bf16.msra.mxu0 %v171
    %182 = vmatprep.subr.bf16.mxu0 0
    %183 = vmatpush1.bf16.msra.mxu0 0
    %184 = vmatprep.subr.bf16.mxu0 0
    %185 = vmatpush1.bf16.msra.mxu0 0
    %186 = vmatprep.subr.bf16.mxu0 0
    %187 = vmatpush1.bf16.msra.mxu0 0
    %188 = vmatprep.subr.bf16.mxu0 0
    %189 = vmatpush1.bf16.msra.mxu0 0
    %190 = vmatprep.subr.bf16.mxu0 0
    %191 = vmatpush1.bf16.msra.mxu0 0
    %192 = vmatprep.subr.bf16.mxu0 0
    %193 = vmatpush1.bf16.msra.mxu0 0
    %194 = vmatprep.subr.bf16.mxu0 0
    %195 = vmatpush1.bf16.msra.mxu0 0
    %196 = vmatprep.subr.bf16.mxu0 0
    %197 = vmatpush1.bf16.msra.mxu0 0
    %198 = vmatprep.subr.bf16.mxu0 0
    %199 = vmatpush1.bf16.msra.mxu0 0
    %200 = vmatprep.subr.bf16.mxu0 0
    %201 = vmatpush1.bf16.msra.mxu0 0
    %202 = vmatprep.subr.bf16.mxu0 0
    %203 = vmatpush1.bf16.msra.mxu0 0
    %204 = vmatprep.subr.bf16.mxu0 0
    %205 = vmatpush1.bf16.msra.mxu0 0
    %206 = vmatprep.subr.bf16.mxu0 0
    %207 = vmatpush1.bf16.msra.mxu0 0
    %208 = vmatprep.subr.bf16.mxu0 0
    %209 = vmatpush1.bf16.msra.mxu0 0
    %210 = vmatprep.subr.bf16.mxu0 0
    %211 = vmatpush1.bf16.msra.mxu0 0
    %212 = vmatprep.mubr.bf16.mxu0 0
    %213 = vmatmul.mubr.bf16.gmra.mrb[0].mxu0 %v175
    %v214 = vpop.f32.mrb[0].mxu0
    %v215 = vadd.f32 %v40, %v214
    %v216 = vpop.f32.mrb[0].mxu0
    %v217 = vpop.f32.mrb[0].mxu0
    %v218 = vadd.f32 %v40, %v217
    %v219 = vpop.f32.mrb[0].mxu0
    %220 = vmatprep.mubr.bf16.mxu0 0
    %221 = vmatmul.mubr.bf16.gmra.mrb[0].mxu0 %v178
    %v222 = vpop.f32.mrb[0].mxu0
    %v223 = vadd.f32 %v40, %v222
    %v224 = vpop.f32.mrb[0].mxu0
    %v225 = vpop.f32.mrb[0].mxu0
    %v226 = vadd.f32 %v40, %v225
    %v227 = vpop.f32.mrb[0].mxu0
    %228 = vdwg.mxu0
    %v229 = vld [vmem:[%s2] sm:$0xff]
    %v230 = vrcp.pop %v229
    %v231 = vmul.f32 0.5, %v230
    %v232 = vld [vmem:[%s3 + $0x10] sm:$0xf]
    %v233 = vld [vmem:[%s3 + $0x14] sm:$0xf]
    %v234 = vld [vmem:[%s3 + $0x18] sm:$0xf]
    %v235 = vld [vmem:[%s3 + $0x1c] sm:$0xf]
    %v240 = vunpack.c.l.b16 %v232
    %v241 = vunpack.c.l.b16 %v233
    %v242 = vunpack.c.l.b16 %v234
    %v243 = vunpack.c.l.b16 %v235
    %v244 = vpack.c.b16 %v241, %v240
    %v245 = vpack.c.b16 %v243, %v242
    %v249 = vsel %vm73, 0, 0
    %251 = vmatprep.subr.bf16.mxu0 0
    %252 = vmatpush1.bf16.msra.mxu0 %v244
    %253 = vmatprep.subr.bf16.mxu0 0
    %254 = vmatpush1.bf16.msra.mxu0 %v245
    %255 = vmatprep.subr.bf16.mxu0 0
    %256 = vmatpush1.bf16.msra.mxu0 0
    %257 = vmatprep.subr.bf16.mxu0 0
    %258 = vmatpush1.bf16.msra.mxu0 0
    %259 = vmatprep.subr.bf16.mxu0 0
    %260 = vmatpush1.bf16.msra.mxu0 0
    %261 = vmatprep.subr.bf16.mxu0 0
    %262 = vmatpush1.bf16.msra.mxu0 0
    %263 = vmatprep.subr.bf16.mxu0 0
    %264 = vmatpush1.bf16.msra.mxu0 0
    %265 = vmatprep.subr.bf16.mxu0 0
    %266 = vmatpush1.bf16.msra.mxu0 0
    %267 = vmatprep.subr.bf16.mxu0 0
    %268 = vmatpush1.bf16.msra.mxu0 0
    %269 = vmatprep.subr.bf16.mxu0 0
    %270 = vmatpush1.bf16.msra.mxu0 0
    %271 = vmatprep.subr.bf16.mxu0 0
    %272 = vmatpush1.bf16.msra.mxu0 0
    %273 = vmatprep.subr.bf16.mxu0 0
    %274 = vmatpush1.bf16.msra.mxu0 0
    %275 = vmatprep.subr.bf16.mxu0 0
    %276 = vmatpush1.bf16.msra.mxu0 0
    %277 = vmatprep.subr.bf16.mxu0 0
    %278 = vmatpush1.bf16.msra.mxu0 0
    %279 = vmatprep.subr.bf16.mxu0 0
    %280 = vmatpush1.bf16.msra.mxu0 0
    %281 = vmatprep.subr.bf16.mxu0 0
    %282 = vmatpush1.bf16.msra.mxu0 0
    %283 = vmatprep.mubr.bf16.mxu0 0
    %284 = vmatmul.mubr.bf16.gmra.mrb[0].mxu0 %v249
    %v285 = vpop.f32.mrb[0].mxu0
    %v286 = vadd.f32 0.0, %v285
    %v287 = vpop.f32.mrb[0].mxu0
    %v288 = vpop.f32.mrb[0].mxu0
    %v289 = vpop.f32.mrb[0].mxu0
    %290 = vdwg.mxu0
    %v291 = vadd.f32 %v121, %v286
    %v292 = vxor.u32 %v291, 2147483648
    %v293 = vmul.f32 %v292, 1.442695
    %v294 = vpow.pop %v293
    %v295 = vadd.f32 %v294, 1.0
    %v296 = vrcp.pop %v295
    %v297 = vmul.f32 1.0, %v296
    %v298 = vtanh.pop %v291
    %v299 = vmul.f32 %v297, 0.0
    %301 = vrot.lane.b32.xlu0 %v298, 32
    %v302 = vpop.permute.xlu0 %301
    %v304 = vmul.f32 %v297, %v302
    %306 = vrot.lane.b32.xlu0 %v304, 32
    %v307 = vpop.permute.xlu0 %306
    %v309 = vadd.f32 %v299, %v307
    %v310 = vtanh.pop %v309
    %312 = vrot.lane.b32.xlu0 %v310, 32
    %v313 = vpop.permute.xlu0 %312
    %v315 = vmul.f32 %v297, %v313
    %v316 = vpack.c.bf16 %v315, %v315
    %v317 = vld [vmem:[%s3 + $0x20] sm:$0xf]
    %v318 = vld [vmem:[%s3 + $0x24] sm:$0xf]
    %v319 = vld [vmem:[%s3 + $0x28] sm:$0xf]
    %v320 = vld [vmem:[%s3 + $0x2c] sm:$0xf]
    %322 = vrot.lane.b32.xlu0 %v316, 64
    %v323 = vpop.permute.xlu0 %322
    %v328 = vunpack.c.l.b16 %v317
    %v329 = vunpack.c.l.b16 %v318
    %v330 = vunpack.c.l.b16 %v319
    %v331 = vunpack.c.l.b16 %v320
    %v332 = vpack.c.b16 %v329, %v328
    %v333 = vpack.c.b16 %v331, %v330
    %v337 = vsel %vm73, %v323, 0
    %339 = vmatprep.subr.bf16.mxu0 0
    %340 = vmatpush1.bf16.msra.mxu0 %v332
    %341 = vmatprep.subr.bf16.mxu0 0
    %342 = vmatpush1.bf16.msra.mxu0 %v333
    %343 = vmatprep.subr.bf16.mxu0 0
    %344 = vmatpush1.bf16.msra.mxu0 0
    %345 = vmatprep.subr.bf16.mxu0 0
    %346 = vmatpush1.bf16.msra.mxu0 0
    %347 = vmatprep.subr.bf16.mxu0 0
    %348 = vmatpush1.bf16.msra.mxu0 0
    %349 = vmatprep.subr.bf16.mxu0 0
    %350 = vmatpush1.bf16.msra.mxu0 0
    %351 = vmatprep.subr.bf16.mxu0 0
    %352 = vmatpush1.bf16.msra.mxu0 0
    %353 = vmatprep.subr.bf16.mxu0 0
    %354 = vmatpush1.bf16.msra.mxu0 0
    %355 = vmatprep.subr.bf16.mxu0 0
    %356 = vmatpush1.bf16.msra.mxu0 0
    %357 = vmatprep.subr.bf16.mxu0 0
    %358 = vmatpush1.bf16.msra.mxu0 0
    %359 = vmatprep.subr.bf16.mxu0 0
    %360 = vmatpush1.bf16.msra.mxu0 0
    %361 = vmatprep.subr.bf16.mxu0 0
    %362 = vmatpush1.bf16.msra.mxu0 0
    %363 = vmatprep.subr.bf16.mxu0 0
    %364 = vmatpush1.bf16.msra.mxu0 0
    %365 = vmatprep.subr.bf16.mxu0 0
    %366 = vmatpush1.bf16.msra.mxu0 0
    %367 = vmatprep.subr.bf16.mxu0 0
    %368 = vmatpush1.bf16.msra.mxu0 0
    %369 = vmatprep.subr.bf16.mxu0 0
    %370 = vmatpush1.bf16.msra.mxu0 0
    %371 = vmatprep.mubr.bf16.mxu0 0
    %372 = vmatmul.mubr.bf16.gmra.mrb[0].mxu0 %v337
    %v373 = vpop.f32.mrb[0].mxu0
    %v374 = vadd.f32 0.0, %v373
    %v375 = vpop.f32.mrb[0].mxu0
    %v376 = vpop.f32.mrb[0].mxu0
    %v377 = vpop.f32.mrb[0].mxu0
    %378 = vdwg.mxu0
    %v379 = vlaneseq
    %v380 = vshrl.u32 %v379, 7
    %v381 = vsub.s32 0, %v380
    %v382 = vrot.slane %v23, %v381
    %v383 = vadd.f32 %v382, %v374
    %v384 = vld [vmem:[%s3 + $0x30] sm:$0xf]
    %v385 = vld [vmem:[%s3 + $0x34] sm:$0xf]
    %v386 = vld [vmem:[%s3 + $0x38] sm:$0xf]
    %v387 = vld [vmem:[%s3 + $0x3c] sm:$0xf]
    %v392 = vunpack.c.l.b16 %v384
    %v393 = vunpack.c.l.b16 %v385
    %v394 = vunpack.c.l.b16 %v386
    %v395 = vunpack.c.l.b16 %v387
    %v396 = vpack.c.b16 %v393, %v392
    %v397 = vpack.c.b16 %v395, %v394
    %400 = vmatprep.subr.bf16.mxu0 0
    %401 = vmatpush1.bf16.msra.mxu0 %v396
    %402 = vmatprep.subr.bf16.mxu0 0
    %403 = vmatpush1.bf16.msra.mxu0 %v397
    %404 = vmatprep.subr.bf16.mxu0 0
    %405 = vmatpush1.bf16.msra.mxu0 0
    %406 = vmatprep.subr.bf16.mxu0 0
    %407 = vmatpush1.bf16.msra.mxu0 0
    %408 = vmatprep.subr.bf16.mxu0 0
    %409 = vmatpush1.bf16.msra.mxu0 0
    %410 = vmatprep.subr.bf16.mxu0 0
    %411 = vmatpush1.bf16.msra.mxu0 0
    %412 = vmatprep.subr.bf16.mxu0 0
    %413 = vmatpush1.bf16.msra.mxu0 0
    %414 = vmatprep.subr.bf16.mxu0 0
    %415 = vmatpush1.bf16.msra.mxu0 0
    %416 = vmatprep.subr.bf16.mxu0 0
    %417 = vmatpush1.bf16.msra.mxu0 0
    %418 = vmatprep.subr.bf16.mxu0 0
    %419 = vmatpush1.bf16.msra.mxu0 0
    %420 = vmatprep.subr.bf16.mxu0 0
    %421 = vmatpush1.bf16.msra.mxu0 0
    %422 = vmatprep.subr.bf16.mxu0 0
    %423 = vmatpush1.bf16.msra.mxu0 0
    %424 = vmatprep.subr.bf16.mxu0 0
    %425 = vmatpush1.bf16.msra.mxu0 0
    %426 = vmatprep.subr.bf16.mxu0 0
    %427 = vmatpush1.bf16.msra.mxu0 0
    %428 = vmatprep.subr.bf16.mxu0 0
    %429 = vmatpush1.bf16.msra.mxu0 0
    %430 = vmatprep.subr.bf16.mxu0 0
    %431 = vmatpush1.bf16.msra.mxu0 0
    %432 = vmatprep.mubr.bf16.mxu0 0
    %433 = vmatmul.mubr.bf16.gmra.mrb[0].mxu0 %v249
    %v434 = vpop.f32.mrb[0].mxu0
    %v435 = vadd.f32 0.0, %v434
    %v436 = vpop.f32.mrb[0].mxu0
    %v437 = vpop.f32.mrb[0].mxu0
    %v438 = vpop.f32.mrb[0].mxu0
    %439 = vdwg.mxu0
    %v440 = vadd.f32 %v383, %v435
    %v441 = vxor.u32 %v440, 2147483648
    %v442 = vmul.f32 %v441, 1.442695
    %v443 = vpow.pop %v442
    %v444 = vadd.f32 %v443, 1.0
    %v445 = vrcp.pop %v444
    %v446 = vmul.f32 1.0, %v445
    %v447 = vtanh.pop %v440
    %v448 = vmul.f32 %v446, 0.0
    %450 = vrot.lane.b32.xlu0 %v447, 32
    %v451 = vpop.permute.xlu0 %450
    %v453 = vmul.f32 %v446, %v451
    %455 = vrot.lane.b32.xlu0 %v453, 32
    %v456 = vpop.permute.xlu0 %455
    %v458 = vadd.f32 %v448, %v456
    %v459 = vtanh.pop %v458
    %461 = vrot.lane.b32.xlu0 %v459, 32
    %v462 = vpop.permute.xlu0 %461
    %v464 = vmul.f32 %v446, %v462
    %465 = vmatprep.subr.bf16.mxu0 0
    %466 = vmatpush1.bf16.msra.mxu0 %v244
    %467 = vmatprep.subr.bf16.mxu0 0
    %468 = vmatpush1.bf16.msra.mxu0 %v245
    %469 = vmatprep.subr.bf16.mxu0 0
    %470 = vmatpush1.bf16.msra.mxu0 0
    %471 = vmatprep.subr.bf16.mxu0 0
    %472 = vmatpush1.bf16.msra.mxu0 0
    %473 = vmatprep.subr.bf16.mxu0 0
    %474 = vmatpush1.bf16.msra.mxu0 0
    %475 = vmatprep.subr.bf16.mxu0 0
    %476 = vmatpush1.bf16.msra.mxu0 0
    %477 = vmatprep.subr.bf16.mxu0 0
    %478 = vmatpush1.bf16.msra.mxu0 0
    %479 = vmatprep.subr.bf16.mxu0 0
    %480 = vmatpush1.bf16.msra.mxu0 0
    %481 = vmatprep.subr.bf16.mxu0 0
    %482 = vmatpush1.bf16.msra.mxu0 0
    %483 = vmatprep.subr.bf16.mxu0 0
    %484 = vmatpush1.bf16.msra.mxu0 0
    %485 = vmatprep.subr.bf16.mxu0 0
    %486 = vmatpush1.bf16.msra.mxu0 0
    %487 = vmatprep.subr.bf16.mxu0 0
    %488 = vmatpush1.bf16.msra.mxu0 0
    %489 = vmatprep.subr.bf16.mxu0 0
    %490 = vmatpush1.bf16.msra.mxu0 0
    %491 = vmatprep.subr.bf16.mxu0 0
    %492 = vmatpush1.bf16.msra.mxu0 0
    %493 = vmatprep.subr.bf16.mxu0 0
    %494 = vmatpush1.bf16.msra.mxu0 0
    %495 = vmatprep.subr.bf16.mxu0 0
    %496 = vmatpush1.bf16.msra.mxu0 0
    %497 = vmatprep.mubr.bf16.mxu0 0
    %498 = vmatmul.mubr.bf16.gmra.mrb[0].mxu0 %v337
    %v499 = vpop.f32.mrb[0].mxu0
    %v500 = vadd.f32 0.0, %v499
    %v501 = vpop.f32.mrb[0].mxu0
    %v502 = vpop.f32.mrb[0].mxu0
    %v503 = vpop.f32.mrb[0].mxu0
    %504 = vdwg.mxu0
    %v505 = vadd.f32 %v124, %v500
    %v506 = vxor.u32 %v505, 2147483648
    %v507 = vmul.f32 %v506, 1.442695
    %v508 = vpow.pop %v507
    %v509 = vadd.f32 %v508, 1.0
    %v510 = vrcp.pop %v509
    %v511 = vmul.f32 1.0, %v510
    %v512 = vtanh.pop %v505
    %v513 = vmul.f32 %v511, %v309
    %515 = vrot.lane.b32.xlu0 %v512, 32
    %v516 = vpop.permute.xlu0 %515
    %v518 = vmul.f32 %v511, %v516
    %520 = vrot.lane.b32.xlu0 %v518, 32
    %v521 = vpop.permute.xlu0 %520
    %v523 = vadd.f32 %v513, %v521
    %v524 = vtanh.pop %v523
    %526 = vrot.lane.b32.xlu0 %v524, 32
    %v527 = vpop.permute.xlu0 %526
    %v529 = vmul.f32 %v511, %v527
    %v530 = vpack.c.bf16 %v529, %v529
    %532 = vrot.lane.b32.xlu0 %v530, 64
    %v533 = vpop.permute.xlu0 %532
    %v535 = vsel %vm73, %v533, 0
    %537 = vmatprep.subr.bf16.mxu0 0
    %538 = vmatpush1.bf16.msra.mxu0 %v332
    %539 = vmatprep.subr.bf16.mxu0 0
    %540 = vmatpush1.bf16.msra.mxu0 %v333
    %541 = vmatprep.subr.bf16.mxu0 0
    %542 = vmatpush1.bf16.msra.mxu0 0
    %543 = vmatprep.subr.bf16.mxu0 0
    %544 = vmatpush1.bf16.msra.mxu0 0
    %545 = vmatprep.subr.bf16.mxu0 0
    %546 = vmatpush1.bf16.msra.mxu0 0
    %547 = vmatprep.subr.bf16.mxu0 0
    %548 = vmatpush1.bf16.msra.mxu0 0
    %549 = vmatprep.subr.bf16.mxu0 0
    %550 = vmatpush1.bf16.msra.mxu0 0
    %551 = vmatprep.subr.bf16.mxu0 0
    %552 = vmatpush1.bf16.msra.mxu0 0
    %553 = vmatprep.subr.bf16.mxu0 0
    %554 = vmatpush1.bf16.msra.mxu0 0
    %555 = vmatprep.subr.bf16.mxu0 0
    %556 = vmatpush1.bf16.msra.mxu0 0
    %557 = vmatprep.subr.bf16.mxu0 0
    %558 = vmatpush1.bf16.msra.mxu0 0
    %559 = vmatprep.subr.bf16.mxu0 0
    %560 = vmatpush1.bf16.msra.mxu0 0
    %561 = vmatprep.subr.bf16.mxu0 0
    %562 = vmatpush1.bf16.msra.mxu0 0
    %563 = vmatprep.subr.bf16.mxu0 0
    %564 = vmatpush1.bf16.msra.mxu0 0
    %565 = vmatprep.subr.bf16.mxu0 0
    %566 = vmatpush1.bf16.msra.mxu0 0
    %567 = vmatprep.subr.bf16.mxu0 0
    %568 = vmatpush1.bf16.msra.mxu0 0
    %569 = vmatprep.mubr.bf16.mxu0 0
    %570 = vmatmul.mubr.bf16.gmra.mrb[0].mxu0 %v535
    %v571 = vpop.f32.mrb[0].mxu0
    %v572 = vadd.f32 0.0, %v571
    %v573 = vpop.f32.mrb[0].mxu0
    %v574 = vpop.f32.mrb[0].mxu0
    %v575 = vpop.f32.mrb[0].mxu0
    %576 = vdwg.mxu0
    %v577 = vadd.f32 %v382, %v572
    %v578 = vpack.c.bf16 %v464, %v464
    %580 = vrot.lane.b32.xlu0 %v578, 64
    %v581 = vpop.permute.xlu0 %580
    %v583 = vsel %vm73, %v581, 0
    %585 = vmatprep.subr.bf16.mxu0 0
    %586 = vmatpush1.bf16.msra.mxu0 %v396
    %587 = vmatprep.subr.bf16.mxu0 0
    %588 = vmatpush1.bf16.msra.mxu0 %v397
    %589 = vmatprep.subr.bf16.mxu0 0
    %590 = vmatpush1.bf16.msra.mxu0 0
    %591 = vmatprep.subr.bf16.mxu0 0
    %592 = vmatpush1.bf16.msra.mxu0 0
    %593 = vmatprep.subr.bf16.mxu0 0
    %594 = vmatpush1.bf16.msra.mxu0 0
    %595 = vmatprep.subr.bf16.mxu0 0
    %596 = vmatpush1.bf16.msra.mxu0 0
    %597 = vmatprep.subr.bf16.mxu0 0
    %598 = vmatpush1.bf16.msra.mxu0 0
    %599 = vmatprep.subr.bf16.mxu0 0
    %600 = vmatpush1.bf16.msra.mxu0 0
    %601 = vmatprep.subr.bf16.mxu0 0
    %602 = vmatpush1.bf16.msra.mxu0 0
    %603 = vmatprep.subr.bf16.mxu0 0
    %604 = vmatpush1.bf16.msra.mxu0 0
    %605 = vmatprep.subr.bf16.mxu0 0
    %606 = vmatpush1.bf16.msra.mxu0 0
    %607 = vmatprep.subr.bf16.mxu0 0
    %608 = vmatpush1.bf16.msra.mxu0 0
    %609 = vmatprep.subr.bf16.mxu0 0
    %610 = vmatpush1.bf16.msra.mxu0 0
    %611 = vmatprep.subr.bf16.mxu0 0
    %612 = vmatpush1.bf16.msra.mxu0 0
    %613 = vmatprep.subr.bf16.mxu0 0
    %614 = vmatpush1.bf16.msra.mxu0 0
    %615 = vmatprep.subr.bf16.mxu0 0
    %616 = vmatpush1.bf16.msra.mxu0 0
    %617 = vmatprep.mubr.bf16.mxu0 0
    %618 = vmatmul.mubr.bf16.gmra.mrb[0].mxu0 %v583
    %v619 = vpop.f32.mrb[0].mxu0
    %v620 = vadd.f32 0.0, %v619
    %v621 = vpop.f32.mrb[0].mxu0
    %v622 = vpop.f32.mrb[0].mxu0
    %v623 = vpop.f32.mrb[0].mxu0
    %624 = vdwg.mxu0
    %v625 = vadd.f32 %v577, %v620
    %v626 = vxor.u32 %v625, 2147483648
    %v627 = vmul.f32 %v626, 1.442695
    %v628 = vpow.pop %v627
    %v629 = vadd.f32 %v628, 1.0
    %v630 = vrcp.pop %v629
    %v631 = vmul.f32 1.0, %v630
    %v632 = vtanh.pop %v625
    %v633 = vmul.f32 %v631, %v458
    %635 = vrot.lane.b32.xlu0 %v632, 32
    %v636 = vpop.permute.xlu0 %635
    %v638 = vmul.f32 %v631, %v636
    %640 = vrot.lane.b32.xlu0 %v638, 32
    %v641 = vpop.permute.xlu0 %640
    %v643 = vadd.f32 %v633, %v641
    %v644 = vtanh.pop %v643
    %646 = vrot.lane.b32.xlu0 %v644, 32
    %v647 = vpop.permute.xlu0 %646
    %v649 = vmul.f32 %v631, %v647
    %650 = vmatprep.subr.bf16.mxu0 0
    %651 = vmatpush1.bf16.msra.mxu0 %v244
    %652 = vmatprep.subr.bf16.mxu0 0
    %653 = vmatpush1.bf16.msra.mxu0 %v245
    %654 = vmatprep.subr.bf16.mxu0 0
    %655 = vmatpush1.bf16.msra.mxu0 0
    %656 = vmatprep.subr.bf16.mxu0 0
    %657 = vmatpush1.bf16.msra.mxu0 0
    %658 = vmatprep.subr.bf16.mxu0 0
    %659 = vmatpush1.bf16.msra.mxu0 0
    %660 = vmatprep.subr.bf16.mxu0 0
    %661 = vmatpush1.bf16.msra.mxu0 0
    %662 = vmatprep.subr.bf16.mxu0 0
    %663 = vmatpush1.bf16.msra.mxu0 0
    %664 = vmatprep.subr.bf16.mxu0 0
    %665 = vmatpush1.bf16.msra.mxu0 0
    %666 = vmatprep.subr.bf16.mxu0 0
    %667 = vmatpush1.bf16.msra.mxu0 0
    %668 = vmatprep.subr.bf16.mxu0 0
    %669 = vmatpush1.bf16.msra.mxu0 0
    %670 = vmatprep.subr.bf16.mxu0 0
    %671 = vmatpush1.bf16.msra.mxu0 0
    %672 = vmatprep.subr.bf16.mxu0 0
    %673 = vmatpush1.bf16.msra.mxu0 0
    %674 = vmatprep.subr.bf16.mxu0 0
    %675 = vmatpush1.bf16.msra.mxu0 0
    %676 = vmatprep.subr.bf16.mxu0 0
    %677 = vmatpush1.bf16.msra.mxu0 0
    %678 = vmatprep.subr.bf16.mxu0 0
    %679 = vmatpush1.bf16.msra.mxu0 0
    %680 = vmatprep.subr.bf16.mxu0 0
    %681 = vmatpush1.bf16.msra.mxu0 0
    %682 = vmatprep.mubr.bf16.mxu0 0
    %683 = vmatmul.mubr.bf16.gmra.mrb[0].mxu0 %v535
    %v684 = vpop.f32.mrb[0].mxu0
    %v685 = vadd.f32 0.0, %v684
    %v686 = vpop.f32.mrb[0].mxu0
    %v687 = vpop.f32.mrb[0].mxu0
    %v688 = vpop.f32.mrb[0].mxu0
    %689 = vdwg.mxu0
    %v690 = vadd.f32 %v129, %v685
    %v691 = vxor.u32 %v690, 2147483648
    %v692 = vmul.f32 %v691, 1.442695
    %v693 = vpow.pop %v692
    %v694 = vadd.f32 %v693, 1.0
    %v695 = vrcp.pop %v694
    %v696 = vmul.f32 1.0, %v695
    %v697 = vtanh.pop %v690
    %v698 = vmul.f32 %v696, %v523
    %700 = vrot.lane.b32.xlu0 %v697, 32
    %v701 = vpop.permute.xlu0 %700
    %v703 = vmul.f32 %v696, %v701
    %705 = vrot.lane.b32.xlu0 %v703, 32
    %v706 = vpop.permute.xlu0 %705
    %v708 = vadd.f32 %v698, %v706
    %v709 = vtanh.pop %v708
    %711 = vrot.lane.b32.xlu0 %v709, 32
    %v712 = vpop.permute.xlu0 %711
    %v714 = vmul.f32 %v696, %v712
    %v715 = vpack.c.bf16 %v714, %v714
    %717 = vrot.lane.b32.xlu0 %v715, 64
    %v718 = vpop.permute.xlu0 %717
    %v720 = vsel %vm73, %v718, 0
    %722 = vmatprep.subr.bf16.mxu0 0
    %723 = vmatpush1.bf16.msra.mxu0 %v332
    %724 = vmatprep.subr.bf16.mxu0 0
    %725 = vmatpush1.bf16.msra.mxu0 %v333
    %726 = vmatprep.subr.bf16.mxu0 0
    %727 = vmatpush1.bf16.msra.mxu0 0
    %728 = vmatprep.subr.bf16.mxu0 0
    %729 = vmatpush1.bf16.msra.mxu0 0
    %730 = vmatprep.subr.bf16.mxu0 0
    %731 = vmatpush1.bf16.msra.mxu0 0
    %732 = vmatprep.subr.bf16.mxu0 0
    %733 = vmatpush1.bf16.msra.mxu0 0
    %734 = vmatprep.subr.bf16.mxu0 0
    %735 = vmatpush1.bf16.msra.mxu0 0
    %736 = vmatprep.subr.bf16.mxu0 0
    %737 = vmatpush1.bf16.msra.mxu0 0
    %738 = vmatprep.subr.bf16.mxu0 0
    %739 = vmatpush1.bf16.msra.mxu0 0
    %740 = vmatprep.subr.bf16.mxu0 0
    %741 = vmatpush1.bf16.msra.mxu0 0
    %742 = vmatprep.subr.bf16.mxu0 0
    %743 = vmatpush1.bf16.msra.mxu0 0
    %744 = vmatprep.subr.bf16.mxu0 0
    %745 = vmatpush1.bf16.msra.mxu0 0
    %746 = vmatprep.subr.bf16.mxu0 0
    %747 = vmatpush1.bf16.msra.mxu0 0
    %748 = vmatprep.subr.bf16.mxu0 0
    %749 = vmatpush1.bf16.msra.mxu0 0
    %750 = vmatprep.subr.bf16.mxu0 0
    %751 = vmatpush1.bf16.msra.mxu0 0
    %752 = vmatprep.subr.bf16.mxu0 0
    %753 = vmatpush1.bf16.msra.mxu0 0
    %754 = vmatprep.mubr.bf16.mxu0 0
    %755 = vmatmul.mubr.bf16.gmra.mrb[0].mxu0 %v720
    %v756 = vpop.f32.mrb[0].mxu0
    %v757 = vadd.f32 0.0, %v756
    %v758 = vpop.f32.mrb[0].mxu0
    %v759 = vpop.f32.mrb[0].mxu0
    %v760 = vpop.f32.mrb[0].mxu0
    %761 = vdwg.mxu0
    %v762 = vadd.f32 %v382, %v757
    %v763 = vpack.c.bf16 %v649, %v649
    %765 = vrot.lane.b32.xlu0 %v763, 64
    %v766 = vpop.permute.xlu0 %765
    %v768 = vsel %vm73, %v766, 0
    %770 = vmatprep.subr.bf16.mxu0 0
    %771 = vmatpush1.bf16.msra.mxu0 %v396
    %772 = vmatprep.subr.bf16.mxu0 0
    %773 = vmatpush1.bf16.msra.mxu0 %v397
    %774 = vmatprep.subr.bf16.mxu0 0
    %775 = vmatpush1.bf16.msra.mxu0 0
    %776 = vmatprep.subr.bf16.mxu0 0
    %777 = vmatpush1.bf16.msra.mxu0 0
    %778 = vmatprep.subr.bf16.mxu0 0
    %779 = vmatpush1.bf16.msra.mxu0 0
    %780 = vmatprep.subr.bf16.mxu0 0
    %781 = vmatpush1.bf16.msra.mxu0 0
    %782 = vmatprep.subr.bf16.mxu0 0
    %783 = vmatpush1.bf16.msra.mxu0 0
    %784 = vmatprep.subr.bf16.mxu0 0
    %785 = vmatpush1.bf16.msra.mxu0 0
    %786 = vmatprep.subr.bf16.mxu0 0
    %787 = vmatpush1.bf16.msra.mxu0 0
    %788 = vmatprep.subr.bf16.mxu0 0
    %789 = vmatpush1.bf16.msra.mxu0 0
    %790 = vmatprep.subr.bf16.mxu0 0
    %791 = vmatpush1.bf16.msra.mxu0 0
    %792 = vmatprep.subr.bf16.mxu0 0
    %793 = vmatpush1.bf16.msra.mxu0 0
    %794 = vmatprep.subr.bf16.mxu0 0
    %795 = vmatpush1.bf16.msra.mxu0 0
    %796 = vmatprep.subr.bf16.mxu0 0
    %797 = vmatpush1.bf16.msra.mxu0 0
    %798 = vmatprep.subr.bf16.mxu0 0
    %799 = vmatpush1.bf16.msra.mxu0 0
    %800 = vmatprep.subr.bf16.mxu0 0
    %801 = vmatpush1.bf16.msra.mxu0 0
    %802 = vmatprep.mubr.bf16.mxu0 0
    %803 = vmatmul.mubr.bf16.gmra.mrb[0].mxu0 %v768
    %v804 = vpop.f32.mrb[0].mxu0
    %v805 = vadd.f32 0.0, %v804
    %v806 = vpop.f32.mrb[0].mxu0
    %v807 = vpop.f32.mrb[0].mxu0
    %v808 = vpop.f32.mrb[0].mxu0
    %809 = vdwg.mxu0
    %v810 = vadd.f32 %v762, %v805
    %v811 = vxor.u32 %v810, 2147483648
    %v812 = vmul.f32 %v811, 1.442695
    %v813 = vpow.pop %v812
    %v814 = vadd.f32 %v813, 1.0
    %v815 = vrcp.pop %v814
    %v816 = vmul.f32 1.0, %v815
    %v817 = vtanh.pop %v810
    %v818 = vmul.f32 %v816, %v643
    %820 = vrot.lane.b32.xlu0 %v817, 32
    %v821 = vpop.permute.xlu0 %820
    %v823 = vmul.f32 %v816, %v821
    %825 = vrot.lane.b32.xlu0 %v823, 32
    %v826 = vpop.permute.xlu0 %825
    %v828 = vadd.f32 %v818, %v826
    %v829 = vtanh.pop %v828
    %831 = vrot.lane.b32.xlu0 %v829, 32
    %v832 = vpop.permute.xlu0 %831
    %v834 = vmul.f32 %v816, %v832
    %835 = vmatprep.subr.bf16.mxu0 0
    %836 = vmatpush1.bf16.msra.mxu0 %v244
    %837 = vmatprep.subr.bf16.mxu0 0
    %838 = vmatpush1.bf16.msra.mxu0 %v245
    %839 = vmatprep.subr.bf16.mxu0 0
    %840 = vmatpush1.bf16.msra.mxu0 0
    %841 = vmatprep.subr.bf16.mxu0 0
    %842 = vmatpush1.bf16.msra.mxu0 0
    %843 = vmatprep.subr.bf16.mxu0 0
    %844 = vmatpush1.bf16.msra.mxu0 0
    %845 = vmatprep.subr.bf16.mxu0 0
    %846 = vmatpush1.bf16.msra.mxu0 0
    %847 = vmatprep.subr.bf16.mxu0 0
    %848 = vmatpush1.bf16.msra.mxu0 0
    %849 = vmatprep.subr.bf16.mxu0 0
    %850 = vmatpush1.bf16.msra.mxu0 0
    %851 = vmatprep.subr.bf16.mxu0 0
    %852 = vmatpush1.bf16.msra.mxu0 0
    %853 = vmatprep.subr.bf16.mxu0 0
    %854 = vmatpush1.bf16.msra.mxu0 0
    %855 = vmatprep.subr.bf16.mxu0 0
    %856 = vmatpush1.bf16.msra.mxu0 0
    %857 = vmatprep.subr.bf16.mxu0 0
    %858 = vmatpush1.bf16.msra.mxu0 0
    %859 = vmatprep.subr.bf16.mxu0 0
    %860 = vmatpush1.bf16.msra.mxu0 0
    %861 = vmatprep.subr.bf16.mxu0 0
    %862 = vmatpush1.bf16.msra.mxu0 0
    %863 = vmatprep.subr.bf16.mxu0 0
    %864 = vmatpush1.bf16.msra.mxu0 0
    %865 = vmatprep.subr.bf16.mxu0 0
    %866 = vmatpush1.bf16.msra.mxu0 0
    %867 = vmatprep.mubr.bf16.mxu0 0
    %868 = vmatmul.mubr.bf16.gmra.mrb[0].mxu0 %v720
    %v869 = vpop.f32.mrb[0].mxu0
    %v870 = vadd.f32 0.0, %v869
    %v871 = vpop.f32.mrb[0].mxu0
    %v872 = vpop.f32.mrb[0].mxu0
    %v873 = vpop.f32.mrb[0].mxu0
    %874 = vdwg.mxu0
    %v875 = vadd.f32 %v132, %v870
    %v876 = vxor.u32 %v875, 2147483648
    %v877 = vmul.f32 %v876, 1.442695
    %v878 = vpow.pop %v877
    %v879 = vadd.f32 %v878, 1.0
    %v880 = vrcp.pop %v879
    %v881 = vmul.f32 1.0, %v880
    %v882 = vtanh.pop %v875
    %v883 = vmul.f32 %v881, %v708
    %885 = vrot.lane.b32.xlu0 %v882, 32
    %v886 = vpop.permute.xlu0 %885
    %v888 = vmul.f32 %v881, %v886
    %890 = vrot.lane.b32.xlu0 %v888, 32
    %v891 = vpop.permute.xlu0 %890
    %v893 = vadd.f32 %v883, %v891
    %v894 = vtanh.pop %v893
    %896 = vrot.lane.b32.xlu0 %v894, 32
    %v897 = vpop.permute.xlu0 %896
    %v899 = vmul.f32 %v881, %v897
    %v900 = vpack.c.bf16 %v899, %v899
    %902 = vrot.lane.b32.xlu0 %v900, 64
    %v903 = vpop.permute.xlu0 %902
    %v905 = vsel %vm73, %v903, 0
    %907 = vmatprep.subr.bf16.mxu0 0
    %908 = vmatpush1.bf16.msra.mxu0 %v332
    %909 = vmatprep.subr.bf16.mxu0 0
    %910 = vmatpush1.bf16.msra.mxu0 %v333
    %911 = vmatprep.subr.bf16.mxu0 0
    %912 = vmatpush1.bf16.msra.mxu0 0
    %913 = vmatprep.subr.bf16.mxu0 0
    %914 = vmatpush1.bf16.msra.mxu0 0
    %915 = vmatprep.subr.bf16.mxu0 0
    %916 = vmatpush1.bf16.msra.mxu0 0
    %917 = vmatprep.subr.bf16.mxu0 0
    %918 = vmatpush1.bf16.msra.mxu0 0
    %919 = vmatprep.subr.bf16.mxu0 0
    %920 = vmatpush1.bf16.msra.mxu0 0
    %921 = vmatprep.subr.bf16.mxu0 0
    %922 = vmatpush1.bf16.msra.mxu0 0
    %923 = vmatprep.subr.bf16.mxu0 0
    %924 = vmatpush1.bf16.msra.mxu0 0
    %925 = vmatprep.subr.bf16.mxu0 0
    %926 = vmatpush1.bf16.msra.mxu0 0
    %927 = vmatprep.subr.bf16.mxu0 0
    %928 = vmatpush1.bf16.msra.mxu0 0
    %929 = vmatprep.subr.bf16.mxu0 0
    %930 = vmatpush1.bf16.msra.mxu0 0
    %931 = vmatprep.subr.bf16.mxu0 0
    %932 = vmatpush1.bf16.msra.mxu0 0
    %933 = vmatprep.subr.bf16.mxu0 0
    %934 = vmatpush1.bf16.msra.mxu0 0
    %935 = vmatprep.subr.bf16.mxu0 0
    %936 = vmatpush1.bf16.msra.mxu0 0
    %937 = vmatprep.subr.bf16.mxu0 0
    %938 = vmatpush1.bf16.msra.mxu0 0
    %939 = vmatprep.mubr.bf16.mxu0 0
    %940 = vmatmul.mubr.bf16.gmra.mrb[0].mxu0 %v905
    %v941 = vpop.f32.mrb[0].mxu0
    %v942 = vadd.f32 0.0, %v941
    %v943 = vpop.f32.mrb[0].mxu0
    %v944 = vpop.f32.mrb[0].mxu0
    %v945 = vpop.f32.mrb[0].mxu0
    %946 = vdwg.mxu0
    %v947 = vadd.f32 %v382, %v942
    %v948 = vpack.c.bf16 %v834, %v834
    %950 = vrot.lane.b32.xlu0 %v948, 64
    %v951 = vpop.permute.xlu0 %950
    %v953 = vsel %vm73, %v951, 0
    %955 = vmatprep.subr.bf16.mxu0 0
    %956 = vmatpush1.bf16.msra.mxu0 %v396
    %957 = vmatprep.subr.bf16.mxu0 0
    %958 = vmatpush1.bf16.msra.mxu0 %v397
    %959 = vmatprep.subr.bf16.mxu0 0
    %960 = vmatpush1.bf16.msra.mxu0 0
    %961 = vmatprep.subr.bf16.mxu0 0
    %962 = vmatpush1.bf16.msra.mxu0 0
    %963 = vmatprep.subr.bf16.mxu0 0
    %964 = vmatpush1.bf16.msra.mxu0 0
    %965 = vmatprep.subr.bf16.mxu0 0
    %966 = vmatpush1.bf16.msra.mxu0 0
    %967 = vmatprep.subr.bf16.mxu0 0
    %968 = vmatpush1.bf16.msra.mxu0 0
    %969 = vmatprep.subr.bf16.mxu0 0
    %970 = vmatpush1.bf16.msra.mxu0 0
    %971 = vmatprep.subr.bf16.mxu0 0
    %972 = vmatpush1.bf16.msra.mxu0 0
    %973 = vmatprep.subr.bf16.mxu0 0
    %974 = vmatpush1.bf16.msra.mxu0 0
    %975 = vmatprep.subr.bf16.mxu0 0
    %976 = vmatpush1.bf16.msra.mxu0 0
    %977 = vmatprep.subr.bf16.mxu0 0
    %978 = vmatpush1.bf16.msra.mxu0 0
    %979 = vmatprep.subr.bf16.mxu0 0
    %980 = vmatpush1.bf16.msra.mxu0 0
    %981 = vmatprep.subr.bf16.mxu0 0
    %982 = vmatpush1.bf16.msra.mxu0 0
    %983 = vmatprep.subr.bf16.mxu0 0
    %984 = vmatpush1.bf16.msra.mxu0 0
    %985 = vmatprep.subr.bf16.mxu0 0
    %986 = vmatpush1.bf16.msra.mxu0 0
    %987 = vmatprep.mubr.bf16.mxu0 0
    %988 = vmatmul.mubr.bf16.gmra.mrb[0].mxu0 %v953
    %v989 = vpop.f32.mrb[0].mxu0
    %v990 = vadd.f32 0.0, %v989
    %v991 = vpop.f32.mrb[0].mxu0
    %v992 = vpop.f32.mrb[0].mxu0
    %v993 = vpop.f32.mrb[0].mxu0
    %994 = vdwg.mxu0
    %v995 = vadd.f32 %v947, %v990
    %v996 = vxor.u32 %v995, 2147483648
    %v997 = vmul.f32 %v996, 1.442695
    %v998 = vpow.pop %v997
    %v999 = vadd.f32 %v998, 1.0
    %v1000 = vrcp.pop %v999
    %v1001 = vmul.f32 1.0, %v1000
    %v1002 = vtanh.pop %v995
    %v1003 = vmul.f32 %v1001, %v828
    %1005 = vrot.lane.b32.xlu0 %v1002, 32
    %v1006 = vpop.permute.xlu0 %1005
    %v1008 = vmul.f32 %v1001, %v1006
    %1010 = vrot.lane.b32.xlu0 %v1008, 32
    %v1011 = vpop.permute.xlu0 %1010
    %v1013 = vadd.f32 %v1003, %v1011
    %v1014 = vtanh.pop %v1013
    %1016 = vrot.lane.b32.xlu0 %v1014, 32
    %v1017 = vpop.permute.xlu0 %1016
    %v1019 = vmul.f32 %v1001, %v1017
    %1020 = vmatprep.subr.bf16.mxu0 0
    %1021 = vmatpush1.bf16.msra.mxu0 %v244
    %1022 = vmatprep.subr.bf16.mxu0 0
    %1023 = vmatpush1.bf16.msra.mxu0 %v245
    %1024 = vmatprep.subr.bf16.mxu0 0
    %1025 = vmatpush1.bf16.msra.mxu0 0
    %1026 = vmatprep.subr.bf16.mxu0 0
    %1027 = vmatpush1.bf16.msra.mxu0 0
    %1028 = vmatprep.subr.bf16.mxu0 0
    %1029 = vmatpush1.bf16.msra.mxu0 0
    %1030 = vmatprep.subr.bf16.mxu0 0
    %1031 = vmatpush1.bf16.msra.mxu0 0
    %1032 = vmatprep.subr.bf16.mxu0 0
    %1033 = vmatpush1.bf16.msra.mxu0 0
    %1034 = vmatprep.subr.bf16.mxu0 0
    %1035 = vmatpush1.bf16.msra.mxu0 0
    %1036 = vmatprep.subr.bf16.mxu0 0
    %1037 = vmatpush1.bf16.msra.mxu0 0
    %1038 = vmatprep.subr.bf16.mxu0 0
    %1039 = vmatpush1.bf16.msra.mxu0 0
    %1040 = vmatprep.subr.bf16.mxu0 0
    %1041 = vmatpush1.bf16.msra.mxu0 0
    %1042 = vmatprep.subr.bf16.mxu0 0
    %1043 = vmatpush1.bf16.msra.mxu0 0
    %1044 = vmatprep.subr.bf16.mxu0 0
    %1045 = vmatpush1.bf16.msra.mxu0 0
    %1046 = vmatprep.subr.bf16.mxu0 0
    %1047 = vmatpush1.bf16.msra.mxu0 0
    %1048 = vmatprep.subr.bf16.mxu0 0
    %1049 = vmatpush1.bf16.msra.mxu0 0
    %1050 = vmatprep.subr.bf16.mxu0 0
    %1051 = vmatpush1.bf16.msra.mxu0 0
    %1052 = vmatprep.mubr.bf16.mxu0 0
    %1053 = vmatmul.mubr.bf16.gmra.mrb[0].mxu0 %v905
    %v1054 = vpop.f32.mrb[0].mxu0
    %v1055 = vadd.f32 0.0, %v1054
    %v1056 = vpop.f32.mrb[0].mxu0
    %v1057 = vpop.f32.mrb[0].mxu0
    %v1058 = vpop.f32.mrb[0].mxu0
    %1059 = vdwg.mxu0
    %v1060 = vadd.f32 %v137, %v1055
    %v1061 = vxor.u32 %v1060, 2147483648
    %v1062 = vmul.f32 %v1061, 1.442695
    %v1063 = vpow.pop %v1062
    %v1064 = vadd.f32 %v1063, 1.0
    %v1065 = vrcp.pop %v1064
    %v1066 = vmul.f32 1.0, %v1065
    %v1067 = vtanh.pop %v1060
    %v1068 = vmul.f32 %v1066, %v893
    %1070 = vrot.lane.b32.xlu0 %v1067, 32
    %v1071 = vpop.permute.xlu0 %1070
    %v1073 = vmul.f32 %v1066, %v1071
    %1075 = vrot.lane.b32.xlu0 %v1073, 32
    %v1076 = vpop.permute.xlu0 %1075
    %v1078 = vadd.f32 %v1068, %v1076
    %v1079 = vtanh.pop %v1078
    %1081 = vrot.lane.b32.xlu0 %v1079, 32
    %v1082 = vpop.permute.xlu0 %1081
    %v1084 = vmul.f32 %v1066, %v1082
    %v1085 = vpack.c.bf16 %v1084, %v1084
    %1087 = vrot.lane.b32.xlu0 %v1085, 64
    %v1088 = vpop.permute.xlu0 %1087
    %v1090 = vsel %vm73, %v1088, 0
    %1092 = vmatprep.subr.bf16.mxu0 0
    %1093 = vmatpush1.bf16.msra.mxu0 %v332
    %1094 = vmatprep.subr.bf16.mxu0 0
    %1095 = vmatpush1.bf16.msra.mxu0 %v333
    %1096 = vmatprep.subr.bf16.mxu0 0
    %1097 = vmatpush1.bf16.msra.mxu0 0
    %1098 = vmatprep.subr.bf16.mxu0 0
    %1099 = vmatpush1.bf16.msra.mxu0 0
    %1100 = vmatprep.subr.bf16.mxu0 0
    %1101 = vmatpush1.bf16.msra.mxu0 0
    %1102 = vmatprep.subr.bf16.mxu0 0
    %1103 = vmatpush1.bf16.msra.mxu0 0
    %1104 = vmatprep.subr.bf16.mxu0 0
    %1105 = vmatpush1.bf16.msra.mxu0 0
    %1106 = vmatprep.subr.bf16.mxu0 0
    %1107 = vmatpush1.bf16.msra.mxu0 0
    %1108 = vmatprep.subr.bf16.mxu0 0
    %1109 = vmatpush1.bf16.msra.mxu0 0
    %1110 = vmatprep.subr.bf16.mxu0 0
    %1111 = vmatpush1.bf16.msra.mxu0 0
    %1112 = vmatprep.subr.bf16.mxu0 0
    %1113 = vmatpush1.bf16.msra.mxu0 0
    %1114 = vmatprep.subr.bf16.mxu0 0
    %1115 = vmatpush1.bf16.msra.mxu0 0
    %1116 = vmatprep.subr.bf16.mxu0 0
    %1117 = vmatpush1.bf16.msra.mxu0 0
    %1118 = vmatprep.subr.bf16.mxu0 0
    %1119 = vmatpush1.bf16.msra.mxu0 0
    %1120 = vmatprep.subr.bf16.mxu0 0
    %1121 = vmatpush1.bf16.msra.mxu0 0
    %1122 = vmatprep.subr.bf16.mxu0 0
    %1123 = vmatpush1.bf16.msra.mxu0 0
    %1124 = vmatprep.mubr.bf16.mxu0 0
    %1125 = vmatmul.mubr.bf16.gmra.mrb[0].mxu0 %v1090
    %v1126 = vpop.f32.mrb[0].mxu0
    %v1127 = vadd.f32 0.0, %v1126
    %v1128 = vpop.f32.mrb[0].mxu0
    %v1129 = vpop.f32.mrb[0].mxu0
    %v1130 = vpop.f32.mrb[0].mxu0
    %1131 = vdwg.mxu0
    %v1132 = vadd.f32 %v382, %v1127
    %v1133 = vpack.c.bf16 %v1019, %v1019
    %1135 = vrot.lane.b32.xlu0 %v1133, 64
    %v1136 = vpop.permute.xlu0 %1135
    %v1138 = vsel %vm73, %v1136, 0
    %1140 = vmatprep.subr.bf16.mxu0 0
    %1141 = vmatpush1.bf16.msra.mxu0 %v396
    %1142 = vmatprep.subr.bf16.mxu0 0
    %1143 = vmatpush1.bf16.msra.mxu0 %v397
    %1144 = vmatprep.subr.bf16.mxu0 0
    %1145 = vmatpush1.bf16.msra.mxu0 0
    %1146 = vmatprep.subr.bf16.mxu0 0
    %1147 = vmatpush1.bf16.msra.mxu0 0
    %1148 = vmatprep.subr.bf16.mxu0 0
    %1149 = vmatpush1.bf16.msra.mxu0 0
    %1150 = vmatprep.subr.bf16.mxu0 0
    %1151 = vmatpush1.bf16.msra.mxu0 0
    %1152 = vmatprep.subr.bf16.mxu0 0
    %1153 = vmatpush1.bf16.msra.mxu0 0
    %1154 = vmatprep.subr.bf16.mxu0 0
    %1155 = vmatpush1.bf16.msra.mxu0 0
    %1156 = vmatprep.subr.bf16.mxu0 0
    %1157 = vmatpush1.bf16.msra.mxu0 0
    %1158 = vmatprep.subr.bf16.mxu0 0
    %1159 = vmatpush1.bf16.msra.mxu0 0
    %1160 = vmatprep.subr.bf16.mxu0 0
    %1161 = vmatpush1.bf16.msra.mxu0 0
    %1162 = vmatprep.subr.bf16.mxu0 0
    %1163 = vmatpush1.bf16.msra.mxu0 0
    %1164 = vmatprep.subr.bf16.mxu0 0
    %1165 = vmatpush1.bf16.msra.mxu0 0
    %1166 = vmatprep.subr.bf16.mxu0 0
    %1167 = vmatpush1.bf16.msra.mxu0 0
    %1168 = vmatprep.subr.bf16.mxu0 0
    %1169 = vmatpush1.bf16.msra.mxu0 0
    %1170 = vmatprep.subr.bf16.mxu0 0
    %1171 = vmatpush1.bf16.msra.mxu0 0
    %1172 = vmatprep.mubr.bf16.mxu0 0
    %1173 = vmatmul.mubr.bf16.gmra.mrb[0].mxu0 %v1138
    %v1174 = vpop.f32.mrb[0].mxu0
    %v1175 = vadd.f32 0.0, %v1174
    %v1176 = vpop.f32.mrb[0].mxu0
    %v1177 = vpop.f32.mrb[0].mxu0
    %v1178 = vpop.f32.mrb[0].mxu0
    %1179 = vdwg.mxu0
    %v1180 = vadd.f32 %v1132, %v1175
    %v1181 = vxor.u32 %v1180, 2147483648
    %v1182 = vmul.f32 %v1181, 1.442695
    %v1183 = vpow.pop %v1182
    %v1184 = vadd.f32 %v1183, 1.0
    %v1185 = vrcp.pop %v1184
    %v1186 = vmul.f32 1.0, %v1185
    %v1187 = vtanh.pop %v1180
    %v1188 = vmul.f32 %v1186, %v1013
    %1190 = vrot.lane.b32.xlu0 %v1187, 32
    %v1191 = vpop.permute.xlu0 %1190
    %v1193 = vmul.f32 %v1186, %v1191
    %1195 = vrot.lane.b32.xlu0 %v1193, 32
    %v1196 = vpop.permute.xlu0 %1195
    %v1198 = vadd.f32 %v1188, %v1196
    %v1199 = vtanh.pop %v1198
    %1201 = vrot.lane.b32.xlu0 %v1199, 32
    %v1202 = vpop.permute.xlu0 %1201
    %v1204 = vmul.f32 %v1186, %v1202
    %1205 = vmatprep.subr.bf16.mxu0 0
    %1206 = vmatpush1.bf16.msra.mxu0 %v244
    %1207 = vmatprep.subr.bf16.mxu0 0
    %1208 = vmatpush1.bf16.msra.mxu0 %v245
    %1209 = vmatprep.subr.bf16.mxu0 0
    %1210 = vmatpush1.bf16.msra.mxu0 0
    %1211 = vmatprep.subr.bf16.mxu0 0
    %1212 = vmatpush1.bf16.msra.mxu0 0
    %1213 = vmatprep.subr.bf16.mxu0 0
    %1214 = vmatpush1.bf16.msra.mxu0 0
    %1215 = vmatprep.subr.bf16.mxu0 0
    %1216 = vmatpush1.bf16.msra.mxu0 0
    %1217 = vmatprep.subr.bf16.mxu0 0
    %1218 = vmatpush1.bf16.msra.mxu0 0
    %1219 = vmatprep.subr.bf16.mxu0 0
    %1220 = vmatpush1.bf16.msra.mxu0 0
    %1221 = vmatprep.subr.bf16.mxu0 0
    %1222 = vmatpush1.bf16.msra.mxu0 0
    %1223 = vmatprep.subr.bf16.mxu0 0
    %1224 = vmatpush1.bf16.msra.mxu0 0
    %1225 = vmatprep.subr.bf16.mxu0 0
    %1226 = vmatpush1.bf16.msra.mxu0 0
    %1227 = vmatprep.subr.bf16.mxu0 0
    %1228 = vmatpush1.bf16.msra.mxu0 0
    %1229 = vmatprep.subr.bf16.mxu0 0
    %1230 = vmatpush1.bf16.msra.mxu0 0
    %1231 = vmatprep.subr.bf16.mxu0 0
    %1232 = vmatpush1.bf16.msra.mxu0 0
    %1233 = vmatprep.subr.bf16.mxu0 0
    %1234 = vmatpush1.bf16.msra.mxu0 0
    %1235 = vmatprep.subr.bf16.mxu0 0
    %1236 = vmatpush1.bf16.msra.mxu0 0
    %1237 = vmatprep.mubr.bf16.mxu0 0
    %1238 = vmatmul.mubr.bf16.gmra.mrb[0].mxu0 %v1090
    %v1239 = vpop.f32.mrb[0].mxu0
    %v1240 = vadd.f32 0.0, %v1239
    %v1241 = vpop.f32.mrb[0].mxu0
    %v1242 = vpop.f32.mrb[0].mxu0
    %v1243 = vpop.f32.mrb[0].mxu0
    %1244 = vdwg.mxu0
    %v1245 = vadd.f32 %v140, %v1240
    %v1246 = vxor.u32 %v1245, 2147483648
    %v1247 = vmul.f32 %v1246, 1.442695
    %v1248 = vpow.pop %v1247
    %v1249 = vadd.f32 %v1248, 1.0
    %v1250 = vrcp.pop %v1249
    %v1251 = vmul.f32 1.0, %v1250
    %v1252 = vtanh.pop %v1245
    %v1253 = vmul.f32 %v1251, %v1078
    %1255 = vrot.lane.b32.xlu0 %v1252, 32
    %v1256 = vpop.permute.xlu0 %1255
    %v1258 = vmul.f32 %v1251, %v1256
    %1260 = vrot.lane.b32.xlu0 %v1258, 32
    %v1261 = vpop.permute.xlu0 %1260
    %v1263 = vadd.f32 %v1253, %v1261
    %v1264 = vtanh.pop %v1263
    %1266 = vrot.lane.b32.xlu0 %v1264, 32
    %v1267 = vpop.permute.xlu0 %1266
    %v1269 = vmul.f32 %v1251, %v1267
    %v1270 = vpack.c.bf16 %v1269, %v1269
    %1272 = vrot.lane.b32.xlu0 %v1270, 64
    %v1273 = vpop.permute.xlu0 %1272
    %v1275 = vsel %vm73, %v1273, 0
    %1277 = vmatprep.subr.bf16.mxu0 0
    %1278 = vmatpush1.bf16.msra.mxu0 %v332
    %1279 = vmatprep.subr.bf16.mxu0 0
    %1280 = vmatpush1.bf16.msra.mxu0 %v333
    %1281 = vmatprep.subr.bf16.mxu0 0
    %1282 = vmatpush1.bf16.msra.mxu0 0
    %1283 = vmatprep.subr.bf16.mxu0 0
    %1284 = vmatpush1.bf16.msra.mxu0 0
    %1285 = vmatprep.subr.bf16.mxu0 0
    %1286 = vmatpush1.bf16.msra.mxu0 0
    %1287 = vmatprep.subr.bf16.mxu0 0
    %1288 = vmatpush1.bf16.msra.mxu0 0
    %1289 = vmatprep.subr.bf16.mxu0 0
    %1290 = vmatpush1.bf16.msra.mxu0 0
    %1291 = vmatprep.subr.bf16.mxu0 0
    %1292 = vmatpush1.bf16.msra.mxu0 0
    %1293 = vmatprep.subr.bf16.mxu0 0
    %1294 = vmatpush1.bf16.msra.mxu0 0
    %1295 = vmatprep.subr.bf16.mxu0 0
    %1296 = vmatpush1.bf16.msra.mxu0 0
    %1297 = vmatprep.subr.bf16.mxu0 0
    %1298 = vmatpush1.bf16.msra.mxu0 0
    %1299 = vmatprep.subr.bf16.mxu0 0
    %1300 = vmatpush1.bf16.msra.mxu0 0
    %1301 = vmatprep.subr.bf16.mxu0 0
    %1302 = vmatpush1.bf16.msra.mxu0 0
    %1303 = vmatprep.subr.bf16.mxu0 0
    %1304 = vmatpush1.bf16.msra.mxu0 0
    %1305 = vmatprep.subr.bf16.mxu0 0
    %1306 = vmatpush1.bf16.msra.mxu0 0
    %1307 = vmatprep.subr.bf16.mxu0 0
    %1308 = vmatpush1.bf16.msra.mxu0 0
    %1309 = vmatprep.mubr.bf16.mxu0 0
    %1310 = vmatmul.mubr.bf16.gmra.mrb[0].mxu0 %v1275
    %v1311 = vpop.f32.mrb[0].mxu0
    %v1312 = vadd.f32 0.0, %v1311
    %v1313 = vpop.f32.mrb[0].mxu0
    %v1314 = vpop.f32.mrb[0].mxu0
    %v1315 = vpop.f32.mrb[0].mxu0
    %1316 = vdwg.mxu0
    %v1317 = vadd.f32 %v382, %v1312
    %v1318 = vpack.c.bf16 %v1204, %v1204
    %1320 = vrot.lane.b32.xlu0 %v1318, 64
    %v1321 = vpop.permute.xlu0 %1320
    %v1323 = vsel %vm73, %v1321, 0
    %1325 = vmatprep.subr.bf16.mxu0 0
    %1326 = vmatpush1.bf16.msra.mxu0 %v396
    %1327 = vmatprep.subr.bf16.mxu0 0
    %1328 = vmatpush1.bf16.msra.mxu0 %v397
    %1329 = vmatprep.subr.bf16.mxu0 0
    %1330 = vmatpush1.bf16.msra.mxu0 0
    %1331 = vmatprep.subr.bf16.mxu0 0
    %1332 = vmatpush1.bf16.msra.mxu0 0
    %1333 = vmatprep.subr.bf16.mxu0 0
    %1334 = vmatpush1.bf16.msra.mxu0 0
    %1335 = vmatprep.subr.bf16.mxu0 0
    %1336 = vmatpush1.bf16.msra.mxu0 0
    %1337 = vmatprep.subr.bf16.mxu0 0
    %1338 = vmatpush1.bf16.msra.mxu0 0
    %1339 = vmatprep.subr.bf16.mxu0 0
    %1340 = vmatpush1.bf16.msra.mxu0 0
    %1341 = vmatprep.subr.bf16.mxu0 0
    %1342 = vmatpush1.bf16.msra.mxu0 0
    %1343 = vmatprep.subr.bf16.mxu0 0
    %1344 = vmatpush1.bf16.msra.mxu0 0
    %1345 = vmatprep.subr.bf16.mxu0 0
    %1346 = vmatpush1.bf16.msra.mxu0 0
    %1347 = vmatprep.subr.bf16.mxu0 0
    %1348 = vmatpush1.bf16.msra.mxu0 0
    %1349 = vmatprep.subr.bf16.mxu0 0
    %1350 = vmatpush1.bf16.msra.mxu0 0
    %1351 = vmatprep.subr.bf16.mxu0 0
    %1352 = vmatpush1.bf16.msra.mxu0 0
    %1353 = vmatprep.subr.bf16.mxu0 0
    %1354 = vmatpush1.bf16.msra.mxu0 0
    %1355 = vmatprep.subr.bf16.mxu0 0
    %1356 = vmatpush1.bf16.msra.mxu0 0
    %1357 = vmatprep.mubr.bf16.mxu0 0
    %1358 = vmatmul.mubr.bf16.gmra.mrb[0].mxu0 %v1323
    %v1359 = vpop.f32.mrb[0].mxu0
    %v1360 = vadd.f32 0.0, %v1359
    %v1361 = vpop.f32.mrb[0].mxu0
    %v1362 = vpop.f32.mrb[0].mxu0
    %v1363 = vpop.f32.mrb[0].mxu0
    %1364 = vdwg.mxu0
    %v1365 = vadd.f32 %v1317, %v1360
    %v1366 = vxor.u32 %v1365, 2147483648
    %v1367 = vmul.f32 %v1366, 1.442695
    %v1368 = vpow.pop %v1367
    %v1369 = vadd.f32 %v1368, 1.0
    %v1370 = vrcp.pop %v1369
    %v1371 = vmul.f32 1.0, %v1370
    %v1372 = vtanh.pop %v1365
    %v1373 = vmul.f32 %v1371, %v1198
    %1375 = vrot.lane.b32.xlu0 %v1372, 32
    %v1376 = vpop.permute.xlu0 %1375
    %v1378 = vmul.f32 %v1371, %v1376
    %1380 = vrot.lane.b32.xlu0 %v1378, 32
    %v1381 = vpop.permute.xlu0 %1380
    %v1383 = vadd.f32 %v1373, %v1381
    %v1384 = vtanh.pop %v1383
    %1386 = vrot.lane.b32.xlu0 %v1384, 32
    %v1387 = vpop.permute.xlu0 %1386
    %v1389 = vmul.f32 %v1371, %v1387
    %1390 = vmatprep.subr.bf16.mxu0 0
    %1391 = vmatpush1.bf16.msra.mxu0 %v244
    %1392 = vmatprep.subr.bf16.mxu0 0
    %1393 = vmatpush1.bf16.msra.mxu0 %v245
    %1394 = vmatprep.subr.bf16.mxu0 0
    %1395 = vmatpush1.bf16.msra.mxu0 0
    %1396 = vmatprep.subr.bf16.mxu0 0
    %1397 = vmatpush1.bf16.msra.mxu0 0
    %1398 = vmatprep.subr.bf16.mxu0 0
    %1399 = vmatpush1.bf16.msra.mxu0 0
    %1400 = vmatprep.subr.bf16.mxu0 0
    %1401 = vmatpush1.bf16.msra.mxu0 0
    %1402 = vmatprep.subr.bf16.mxu0 0
    %1403 = vmatpush1.bf16.msra.mxu0 0
    %1404 = vmatprep.subr.bf16.mxu0 0
    %1405 = vmatpush1.bf16.msra.mxu0 0
    %1406 = vmatprep.subr.bf16.mxu0 0
    %1407 = vmatpush1.bf16.msra.mxu0 0
    %1408 = vmatprep.subr.bf16.mxu0 0
    %1409 = vmatpush1.bf16.msra.mxu0 0
    %1410 = vmatprep.subr.bf16.mxu0 0
    %1411 = vmatpush1.bf16.msra.mxu0 0
    %1412 = vmatprep.subr.bf16.mxu0 0
    %1413 = vmatpush1.bf16.msra.mxu0 0
    %1414 = vmatprep.subr.bf16.mxu0 0
    %1415 = vmatpush1.bf16.msra.mxu0 0
    %1416 = vmatprep.subr.bf16.mxu0 0
    %1417 = vmatpush1.bf16.msra.mxu0 0
    %1418 = vmatprep.subr.bf16.mxu0 0
    %1419 = vmatpush1.bf16.msra.mxu0 0
    %1420 = vmatprep.subr.bf16.mxu0 0
    %1421 = vmatpush1.bf16.msra.mxu0 0
    %1422 = vmatprep.mubr.bf16.mxu0 0
    %1423 = vmatmul.mubr.bf16.gmra.mrb[0].mxu0 %v1275
    %v1424 = vpop.f32.mrb[0].mxu0
    %v1425 = vadd.f32 0.0, %v1424
    %v1426 = vpop.f32.mrb[0].mxu0
    %v1427 = vpop.f32.mrb[0].mxu0
    %v1428 = vpop.f32.mrb[0].mxu0
    %1429 = vdwg.mxu0
    %v1430 = vadd.f32 %v145, %v1425
    %v1431 = vxor.u32 %v1430, 2147483648
    %v1432 = vmul.f32 %v1431, 1.442695
    %v1433 = vpow.pop %v1432
    %v1434 = vadd.f32 %v1433, 1.0
    %v1435 = vrcp.pop %v1434
    %v1436 = vmul.f32 1.0, %v1435
    %v1437 = vtanh.pop %v1430
    %v1438 = vmul.f32 %v1436, %v1263
    %1440 = vrot.lane.b32.xlu0 %v1437, 32
    %v1441 = vpop.permute.xlu0 %1440
    %v1443 = vmul.f32 %v1436, %v1441
    %1445 = vrot.lane.b32.xlu0 %v1443, 32
    %v1446 = vpop.permute.xlu0 %1445
    %v1448 = vadd.f32 %v1438, %v1446
    %v1449 = vtanh.pop %v1448
    %1451 = vrot.lane.b32.xlu0 %v1449, 32
    %v1452 = vpop.permute.xlu0 %1451
    %v1454 = vmul.f32 %v1436, %v1452
    %v1455 = vpack.c.bf16 %v1454, %v1454
    %1457 = vrot.lane.b32.xlu0 %v1455, 64
    %v1458 = vpop.permute.xlu0 %1457
    %v1460 = vsel %vm73, %v1458, 0
    %1462 = vmatprep.subr.bf16.mxu0 0
    %1463 = vmatpush1.bf16.msra.mxu0 %v332
    %1464 = vmatprep.subr.bf16.mxu0 0
    %1465 = vmatpush1.bf16.msra.mxu0 %v333
    %1466 = vmatprep.subr.bf16.mxu0 0
    %1467 = vmatpush1.bf16.msra.mxu0 0
    %1468 = vmatprep.subr.bf16.mxu0 0
    %1469 = vmatpush1.bf16.msra.mxu0 0
    %1470 = vmatprep.subr.bf16.mxu0 0
    %1471 = vmatpush1.bf16.msra.mxu0 0
    %1472 = vmatprep.subr.bf16.mxu0 0
    %1473 = vmatpush1.bf16.msra.mxu0 0
    %1474 = vmatprep.subr.bf16.mxu0 0
    %1475 = vmatpush1.bf16.msra.mxu0 0
    %1476 = vmatprep.subr.bf16.mxu0 0
    %1477 = vmatpush1.bf16.msra.mxu0 0
    %1478 = vmatprep.subr.bf16.mxu0 0
    %1479 = vmatpush1.bf16.msra.mxu0 0
    %1480 = vmatprep.subr.bf16.mxu0 0
    %1481 = vmatpush1.bf16.msra.mxu0 0
    %1482 = vmatprep.subr.bf16.mxu0 0
    %1483 = vmatpush1.bf16.msra.mxu0 0
    %1484 = vmatprep.subr.bf16.mxu0 0
    %1485 = vmatpush1.bf16.msra.mxu0 0
    %1486 = vmatprep.subr.bf16.mxu0 0
    %1487 = vmatpush1.bf16.msra.mxu0 0
    %1488 = vmatprep.subr.bf16.mxu0 0
    %1489 = vmatpush1.bf16.msra.mxu0 0
    %1490 = vmatprep.subr.bf16.mxu0 0
    %1491 = vmatpush1.bf16.msra.mxu0 0
    %1492 = vmatprep.subr.bf16.mxu0 0
    %1493 = vmatpush1.bf16.msra.mxu0 0
    %1494 = vmatprep.mubr.bf16.mxu0 0
    %1495 = vmatmul.mubr.bf16.gmra.mrb[0].mxu0 %v1460
    %v1496 = vpop.f32.mrb[0].mxu0
    %v1497 = vadd.f32 0.0, %v1496
    %v1498 = vpop.f32.mrb[0].mxu0
    %v1499 = vpop.f32.mrb[0].mxu0
    %v1500 = vpop.f32.mrb[0].mxu0
    %1501 = vdwg.mxu0
    %v1502 = vadd.f32 %v382, %v1497
    %v1503 = vpack.c.bf16 %v1389, %v1389
    %1505 = vrot.lane.b32.xlu0 %v1503, 64
    %v1506 = vpop.permute.xlu0 %1505
    %v1508 = vsel %vm73, %v1506, 0
    %1510 = vmatprep.subr.bf16.mxu0 0
    %1511 = vmatpush1.bf16.msra.mxu0 %v396
    %1512 = vmatprep.subr.bf16.mxu0 0
    %1513 = vmatpush1.bf16.msra.mxu0 %v397
    %1514 = vmatprep.subr.bf16.mxu0 0
    %1515 = vmatpush1.bf16.msra.mxu0 0
    %1516 = vmatprep.subr.bf16.mxu0 0
    %1517 = vmatpush1.bf16.msra.mxu0 0
    %1518 = vmatprep.subr.bf16.mxu0 0
    %1519 = vmatpush1.bf16.msra.mxu0 0
    %1520 = vmatprep.subr.bf16.mxu0 0
    %1521 = vmatpush1.bf16.msra.mxu0 0
    %1522 = vmatprep.subr.bf16.mxu0 0
    %1523 = vmatpush1.bf16.msra.mxu0 0
    %1524 = vmatprep.subr.bf16.mxu0 0
    %1525 = vmatpush1.bf16.msra.mxu0 0
    %1526 = vmatprep.subr.bf16.mxu0 0
    %1527 = vmatpush1.bf16.msra.mxu0 0
    %1528 = vmatprep.subr.bf16.mxu0 0
    %1529 = vmatpush1.bf16.msra.mxu0 0
    %1530 = vmatprep.subr.bf16.mxu0 0
    %1531 = vmatpush1.bf16.msra.mxu0 0
    %1532 = vmatprep.subr.bf16.mxu0 0
    %1533 = vmatpush1.bf16.msra.mxu0 0
    %1534 = vmatprep.subr.bf16.mxu0 0
    %1535 = vmatpush1.bf16.msra.mxu0 0
    %1536 = vmatprep.subr.bf16.mxu0 0
    %1537 = vmatpush1.bf16.msra.mxu0 0
    %1538 = vmatprep.subr.bf16.mxu0 0
    %1539 = vmatpush1.bf16.msra.mxu0 0
    %1540 = vmatprep.subr.bf16.mxu0 0
    %1541 = vmatpush1.bf16.msra.mxu0 0
    %1542 = vmatprep.mubr.bf16.mxu0 0
    %1543 = vmatmul.mubr.bf16.gmra.mrb[0].mxu0 %v1508
    %v1544 = vpop.f32.mrb[0].mxu0
    %v1545 = vadd.f32 0.0, %v1544
    %v1546 = vpop.f32.mrb[0].mxu0
    %v1547 = vpop.f32.mrb[0].mxu0
    %v1548 = vpop.f32.mrb[0].mxu0
    %1549 = vdwg.mxu0
    %v1550 = vadd.f32 %v1502, %v1545
    %v1551 = vxor.u32 %v1550, 2147483648
    %v1552 = vmul.f32 %v1551, 1.442695
    %v1553 = vpow.pop %v1552
    %v1554 = vadd.f32 %v1553, 1.0
    %v1555 = vrcp.pop %v1554
    %v1556 = vmul.f32 1.0, %v1555
    %v1557 = vtanh.pop %v1550
    %v1558 = vmul.f32 %v1556, %v1383
    %1560 = vrot.lane.b32.xlu0 %v1557, 32
    %v1561 = vpop.permute.xlu0 %1560
    %v1563 = vmul.f32 %v1556, %v1561
    %1565 = vrot.lane.b32.xlu0 %v1563, 32
    %v1566 = vpop.permute.xlu0 %1565
    %v1568 = vadd.f32 %v1558, %v1566
    %v1569 = vtanh.pop %v1568
    %1571 = vrot.lane.b32.xlu0 %v1569, 32
    %v1572 = vpop.permute.xlu0 %1571
    %v1574 = vmul.f32 %v1556, %v1572
    %1575 = vmatprep.subr.bf16.mxu0 0
    %1576 = vmatpush1.bf16.msra.mxu0 %v244
    %1577 = vmatprep.subr.bf16.mxu0 0
    %1578 = vmatpush1.bf16.msra.mxu0 %v245
    %1579 = vmatprep.subr.bf16.mxu0 0
    %1580 = vmatpush1.bf16.msra.mxu0 0
    %1581 = vmatprep.subr.bf16.mxu0 0
    %1582 = vmatpush1.bf16.msra.mxu0 0
    %1583 = vmatprep.subr.bf16.mxu0 0
    %1584 = vmatpush1.bf16.msra.mxu0 0
    %1585 = vmatprep.subr.bf16.mxu0 0
    %1586 = vmatpush1.bf16.msra.mxu0 0
    %1587 = vmatprep.subr.bf16.mxu0 0
    %1588 = vmatpush1.bf16.msra.mxu0 0
    %1589 = vmatprep.subr.bf16.mxu0 0
    %1590 = vmatpush1.bf16.msra.mxu0 0
    %1591 = vmatprep.subr.bf16.mxu0 0
    %1592 = vmatpush1.bf16.msra.mxu0 0
    %1593 = vmatprep.subr.bf16.mxu0 0
    %1594 = vmatpush1.bf16.msra.mxu0 0
    %1595 = vmatprep.subr.bf16.mxu0 0
    %1596 = vmatpush1.bf16.msra.mxu0 0
    %1597 = vmatprep.subr.bf16.mxu0 0
    %1598 = vmatpush1.bf16.msra.mxu0 0
    %1599 = vmatprep.subr.bf16.mxu0 0
    %1600 = vmatpush1.bf16.msra.mxu0 0
    %1601 = vmatprep.subr.bf16.mxu0 0
    %1602 = vmatpush1.bf16.msra.mxu0 0
    %1603 = vmatprep.subr.bf16.mxu0 0
    %1604 = vmatpush1.bf16.msra.mxu0 0
    %1605 = vmatprep.subr.bf16.mxu0 0
    %1606 = vmatpush1.bf16.msra.mxu0 0
    %1607 = vmatprep.mubr.bf16.mxu0 0
    %1608 = vmatmul.mubr.bf16.gmra.mrb[0].mxu0 %v1460
    %v1609 = vpop.f32.mrb[0].mxu0
    %v1610 = vadd.f32 0.0, %v1609
    %v1611 = vpop.f32.mrb[0].mxu0
    %v1612 = vpop.f32.mrb[0].mxu0
    %v1613 = vpop.f32.mrb[0].mxu0
    %1614 = vdwg.mxu0
    %v1615 = vadd.f32 %v148, %v1610
    %v1616 = vxor.u32 %v1615, 2147483648
    %v1617 = vmul.f32 %v1616, 1.442695
    %v1618 = vpow.pop %v1617
    %v1619 = vadd.f32 %v1618, 1.0
    %v1620 = vrcp.pop %v1619
    %v1621 = vmul.f32 1.0, %v1620
    %v1622 = vtanh.pop %v1615
    %v1623 = vmul.f32 %v1621, %v1448
    %1625 = vrot.lane.b32.xlu0 %v1622, 32
    %v1626 = vpop.permute.xlu0 %1625
    %v1628 = vmul.f32 %v1621, %v1626
    %1630 = vrot.lane.b32.xlu0 %v1628, 32
    %v1631 = vpop.permute.xlu0 %1630
    %v1633 = vadd.f32 %v1623, %v1631
    %v1634 = vtanh.pop %v1633
    %1636 = vrot.lane.b32.xlu0 %v1634, 32
    %v1637 = vpop.permute.xlu0 %1636
    %v1639 = vmul.f32 %v1621, %v1637
    %v1640 = vpack.c.bf16 %v1639, %v1639
    %1642 = vrot.lane.b32.xlu0 %v1640, 64
    %v1643 = vpop.permute.xlu0 %1642
    %v1645 = vsel %vm73, %v1643, 0
    %1647 = vmatprep.subr.bf16.mxu0 0
    %1648 = vmatpush1.bf16.msra.mxu0 %v332
    %1649 = vmatprep.subr.bf16.mxu0 0
    %1650 = vmatpush1.bf16.msra.mxu0 %v333
    %1651 = vmatprep.subr.bf16.mxu0 0
    %1652 = vmatpush1.bf16.msra.mxu0 0
    %1653 = vmatprep.subr.bf16.mxu0 0
    %1654 = vmatpush1.bf16.msra.mxu0 0
    %1655 = vmatprep.subr.bf16.mxu0 0
    %1656 = vmatpush1.bf16.msra.mxu0 0
    %1657 = vmatprep.subr.bf16.mxu0 0
    %1658 = vmatpush1.bf16.msra.mxu0 0
    %1659 = vmatprep.subr.bf16.mxu0 0
    %1660 = vmatpush1.bf16.msra.mxu0 0
    %1661 = vmatprep.subr.bf16.mxu0 0
    %1662 = vmatpush1.bf16.msra.mxu0 0
    %1663 = vmatprep.subr.bf16.mxu0 0
    %1664 = vmatpush1.bf16.msra.mxu0 0
    %1665 = vmatprep.subr.bf16.mxu0 0
    %1666 = vmatpush1.bf16.msra.mxu0 0
    %1667 = vmatprep.subr.bf16.mxu0 0
    %1668 = vmatpush1.bf16.msra.mxu0 0
    %1669 = vmatprep.subr.bf16.mxu0 0
    %1670 = vmatpush1.bf16.msra.mxu0 0
    %1671 = vmatprep.subr.bf16.mxu0 0
    %1672 = vmatpush1.bf16.msra.mxu0 0
    %1673 = vmatprep.subr.bf16.mxu0 0
    %1674 = vmatpush1.bf16.msra.mxu0 0
    %1675 = vmatprep.subr.bf16.mxu0 0
    %1676 = vmatpush1.bf16.msra.mxu0 0
    %1677 = vmatprep.subr.bf16.mxu0 0
    %1678 = vmatpush1.bf16.msra.mxu0 0
    %1679 = vmatprep.mubr.bf16.mxu0 0
    %1680 = vmatmul.mubr.bf16.gmra.mrb[0].mxu0 %v1645
    %v1681 = vpop.f32.mrb[0].mxu0
    %v1682 = vadd.f32 0.0, %v1681
    %v1683 = vpop.f32.mrb[0].mxu0
    %v1684 = vpop.f32.mrb[0].mxu0
    %v1685 = vpop.f32.mrb[0].mxu0
    %1686 = vdwg.mxu0
    %v1687 = vadd.f32 %v382, %v1682
    %v1688 = vpack.c.bf16 %v1574, %v1574
    %1690 = vrot.lane.b32.xlu0 %v1688, 64
    %v1691 = vpop.permute.xlu0 %1690
    %v1693 = vsel %vm73, %v1691, 0
    %1695 = vmatprep.subr.bf16.mxu0 0
    %1696 = vmatpush1.bf16.msra.mxu0 %v396
    %1697 = vmatprep.subr.bf16.mxu0 0
    %1698 = vmatpush1.bf16.msra.mxu0 %v397
    %1699 = vmatprep.subr.bf16.mxu0 0
    %1700 = vmatpush1.bf16.msra.mxu0 0
    %1701 = vmatprep.subr.bf16.mxu0 0
    %1702 = vmatpush1.bf16.msra.mxu0 0
    %1703 = vmatprep.subr.bf16.mxu0 0
    %1704 = vmatpush1.bf16.msra.mxu0 0
    %1705 = vmatprep.subr.bf16.mxu0 0
    %1706 = vmatpush1.bf16.msra.mxu0 0
    %1707 = vmatprep.subr.bf16.mxu0 0
    %1708 = vmatpush1.bf16.msra.mxu0 0
    %1709 = vmatprep.subr.bf16.mxu0 0
    %1710 = vmatpush1.bf16.msra.mxu0 0
    %1711 = vmatprep.subr.bf16.mxu0 0
    %1712 = vmatpush1.bf16.msra.mxu0 0
    %1713 = vmatprep.subr.bf16.mxu0 0
    %1714 = vmatpush1.bf16.msra.mxu0 0
    %1715 = vmatprep.subr.bf16.mxu0 0
    %1716 = vmatpush1.bf16.msra.mxu0 0
    %1717 = vmatprep.subr.bf16.mxu0 0
    %1718 = vmatpush1.bf16.msra.mxu0 0
    %1719 = vmatprep.subr.bf16.mxu0 0
    %1720 = vmatpush1.bf16.msra.mxu0 0
    %1721 = vmatprep.subr.bf16.mxu0 0
    %1722 = vmatpush1.bf16.msra.mxu0 0
    %1723 = vmatprep.subr.bf16.mxu0 0
    %1724 = vmatpush1.bf16.msra.mxu0 0
    %1725 = vmatprep.subr.bf16.mxu0 0
    %1726 = vmatpush1.bf16.msra.mxu0 0
    %1727 = vmatprep.mubr.bf16.mxu0 0
    %1728 = vmatmul.mubr.bf16.gmra.mrb[0].mxu0 %v1693
    %v1729 = vpop.f32.mrb[0].mxu0
    %v1730 = vadd.f32 0.0, %v1729
    %v1731 = vpop.f32.mrb[0].mxu0
    %v1732 = vpop.f32.mrb[0].mxu0
    %v1733 = vpop.f32.mrb[0].mxu0
    %1734 = vdwg.mxu0
    %v1735 = vadd.f32 %v1687, %v1730
    %v1736 = vxor.u32 %v1735, 2147483648
    %v1737 = vmul.f32 %v1736, 1.442695
    %v1738 = vpow.pop %v1737
    %v1739 = vadd.f32 %v1738, 1.0
    %v1740 = vrcp.pop %v1739
    %v1741 = vmul.f32 1.0, %v1740
    %v1742 = vtanh.pop %v1735
    %v1743 = vmul.f32 %v1741, %v1568
    %1745 = vrot.lane.b32.xlu0 %v1742, 32
    %v1746 = vpop.permute.xlu0 %1745
    %v1748 = vmul.f32 %v1741, %v1746
    %1750 = vrot.lane.b32.xlu0 %v1748, 32
    %v1751 = vpop.permute.xlu0 %1750
    %v1753 = vadd.f32 %v1743, %v1751
    %v1754 = vtanh.pop %v1753
    %1756 = vrot.lane.b32.xlu0 %v1754, 32
    %v1757 = vpop.permute.xlu0 %1756
    %v1759 = vmul.f32 %v1741, %v1757
    %1761 = vrot.lane.b32.xlu0 %v229, 2
    %v1762 = vpop.permute.xlu0 %1761
    %v1764 = vsub.f32 %v229, %v1762
    %v1765 = vmul.f32 %v1764, 0.5
    %1766 = vrot.lane.b32.xlu0 %v229, 4
    %v1767 = vpop.permute.xlu0 %1766
    %v1769 = vsub.f32 %v229, %v1767
    %v1770 = vmul.f32 %v1769, 0.25
    %1771 = vrot.lane.b32.xlu0 %v229, 123
    %v1772 = vpop.permute.xlu0 %1771
    %1774 = vrot.lane.b32.xlu0 %v229, 125
    %v1775 = vpop.permute.xlu0 %1774
    %1778 = vrot.lane.b32.xlu0 %v1765, 118
    %v1779 = vpop.permute.xlu0 %1778
    %1781 = vrot.lane.b32.xlu0 %v1765, 120
    %v1782 = vpop.permute.xlu0 %1781
    %1784 = vrot.lane.b32.xlu0 %v1765, 123
    %v1785 = vpop.permute.xlu0 %1784
    %1788 = vrot.lane.b32.xlu0 %v1770, 121
    %v1789 = vpop.permute.xlu0 %1788
    %1791 = vrot.lane.b32.xlu0 %v1770, 123
    %v1792 = vpop.permute.xlu0 %1791
    %1794 = vrot.lane.b32.xlu0 %v1770, 126
    %v1795 = vpop.permute.xlu0 %1794
    %1797 = vrot.lane.b32.xlu0 %v229, 8
    %v1798 = vpop.permute.xlu0 %1797
    %vm1800 = vcmask 7168
    %v1801 = vsel %vm1800, %v1772, %v1775
    %vm1802 = vcmask 15360
    %v1803 = vsel %vm1802, %v1801, %v229
    %vm1804 = vcmask 23552
    %v1805 = vsel %vm1804, %v1803, %v1779
    %vm1806 = vcmask 31744
    %v1807 = vsel %vm1806, %v1805, %v1782
    %vm1808 = vcmask 39936
    %v1809 = vsel %vm1808, %v1807, %v1785
    %vm1810 = vcmask 48128
    %v1811 = vsel %vm1810, %v1809, %v1789
    %vm1812 = vcmask 56320
    %v1813 = vsel %vm1812, %v1811, %v1792
    %vm1814 = vcmask 64512
    %v1815 = vsel %vm1814, %v1813, %v1795
    %vm1816 = vcmask 72704
    %v1817 = vsel %vm1816, %v1815, %v1798
    %vm1818 = vcmask 80896
    %v1819 = vsel %vm1818, %v1817, 0.0
    %v1820 = vpack.c.bf16 %v1819, %v1819
    %v1821 = vld [vmem:[%s3 + $0x48] sm:$0xf]
    %v1822 = vld [vmem:[%s3 + $0x4c] sm:$0xf]
    %v1825 = vunpack.c.l.b16 %v1821
    %v1826 = vunpack.c.l.b16 %v1822
    %v1827 = vpack.c.b16 %v1826, %v1825
    %v1830 = vsel %vm173, %v1820, 0
    %1832 = vmatprep.subr.bf16.mxu0 0
    %1833 = vmatpush1.bf16.msra.mxu0 %v1827
    %1834 = vmatprep.subr.bf16.mxu0 0
    %1835 = vmatpush1.bf16.msra.mxu0 0
    %1836 = vmatprep.subr.bf16.mxu0 0
    %1837 = vmatpush1.bf16.msra.mxu0 0
    %1838 = vmatprep.subr.bf16.mxu0 0
    %1839 = vmatpush1.bf16.msra.mxu0 0
    %1840 = vmatprep.subr.bf16.mxu0 0
    %1841 = vmatpush1.bf16.msra.mxu0 0
    %1842 = vmatprep.subr.bf16.mxu0 0
    %1843 = vmatpush1.bf16.msra.mxu0 0
    %1844 = vmatprep.subr.bf16.mxu0 0
    %1845 = vmatpush1.bf16.msra.mxu0 0
    %1846 = vmatprep.subr.bf16.mxu0 0
    %1847 = vmatpush1.bf16.msra.mxu0 0
    %1848 = vmatprep.subr.bf16.mxu0 0
    %1849 = vmatpush1.bf16.msra.mxu0 0
    %1850 = vmatprep.subr.bf16.mxu0 0
    %1851 = vmatpush1.bf16.msra.mxu0 0
    %1852 = vmatprep.subr.bf16.mxu0 0
    %1853 = vmatpush1.bf16.msra.mxu0 0
    %1854 = vmatprep.subr.bf16.mxu0 0
    %1855 = vmatpush1.bf16.msra.mxu0 0
    %1856 = vmatprep.subr.bf16.mxu0 0
    %1857 = vmatpush1.bf16.msra.mxu0 0
    %1858 = vmatprep.subr.bf16.mxu0 0
    %1859 = vmatpush1.bf16.msra.mxu0 0
    %1860 = vmatprep.subr.bf16.mxu0 0
    %1861 = vmatpush1.bf16.msra.mxu0 0
    %1862 = vmatprep.subr.bf16.mxu0 0
    %1863 = vmatpush1.bf16.msra.mxu0 0
    %1864 = vmatprep.mubr.bf16.mxu0 0
    %1865 = vmatmul.mubr.bf16.gmra.mrb[0].mxu0 %v1830
    %v1866 = vpop.f32.mrb[0].mxu0
    %v1867 = vadd.f32 0.0, %v1866
    %v1868 = vpop.f32.mrb[0].mxu0
    %v1869 = vpop.f32.mrb[0].mxu0
    %v1870 = vpop.f32.mrb[0].mxu0
    %1871 = vdwg.mxu0
    %v1872 = vadd.f32 %v215, %v1867
    %1873 = vmatprep.subr.bf16.mxu0 0
    %1874 = vmatpush1.bf16.msra.mxu0 %v244
    %1875 = vmatprep.subr.bf16.mxu0 0
    %1876 = vmatpush1.bf16.msra.mxu0 %v245
    %1877 = vmatprep.subr.bf16.mxu0 0
    %1878 = vmatpush1.bf16.msra.mxu0 0
    %1879 = vmatprep.subr.bf16.mxu0 0
    %1880 = vmatpush1.bf16.msra.mxu0 0
    %1881 = vmatprep.subr.bf16.mxu0 0
    %1882 = vmatpush1.bf16.msra.mxu0 0
    %1883 = vmatprep.subr.bf16.mxu0 0
    %1884 = vmatpush1.bf16.msra.mxu0 0
    %1885 = vmatprep.subr.bf16.mxu0 0
    %1886 = vmatpush1.bf16.msra.mxu0 0
    %1887 = vmatprep.subr.bf16.mxu0 0
    %1888 = vmatpush1.bf16.msra.mxu0 0
    %1889 = vmatprep.subr.bf16.mxu0 0
    %1890 = vmatpush1.bf16.msra.mxu0 0
    %1891 = vmatprep.subr.bf16.mxu0 0
    %1892 = vmatpush1.bf16.msra.mxu0 0
    %1893 = vmatprep.subr.bf16.mxu0 0
    %1894 = vmatpush1.bf16.msra.mxu0 0
    %1895 = vmatprep.subr.bf16.mxu0 0
    %1896 = vmatpush1.bf16.msra.mxu0 0
    %1897 = vmatprep.subr.bf16.mxu0 0
    %1898 = vmatpush1.bf16.msra.mxu0 0
    %1899 = vmatprep.subr.bf16.mxu0 0
    %1900 = vmatpush1.bf16.msra.mxu0 0
    %1901 = vmatprep.subr.bf16.mxu0 0
    %1902 = vmatpush1.bf16.msra.mxu0 0
    %1903 = vmatprep.subr.bf16.mxu0 0
    %1904 = vmatpush1.bf16.msra.mxu0 0
    %1905 = vmatprep.mubr.bf16.mxu0 0
    %1906 = vmatmul.mubr.bf16.gmra.mrb[0].mxu0 %v1645
    %v1907 = vpop.f32.mrb[0].mxu0
    %v1908 = vadd.f32 0.0, %v1907
    %v1909 = vpop.f32.mrb[0].mxu0
    %v1910 = vpop.f32.mrb[0].mxu0
    %v1911 = vpop.f32.mrb[0].mxu0
    %1912 = vdwg.mxu0
    %v1913 = vadd.f32 %v1872, %v1908
    %v1914 = vxor.u32 %v1913, 2147483648
    %v1915 = vmul.f32 %v1914, 1.442695
    %v1916 = vpow.pop %v1915
    %v1917 = vadd.f32 %v1916, 1.0
    %v1918 = vrcp.pop %v1917
    %v1919 = vmul.f32 1.0, %v1918
    %v1920 = vtanh.pop %v1913
    %v1921 = vmul.f32 %v1919, %v1633
    %1923 = vrot.lane.b32.xlu0 %v1920, 32
    %v1924 = vpop.permute.xlu0 %1923
    %v1926 = vmul.f32 %v1919, %v1924
    %1928 = vrot.lane.b32.xlu0 %v1926, 32
    %v1929 = vpop.permute.xlu0 %1928
    %v1931 = vadd.f32 %v1921, %v1929
    %v1932 = vtanh.pop %v1931
    %1934 = vrot.lane.b32.xlu0 %v1932, 32
    %v1935 = vpop.permute.xlu0 %1934
    %v1937 = vmul.f32 %v1919, %v1935
    %v1938 = vpack.c.bf16 %v1937, %v1937
    %1940 = vrot.lane.b32.xlu0 %v1938, 64
    %v1941 = vpop.permute.xlu0 %1940
    %v1943 = vsel %vm73, %v1941, 0
    %1945 = vmatprep.subr.bf16.mxu0 0
    %1946 = vmatpush1.bf16.msra.mxu0 %v332
    %1947 = vmatprep.subr.bf16.mxu0 0
    %1948 = vmatpush1.bf16.msra.mxu0 %v333
    %1949 = vmatprep.subr.bf16.mxu0 0
    %1950 = vmatpush1.bf16.msra.mxu0 0
    %1951 = vmatprep.subr.bf16.mxu0 0
    %1952 = vmatpush1.bf16.msra.mxu0 0
    %1953 = vmatprep.subr.bf16.mxu0 0
    %1954 = vmatpush1.bf16.msra.mxu0 0
    %1955 = vmatprep.subr.bf16.mxu0 0
    %1956 = vmatpush1.bf16.msra.mxu0 0
    %1957 = vmatprep.subr.bf16.mxu0 0
    %1958 = vmatpush1.bf16.msra.mxu0 0
    %1959 = vmatprep.subr.bf16.mxu0 0
    %1960 = vmatpush1.bf16.msra.mxu0 0
    %1961 = vmatprep.subr.bf16.mxu0 0
    %1962 = vmatpush1.bf16.msra.mxu0 0
    %1963 = vmatprep.subr.bf16.mxu0 0
    %1964 = vmatpush1.bf16.msra.mxu0 0
    %1965 = vmatprep.subr.bf16.mxu0 0
    %1966 = vmatpush1.bf16.msra.mxu0 0
    %1967 = vmatprep.subr.bf16.mxu0 0
    %1968 = vmatpush1.bf16.msra.mxu0 0
    %1969 = vmatprep.subr.bf16.mxu0 0
    %1970 = vmatpush1.bf16.msra.mxu0 0
    %1971 = vmatprep.subr.bf16.mxu0 0
    %1972 = vmatpush1.bf16.msra.mxu0 0
    %1973 = vmatprep.subr.bf16.mxu0 0
    %1974 = vmatpush1.bf16.msra.mxu0 0
    %1975 = vmatprep.subr.bf16.mxu0 0
    %1976 = vmatpush1.bf16.msra.mxu0 0
    %1977 = vmatprep.mubr.bf16.mxu0 0
    %1978 = vmatmul.mubr.bf16.gmra.mrb[0].mxu0 %v1943
    %v1979 = vpop.f32.mrb[0].mxu0
    %v1980 = vadd.f32 0.0, %v1979
    %v1981 = vpop.f32.mrb[0].mxu0
    %v1982 = vpop.f32.mrb[0].mxu0
    %v1983 = vpop.f32.mrb[0].mxu0
    %1984 = vdwg.mxu0
    %v1985 = vadd.f32 %v382, %v1980
    %v1986 = vpack.c.bf16 %v1759, %v1759
    %1988 = vrot.lane.b32.xlu0 %v1986, 64
    %v1989 = vpop.permute.xlu0 %1988
    %v1991 = vsel %vm73, %v1989, 0
    %1993 = vmatprep.subr.bf16.mxu0 0
    %1994 = vmatpush1.bf16.msra.mxu0 %v396
    %1995 = vmatprep.subr.bf16.mxu0 0
    %1996 = vmatpush1.bf16.msra.mxu0 %v397
    %1997 = vmatprep.subr.bf16.mxu0 0
    %1998 = vmatpush1.bf16.msra.mxu0 0
    %1999 = vmatprep.subr.bf16.mxu0 0
    %2000 = vmatpush1.bf16.msra.mxu0 0
    %2001 = vmatprep.subr.bf16.mxu0 0
    %2002 = vmatpush1.bf16.msra.mxu0 0
    %2003 = vmatprep.subr.bf16.mxu0 0
    %2004 = vmatpush1.bf16.msra.mxu0 0
    %2005 = vmatprep.subr.bf16.mxu0 0
    %2006 = vmatpush1.bf16.msra.mxu0 0
    %2007 = vmatprep.subr.bf16.mxu0 0
    %2008 = vmatpush1.bf16.msra.mxu0 0
    %2009 = vmatprep.subr.bf16.mxu0 0
    %2010 = vmatpush1.bf16.msra.mxu0 0
    %2011 = vmatprep.subr.bf16.mxu0 0
    %2012 = vmatpush1.bf16.msra.mxu0 0
    %2013 = vmatprep.subr.bf16.mxu0 0
    %2014 = vmatpush1.bf16.msra.mxu0 0
    %2015 = vmatprep.subr.bf16.mxu0 0
    %2016 = vmatpush1.bf16.msra.mxu0 0
    %2017 = vmatprep.subr.bf16.mxu0 0
    %2018 = vmatpush1.bf16.msra.mxu0 0
    %2019 = vmatprep.subr.bf16.mxu0 0
    %2020 = vmatpush1.bf16.msra.mxu0 0
    %2021 = vmatprep.subr.bf16.mxu0 0
    %2022 = vmatpush1.bf16.msra.mxu0 0
    %2023 = vmatprep.subr.bf16.mxu0 0
    %2024 = vmatpush1.bf16.msra.mxu0 0
    %2025 = vmatprep.mubr.bf16.mxu0 0
    %2026 = vmatmul.mubr.bf16.gmra.mrb[0].mxu0 %v1991
    %v2027 = vpop.f32.mrb[0].mxu0
    %v2028 = vadd.f32 0.0, %v2027
    %v2029 = vpop.f32.mrb[0].mxu0
    %v2030 = vpop.f32.mrb[0].mxu0
    %v2031 = vpop.f32.mrb[0].mxu0
    %2032 = vdwg.mxu0
    %v2033 = vadd.f32 %v1985, %v2028
    %v2034 = vxor.u32 %v2033, 2147483648
    %v2035 = vmul.f32 %v2034, 1.442695
    %v2036 = vpow.pop %v2035
    %v2037 = vadd.f32 %v2036, 1.0
    %v2038 = vrcp.pop %v2037
    %v2039 = vmul.f32 1.0, %v2038
    %v2040 = vtanh.pop %v2033
    %v2041 = vmul.f32 %v2039, %v1753
    %2043 = vrot.lane.b32.xlu0 %v2040, 32
    %v2044 = vpop.permute.xlu0 %2043
    %v2046 = vmul.f32 %v2039, %v2044
    %2048 = vrot.lane.b32.xlu0 %v2046, 32
    %v2049 = vpop.permute.xlu0 %2048
    %v2051 = vadd.f32 %v2041, %v2049
    %v2052 = vtanh.pop %v2051
    %2054 = vrot.lane.b32.xlu0 %v2052, 32
    %v2055 = vpop.permute.xlu0 %2054
    %v2057 = vmul.f32 %v2039, %v2055
    %v2058 = vpack.c.bf16 %v2057, %v2057
    %v2059 = vld [vmem:[%s3 + $0x50] sm:$0xf]
    %v2060 = vld [vmem:[%s3 + $0x54] sm:$0xf]
    %v2061 = vld [vmem:[%s3 + $0x58] sm:$0xf]
    %v2062 = vld [vmem:[%s3 + $0x5c] sm:$0xf]
    %v2063 = vlaneseq
    %v2064 = vshrl.u32 %v2063, 7
    %v2065 = vsub.s32 0, %v2064
    %v2066 = vrot.slane %v24, %v2065
    %2068 = vrot.lane.b32.xlu0 %v2058, 64
    %v2069 = vpop.permute.xlu0 %2068
    %v2074 = vunpack.c.l.b16 %v2059
    %v2075 = vunpack.c.l.b16 %v2060
    %v2076 = vunpack.c.l.b16 %v2061
    %v2077 = vunpack.c.l.b16 %v2062
    %v2078 = vpack.c.b16 %v2075, %v2074
    %v2079 = vpack.c.b16 %v2077, %v2076
    %v2083 = vsel %vm73, %v2069, 0
    %2085 = vmatprep.subr.bf16.mxu0 0
    %2086 = vmatpush1.bf16.msra.mxu0 %v2078
    %2087 = vmatprep.subr.bf16.mxu0 0
    %2088 = vmatpush1.bf16.msra.mxu0 %v2079
    %2089 = vmatprep.subr.bf16.mxu0 0
    %2090 = vmatpush1.bf16.msra.mxu0 0
    %2091 = vmatprep.subr.bf16.mxu0 0
    %2092 = vmatpush1.bf16.msra.mxu0 0
    %2093 = vmatprep.subr.bf16.mxu0 0
    %2094 = vmatpush1.bf16.msra.mxu0 0
    %2095 = vmatprep.subr.bf16.mxu0 0
    %2096 = vmatpush1.bf16.msra.mxu0 0
    %2097 = vmatprep.subr.bf16.mxu0 0
    %2098 = vmatpush1.bf16.msra.mxu0 0
    %2099 = vmatprep.subr.bf16.mxu0 0
    %2100 = vmatpush1.bf16.msra.mxu0 0
    %2101 = vmatprep.subr.bf16.mxu0 0
    %2102 = vmatpush1.bf16.msra.mxu0 0
    %2103 = vmatprep.subr.bf16.mxu0 0
    %2104 = vmatpush1.bf16.msra.mxu0 0
    %2105 = vmatprep.subr.bf16.mxu0 0
    %2106 = vmatpush1.bf16.msra.mxu0 0
    %2107 = vmatprep.subr.bf16.mxu0 0
    %2108 = vmatpush1.bf16.msra.mxu0 0
    %2109 = vmatprep.subr.bf16.mxu0 0
    %2110 = vmatpush1.bf16.msra.mxu0 0
    %2111 = vmatprep.subr.bf16.mxu0 0
    %2112 = vmatpush1.bf16.msra.mxu0 0
    %2113 = vmatprep.subr.bf16.mxu0 0
    %2114 = vmatpush1.bf16.msra.mxu0 0
    %2115 = vmatprep.subr.bf16.mxu0 0
    %2116 = vmatpush1.bf16.msra.mxu0 0
    %2117 = vmatprep.mubr.bf16.mxu0 0
    %2118 = vmatmul.mubr.bf16.gmra.mrb[0].mxu0 %v2083
    %v2119 = vpop.f32.mrb[0].mxu0
    %v2120 = vadd.f32 %v2066, %v2119
    %v2121 = vpop.f32.mrb[0].mxu0
    %v2122 = vpop.f32.mrb[0].mxu0
    %v2123 = vpop.f32.mrb[0].mxu0
    %2124 = vdwg.mxu0
    %v2125 = vmax.f32 %v2120, 0.0
    %vm2126 = vcmp.ne.f32.partialorder %v2120, %v2120
    %v2127 = vadd.f32 %v2120, 0.0
    %v2128 = vand.u32 2147483647, %v2120
    %v2129 = vsub.f32 0.0, %v2128
    %v2130 = vmul.f32 %v2129, 1.442695
    %v2131 = vpow.pop %v2130
    %v2132 = vadd.f32 %v2131, 1.0
    %v2133 = vlog2.pop %v2132
    %v2134 = vmul.f32 %v2133, 0.6931472
    %v2135 = vmul.f32 -0.5, %v2131
    %v2136 = vadd.f32 %v2135, 1.0
    %v2137 = vmul.f32 %v2136, %v2131
    %v2138 = vand.u32 2147483647, %v2131
    %vm2139 = vcmp.lt.f32.partialorder %v2138, 0.0004427343
    %v2140 = vsel %vm2139, %v2137, %v2134
    %v2141 = vadd.f32 %v2125, %v2140
    %v2142 = vsel %vm2126, %v2127, %v2141
    %2143 = vrot.lane.b32.xlu0 %v229, 115
    %v2144 = vpop.permute.xlu0 %2143
    %v2146 = vmul.f32 %v2142, %v2144
    %2148 = vrot.lane.b32.xlu0 %v2146, 127
    %v2149 = vpop.permute.xlu0 %2148
    %v2151 = vadd.f32 %v2120, %v2149
    %2153 = vrot.lane.b32.xlu0 %v2151, 13
    %v2154 = vpop.permute.xlu0 %2153
    %v2156 = vadd.f32 %v229, %v2154
    %vm2157 = vcmp.gt.f32.partialorder %v2151, %v231
    %v2158 = vadd.f32 %v229, 1.0
    %2160 = vrot.lane.b32.xlu0 %v2158, 127
    %v2161 = vpop.permute.xlu0 %2160
    %v2163 = vsel %vm2157, 0.0, %v2161
    %2164 = vrot.lane.b32.xlu0 %v229, 1
    %v2165 = vpop.permute.xlu0 %2164
    %v2167 = vsub.f32 %v2156, %v2165
    %v2168 = vmul.f32 %v2167, 0.5
    %2169 = vrot.lane.b32.xlu0 %v229, 3
    %v2170 = vpop.permute.xlu0 %2169
    %v2172 = vsub.f32 %v2156, %v2170
    %v2173 = vmul.f32 %v2172, 0.25
    %2174 = vrot.lane.b32.xlu0 %v229, 124
    %v2175 = vpop.permute.xlu0 %2174
    %2177 = vrot.lane.b32.xlu0 %v229, 127
    %v2178 = vpop.permute.xlu0 %2177
    %2181 = vrot.lane.b32.xlu0 %v2168, 118
    %v2182 = vpop.permute.xlu0 %2181
    %2184 = vrot.lane.b32.xlu0 %v1765, 119
    %v2185 = vpop.permute.xlu0 %2184
    %2187 = vrot.lane.b32.xlu0 %v1765, 122
    %v2188 = vpop.permute.xlu0 %2187
    %2191 = vrot.lane.b32.xlu0 %v2173, 121
    %v2192 = vpop.permute.xlu0 %2191
    %2194 = vrot.lane.b32.xlu0 %v1770, 122
    %v2195 = vpop.permute.xlu0 %2194
    %2197 = vrot.lane.b32.xlu0 %v1770, 125
    %v2198 = vpop.permute.xlu0 %2197
    %2201 = vrot.lane.b32.xlu0 %v2163, 9
    %v2202 = vpop.permute.xlu0 %2201
    %v2204 = vsel %vm1800, %v2151, %v2175
    %v2205 = vsel %vm1802, %v2204, %v2178
    %v2206 = vsel %vm1804, %v2205, %v2182
    %v2207 = vsel %vm1806, %v2206, %v2185
    %v2208 = vsel %vm1808, %v2207, %v2188
    %v2209 = vsel %vm1810, %v2208, %v2192
    %v2210 = vsel %vm1812, %v2209, %v2195
    %v2211 = vsel %vm1814, %v2210, %v2198
    %v2212 = vsel %vm1816, %v2211, %v2202
    %v2213 = vsel %vm1818, %v2212, 0.0
    %v2214 = vpack.c.bf16 %v2213, %v2213
    %v2216 = vsel %vm173, %v2214, 0
    %2218 = vmatprep.subr.bf16.mxu0 0
    %2219 = vmatpush1.bf16.msra.mxu0 %v1827
    %2220 = vmatprep.subr.bf16.mxu0 0
    %2221 = vmatpush1.bf16.msra.mxu0 0
    %2222 = vmatprep.subr.bf16.mxu0 0
    %2223 = vmatpush1.bf16.msra.mxu0 0
    %2224 = vmatprep.subr.bf16.mxu0 0
    %2225 = vmatpush1.bf16.msra.mxu0 0
    %2226 = vmatprep.subr.bf16.mxu0 0
    %2227 = vmatpush1.bf16.msra.mxu0 0
    %2228 = vmatprep.subr.bf16.mxu0 0
    %2229 = vmatpush1.bf16.msra.mxu0 0
    %2230 = vmatprep.subr.bf16.mxu0 0
    %2231 = vmatpush1.bf16.msra.mxu0 0
    %2232 = vmatprep.subr.bf16.mxu0 0
    %2233 = vmatpush1.bf16.msra.mxu0 0
    %2234 = vmatprep.subr.bf16.mxu0 0
    %2235 = vmatpush1.bf16.msra.mxu0 0
    %2236 = vmatprep.subr.bf16.mxu0 0
    %2237 = vmatpush1.bf16.msra.mxu0 0
    %2238 = vmatprep.subr.bf16.mxu0 0
    %2239 = vmatpush1.bf16.msra.mxu0 0
    %2240 = vmatprep.subr.bf16.mxu0 0
    %2241 = vmatpush1.bf16.msra.mxu0 0
    %2242 = vmatprep.subr.bf16.mxu0 0
    %2243 = vmatpush1.bf16.msra.mxu0 0
    %2244 = vmatprep.subr.bf16.mxu0 0
    %2245 = vmatpush1.bf16.msra.mxu0 0
    %2246 = vmatprep.subr.bf16.mxu0 0
    %2247 = vmatpush1.bf16.msra.mxu0 0
    %2248 = vmatprep.subr.bf16.mxu0 0
    %2249 = vmatpush1.bf16.msra.mxu0 0
    %2250 = vmatprep.mubr.bf16.mxu0 0
    %2251 = vmatmul.mubr.bf16.gmra.mrb[0].mxu0 %v2216
    %v2252 = vpop.f32.mrb[0].mxu0
    %v2253 = vadd.f32 0.0, %v2252
    %v2254 = vpop.f32.mrb[0].mxu0
    %v2255 = vpop.f32.mrb[0].mxu0
    %v2256 = vpop.f32.mrb[0].mxu0
    %2257 = vdwg.mxu0
    %v2258 = vadd.f32 %v218, %v2253
    %2259 = vmatprep.subr.bf16.mxu0 0
    %2260 = vmatpush1.bf16.msra.mxu0 %v244
    %2261 = vmatprep.subr.bf16.mxu0 0
    %2262 = vmatpush1.bf16.msra.mxu0 %v245
    %2263 = vmatprep.subr.bf16.mxu0 0
    %2264 = vmatpush1.bf16.msra.mxu0 0
    %2265 = vmatprep.subr.bf16.mxu0 0
    %2266 = vmatpush1.bf16.msra.mxu0 0
    %2267 = vmatprep.subr.bf16.mxu0 0
    %2268 = vmatpush1.bf16.msra.mxu0 0
    %2269 = vmatprep.subr.bf16.mxu0 0
    %2270 = vmatpush1.bf16.msra.mxu0 0
    %2271 = vmatprep.subr.bf16.mxu0 0
    %2272 = vmatpush1.bf16.msra.mxu0 0
    %2273 = vmatprep.subr.bf16.mxu0 0
    %2274 = vmatpush1.bf16.msra.mxu0 0
    %2275 = vmatprep.subr.bf16.mxu0 0
    %2276 = vmatpush1.bf16.msra.mxu0 0
    %2277 = vmatprep.subr.bf16.mxu0 0
    %2278 = vmatpush1.bf16.msra.mxu0 0
    %2279 = vmatprep.subr.bf16.mxu0 0
    %2280 = vmatpush1.bf16.msra.mxu0 0
    %2281 = vmatprep.subr.bf16.mxu0 0
    %2282 = vmatpush1.bf16.msra.mxu0 0
    %2283 = vmatprep.subr.bf16.mxu0 0
    %2284 = vmatpush1.bf16.msra.mxu0 0
    %2285 = vmatprep.subr.bf16.mxu0 0
    %2286 = vmatpush1.bf16.msra.mxu0 0
    %2287 = vmatprep.subr.bf16.mxu0 0
    %2288 = vmatpush1.bf16.msra.mxu0 0
    %2289 = vmatprep.subr.bf16.mxu0 0
    %2290 = vmatpush1.bf16.msra.mxu0 0
    %2291 = vmatprep.mubr.bf16.mxu0 0
    %2292 = vmatmul.mubr.bf16.gmra.mrb[0].mxu0 %v1943
    %v2293 = vpop.f32.mrb[0].mxu0
    %v2294 = vadd.f32 0.0, %v2293
    %v2295 = vpop.f32.mrb[0].mxu0
    %v2296 = vpop.f32.mrb[0].mxu0
    %v2297 = vpop.f32.mrb[0].mxu0
    %2298 = vdwg.mxu0
    %v2299 = vadd.f32 %v2258, %v2294
    %v2300 = vxor.u32 %v2299, 2147483648
    %v2301 = vmul.f32 %v2300, 1.442695
    %v2302 = vpow.pop %v2301
    %v2303 = vadd.f32 %v2302, 1.0
    %v2304 = vrcp.pop %v2303
    %v2305 = vmul.f32 1.0, %v2304
    %v2306 = vtanh.pop %v2299
    %v2307 = vmul.f32 %v2305, %v1931
    %2309 = vrot.lane.b32.xlu0 %v2306, 32
    %v2310 = vpop.permute.xlu0 %2309
    %v2312 = vmul.f32 %v2305, %v2310
    %2314 = vrot.lane.b32.xlu0 %v2312, 32
    %v2315 = vpop.permute.xlu0 %2314
    %v2317 = vadd.f32 %v2307, %v2315
    %v2318 = vtanh.pop %v2317
    %2320 = vrot.lane.b32.xlu0 %v2318, 32
    %v2321 = vpop.permute.xlu0 %2320
    %v2323 = vmul.f32 %v2305, %v2321
    %v2324 = vpack.c.bf16 %v2323, %v2323
    %2326 = vrot.lane.b32.xlu0 %v2324, 64
    %v2327 = vpop.permute.xlu0 %2326
    %v2329 = vsel %vm73, %v2327, 0
    %2331 = vmatprep.subr.bf16.mxu0 0
    %2332 = vmatpush1.bf16.msra.mxu0 %v332
    %2333 = vmatprep.subr.bf16.mxu0 0
    %2334 = vmatpush1.bf16.msra.mxu0 %v333
    %2335 = vmatprep.subr.bf16.mxu0 0
    %2336 = vmatpush1.bf16.msra.mxu0 0
    %2337 = vmatprep.subr.bf16.mxu0 0
    %2338 = vmatpush1.bf16.msra.mxu0 0
    %2339 = vmatprep.subr.bf16.mxu0 0
    %2340 = vmatpush1.bf16.msra.mxu0 0
    %2341 = vmatprep.subr.bf16.mxu0 0
    %2342 = vmatpush1.bf16.msra.mxu0 0
    %2343 = vmatprep.subr.bf16.mxu0 0
    %2344 = vmatpush1.bf16.msra.mxu0 0
    %2345 = vmatprep.subr.bf16.mxu0 0
    %2346 = vmatpush1.bf16.msra.mxu0 0
    %2347 = vmatprep.subr.bf16.mxu0 0
    %2348 = vmatpush1.bf16.msra.mxu0 0
    %2349 = vmatprep.subr.bf16.mxu0 0
    %2350 = vmatpush1.bf16.msra.mxu0 0
    %2351 = vmatprep.subr.bf16.mxu0 0
    %2352 = vmatpush1.bf16.msra.mxu0 0
    %2353 = vmatprep.subr.bf16.mxu0 0
    %2354 = vmatpush1.bf16.msra.mxu0 0
    %2355 = vmatprep.subr.bf16.mxu0 0
    %2356 = vmatpush1.bf16.msra.mxu0 0
    %2357 = vmatprep.subr.bf16.mxu0 0
    %2358 = vmatpush1.bf16.msra.mxu0 0
    %2359 = vmatprep.subr.bf16.mxu0 0
    %2360 = vmatpush1.bf16.msra.mxu0 0
    %2361 = vmatprep.subr.bf16.mxu0 0
    %2362 = vmatpush1.bf16.msra.mxu0 0
    %2363 = vmatprep.mubr.bf16.mxu0 0
    %2364 = vmatmul.mubr.bf16.gmra.mrb[0].mxu0 %v2329
    %v2365 = vpop.f32.mrb[0].mxu0
    %v2366 = vadd.f32 0.0, %v2365
    %v2367 = vpop.f32.mrb[0].mxu0
    %v2368 = vpop.f32.mrb[0].mxu0
    %v2369 = vpop.f32.mrb[0].mxu0
    %2370 = vdwg.mxu0
    %v2371 = vadd.f32 %v382, %v2366
    %2372 = vmatprep.subr.bf16.mxu0 0
    %2373 = vmatpush1.bf16.msra.mxu0 %v396
    %2374 = vmatprep.subr.bf16.mxu0 0
    %2375 = vmatpush1.bf16.msra.mxu0 %v397
    %2376 = vmatprep.subr.bf16.mxu0 0
    %2377 = vmatpush1.bf16.msra.mxu0 0
    %2378 = vmatprep.subr.bf16.mxu0 0
    %2379 = vmatpush1.bf16.msra.mxu0 0
    %2380 = vmatprep.subr.bf16.mxu0 0
    %2381 = vmatpush1.bf16.msra.mxu0 0
    %2382 = vmatprep.subr.bf16.mxu0 0
    %2383 = vmatpush1.bf16.msra.mxu0 0
    %2384 = vmatprep.subr.bf16.mxu0 0
    %2385 = vmatpush1.bf16.msra.mxu0 0
    %2386 = vmatprep.subr.bf16.mxu0 0
    %2387 = vmatpush1.bf16.msra.mxu0 0
    %2388 = vmatprep.subr.bf16.mxu0 0
    %2389 = vmatpush1.bf16.msra.mxu0 0
    %2390 = vmatprep.subr.bf16.mxu0 0
    %2391 = vmatpush1.bf16.msra.mxu0 0
    %2392 = vmatprep.subr.bf16.mxu0 0
    %2393 = vmatpush1.bf16.msra.mxu0 0
    %2394 = vmatprep.subr.bf16.mxu0 0
    %2395 = vmatpush1.bf16.msra.mxu0 0
    %2396 = vmatprep.subr.bf16.mxu0 0
    %2397 = vmatpush1.bf16.msra.mxu0 0
    %2398 = vmatprep.subr.bf16.mxu0 0
    %2399 = vmatpush1.bf16.msra.mxu0 0
    %2400 = vmatprep.subr.bf16.mxu0 0
    %2401 = vmatpush1.bf16.msra.mxu0 0
    %2402 = vmatprep.subr.bf16.mxu0 0
    %2403 = vmatpush1.bf16.msra.mxu0 0
    %2404 = vmatprep.mubr.bf16.mxu0 0
    %2405 = vmatmul.mubr.bf16.gmra.mrb[0].mxu0 %v2083
    %v2406 = vpop.f32.mrb[0].mxu0
    %v2407 = vadd.f32 0.0, %v2406
    %v2408 = vpop.f32.mrb[0].mxu0
    %v2409 = vpop.f32.mrb[0].mxu0
    %v2410 = vpop.f32.mrb[0].mxu0
    %2411 = vdwg.mxu0
    %v2412 = vadd.f32 %v2371, %v2407
    %v2413 = vxor.u32 %v2412, 2147483648
    %v2414 = vmul.f32 %v2413, 1.442695
    %v2415 = vpow.pop %v2414
    %v2416 = vadd.f32 %v2415, 1.0
    %v2417 = vrcp.pop %v2416
    %v2418 = vmul.f32 1.0, %v2417
    %v2419 = vtanh.pop %v2412
    %v2420 = vmul.f32 %v2418, %v2051
    %2422 = vrot.lane.b32.xlu0 %v2419, 32
    %v2423 = vpop.permute.xlu0 %2422
    %v2425 = vmul.f32 %v2418, %v2423
    %2427 = vrot.lane.b32.xlu0 %v2425, 32
    %v2428 = vpop.permute.xlu0 %2427
    %v2430 = vadd.f32 %v2420, %v2428
    %v2431 = vtanh.pop %v2430
    %2433 = vrot.lane.b32.xlu0 %v2431, 32
    %v2434 = vpop.permute.xlu0 %2433
    %v2436 = vmul.f32 %v2418, %v2434
    %v2437 = vpack.c.bf16 %v2436, %v2436
    %2439 = vrot.lane.b32.xlu0 %v2437, 64
    %v2440 = vpop.permute.xlu0 %2439
    %v2442 = vsel %vm73, %v2440, 0
    %2444 = vmatprep.subr.bf16.mxu0 0
    %2445 = vmatpush1.bf16.msra.mxu0 %v2078
    %2446 = vmatprep.subr.bf16.mxu0 0
    %2447 = vmatpush1.bf16.msra.mxu0 %v2079
    %2448 = vmatprep.subr.bf16.mxu0 0
    %2449 = vmatpush1.bf16.msra.mxu0 0
    %2450 = vmatprep.subr.bf16.mxu0 0
    %2451 = vmatpush1.bf16.msra.mxu0 0
    %2452 = vmatprep.subr.bf16.mxu0 0
    %2453 = vmatpush1.bf16.msra.mxu0 0
    %2454 = vmatprep.subr.bf16.mxu0 0
    %2455 = vmatpush1.bf16.msra.mxu0 0
    %2456 = vmatprep.subr.bf16.mxu0 0
    %2457 = vmatpush1.bf16.msra.mxu0 0
    %2458 = vmatprep.subr.bf16.mxu0 0
    %2459 = vmatpush1.bf16.msra.mxu0 0
    %2460 = vmatprep.subr.bf16.mxu0 0
    %2461 = vmatpush1.bf16.msra.mxu0 0
    %2462 = vmatprep.subr.bf16.mxu0 0
    %2463 = vmatpush1.bf16.msra.mxu0 0
    %2464 = vmatprep.subr.bf16.mxu0 0
    %2465 = vmatpush1.bf16.msra.mxu0 0
    %2466 = vmatprep.subr.bf16.mxu0 0
    %2467 = vmatpush1.bf16.msra.mxu0 0
    %2468 = vmatprep.subr.bf16.mxu0 0
    %2469 = vmatpush1.bf16.msra.mxu0 0
    %2470 = vmatprep.subr.bf16.mxu0 0
    %2471 = vmatpush1.bf16.msra.mxu0 0
    %2472 = vmatprep.subr.bf16.mxu0 0
    %2473 = vmatpush1.bf16.msra.mxu0 0
    %2474 = vmatprep.subr.bf16.mxu0 0
    %2475 = vmatpush1.bf16.msra.mxu0 0
    %2476 = vmatprep.mubr.bf16.mxu0 0
    %2477 = vmatmul.mubr.bf16.gmra.mrb[0].mxu0 %v2442
    %v2478 = vpop.f32.mrb[0].mxu0
    %v2479 = vadd.f32 %v2066, %v2478
    %v2480 = vpop.f32.mrb[0].mxu0
    %v2481 = vpop.f32.mrb[0].mxu0
    %v2482 = vpop.f32.mrb[0].mxu0
    %2483 = vdwg.mxu0
    %v2484 = vmax.f32 %v2479, 0.0
    %vm2485 = vcmp.ne.f32.partialorder %v2479, %v2479
    %v2486 = vadd.f32 %v2479, 0.0
    %v2487 = vand.u32 2147483647, %v2479
    %v2488 = vsub.f32 0.0, %v2487
    %v2489 = vmul.f32 %v2488, 1.442695
    %v2490 = vpow.pop %v2489
    %v2491 = vadd.f32 %v2490, 1.0
    %v2492 = vlog2.pop %v2491
    %v2493 = vmul.f32 %v2492, 0.6931472
    %v2494 = vmul.f32 -0.5, %v2490
    %v2495 = vadd.f32 %v2494, 1.0
    %v2496 = vmul.f32 %v2495, %v2490
    %v2497 = vand.u32 2147483647, %v2490
    %vm2498 = vcmp.lt.f32.partialorder %v2497, 0.0004427343
    %v2499 = vsel %vm2498, %v2496, %v2493
    %v2500 = vadd.f32 %v2484, %v2499
    %v2501 = vsel %vm2485, %v2486, %v2500
    %2502 = vrot.lane.b32.xlu0 %v229, 114
    %v2503 = vpop.permute.xlu0 %2502
    %v2505 = vmul.f32 %v2501, %v2503
    %2507 = vrot.lane.b32.xlu0 %v2505, 127
    %v2508 = vpop.permute.xlu0 %2507
    %v2510 = vadd.f32 %v2479, %v2508
    %2512 = vrot.lane.b32.xlu0 %v2510, 13
    %v2513 = vpop.permute.xlu0 %2512
    %v2515 = vadd.f32 %v2156, %v2513
    %vm2516 = vcmp.gt.f32.partialorder %v2510, %v231
    %v2517 = vadd.f32 %v2163, 1.0
    %v2518 = vsel %vm2516, 0.0, %v2517
    %v2519 = vsub.f32 %v2515, %v229
    %v2520 = vmul.f32 %v2519, 0.5
    %v2521 = vsub.f32 %v2515, %v1762
    %v2522 = vmul.f32 %v2521, 0.25
    %2523 = vrot.lane.b32.xlu0 %v2151, 1
    %v2524 = vpop.permute.xlu0 %2523
    %2526 = vrot.lane.b32.xlu0 %v229, 126
    %v2527 = vpop.permute.xlu0 %2526
    %2530 = vrot.lane.b32.xlu0 %v2520, 118
    %v2531 = vpop.permute.xlu0 %2530
    %2533 = vrot.lane.b32.xlu0 %v2168, 119
    %v2534 = vpop.permute.xlu0 %2533
    %2536 = vrot.lane.b32.xlu0 %v1765, 121
    %v2537 = vpop.permute.xlu0 %2536
    %2540 = vrot.lane.b32.xlu0 %v2522, 121
    %v2541 = vpop.permute.xlu0 %2540
    %2543 = vrot.lane.b32.xlu0 %v2173, 122
    %v2544 = vpop.permute.xlu0 %2543
    %2546 = vrot.lane.b32.xlu0 %v1770, 124
    %v2547 = vpop.permute.xlu0 %2546
    %2550 = vrot.lane.b32.xlu0 %v2518, 9
    %v2551 = vpop.permute.xlu0 %2550
    %v2553 = vsel %vm1800, %v2510, %v2524
    %v2554 = vsel %vm1802, %v2553, %v2527
    %v2555 = vsel %vm1804, %v2554, %v2531
    %v2556 = vsel %vm1806, %v2555, %v2534
    %v2557 = vsel %vm1808, %v2556, %v2537
    %v2558 = vsel %vm1810, %v2557, %v2541
    %v2559 = vsel %vm1812, %v2558, %v2544
    %v2560 = vsel %vm1814, %v2559, %v2547
    %v2561 = vsel %vm1816, %v2560, %v2551
    %v2562 = vsel %vm1818, %v2561, 0.0
    %v2563 = vpack.c.bf16 %v2562, %v2562
    %v2565 = vsel %vm173, %v2563, 0
    %2567 = vmatprep.subr.bf16.mxu0 0
    %2568 = vmatpush1.bf16.msra.mxu0 %v1827
    %2569 = vmatprep.subr.bf16.mxu0 0
    %2570 = vmatpush1.bf16.msra.mxu0 0
    %2571 = vmatprep.subr.bf16.mxu0 0
    %2572 = vmatpush1.bf16.msra.mxu0 0
    %2573 = vmatprep.subr.bf16.mxu0 0
    %2574 = vmatpush1.bf16.msra.mxu0 0
    %2575 = vmatprep.subr.bf16.mxu0 0
    %2576 = vmatpush1.bf16.msra.mxu0 0
    %2577 = vmatprep.subr.bf16.mxu0 0
    %2578 = vmatpush1.bf16.msra.mxu0 0
    %2579 = vmatprep.subr.bf16.mxu0 0
    %2580 = vmatpush1.bf16.msra.mxu0 0
    %2581 = vmatprep.subr.bf16.mxu0 0
    %2582 = vmatpush1.bf16.msra.mxu0 0
    %2583 = vmatprep.subr.bf16.mxu0 0
    %2584 = vmatpush1.bf16.msra.mxu0 0
    %2585 = vmatprep.subr.bf16.mxu0 0
    %2586 = vmatpush1.bf16.msra.mxu0 0
    %2587 = vmatprep.subr.bf16.mxu0 0
    %2588 = vmatpush1.bf16.msra.mxu0 0
    %2589 = vmatprep.subr.bf16.mxu0 0
    %2590 = vmatpush1.bf16.msra.mxu0 0
    %2591 = vmatprep.subr.bf16.mxu0 0
    %2592 = vmatpush1.bf16.msra.mxu0 0
    %2593 = vmatprep.subr.bf16.mxu0 0
    %2594 = vmatpush1.bf16.msra.mxu0 0
    %2595 = vmatprep.subr.bf16.mxu0 0
    %2596 = vmatpush1.bf16.msra.mxu0 0
    %2597 = vmatprep.subr.bf16.mxu0 0
    %2598 = vmatpush1.bf16.msra.mxu0 0
    %2599 = vmatprep.mubr.bf16.mxu0 0
    %2600 = vmatmul.mubr.bf16.gmra.mrb[0].mxu0 %v2565
    %v2601 = vpop.f32.mrb[0].mxu0
    %v2602 = vadd.f32 0.0, %v2601
    %v2603 = vpop.f32.mrb[0].mxu0
    %v2604 = vpop.f32.mrb[0].mxu0
    %v2605 = vpop.f32.mrb[0].mxu0
    %2606 = vdwg.mxu0
    %v2607 = vadd.f32 %v223, %v2602
    %2608 = vmatprep.subr.bf16.mxu0 0
    %2609 = vmatpush1.bf16.msra.mxu0 %v244
    %2610 = vmatprep.subr.bf16.mxu0 0
    %2611 = vmatpush1.bf16.msra.mxu0 %v245
    %2612 = vmatprep.subr.bf16.mxu0 0
    %2613 = vmatpush1.bf16.msra.mxu0 0
    %2614 = vmatprep.subr.bf16.mxu0 0
    %2615 = vmatpush1.bf16.msra.mxu0 0
    %2616 = vmatprep.subr.bf16.mxu0 0
    %2617 = vmatpush1.bf16.msra.mxu0 0
    %2618 = vmatprep.subr.bf16.mxu0 0
    %2619 = vmatpush1.bf16.msra.mxu0 0
    %2620 = vmatprep.subr.bf16.mxu0 0
    %2621 = vmatpush1.bf16.msra.mxu0 0
    %2622 = vmatprep.subr.bf16.mxu0 0
    %2623 = vmatpush1.bf16.msra.mxu0 0
    %2624 = vmatprep.subr.bf16.mxu0 0
    %2625 = vmatpush1.bf16.msra.mxu0 0
    %2626 = vmatprep.subr.bf16.mxu0 0
    %2627 = vmatpush1.bf16.msra.mxu0 0
    %2628 = vmatprep.subr.bf16.mxu0 0
    %2629 = vmatpush1.bf16.msra.mxu0 0
    %2630 = vmatprep.subr.bf16.mxu0 0
    %2631 = vmatpush1.bf16.msra.mxu0 0
    %2632 = vmatprep.subr.bf16.mxu0 0
    %2633 = vmatpush1.bf16.msra.mxu0 0
    %2634 = vmatprep.subr.bf16.mxu0 0
    %2635 = vmatpush1.bf16.msra.mxu0 0
    %2636 = vmatprep.subr.bf16.mxu0 0
    %2637 = vmatpush1.bf16.msra.mxu0 0
    %2638 = vmatprep.subr.bf16.mxu0 0
    %2639 = vmatpush1.bf16.msra.mxu0 0
    %2640 = vmatprep.mubr.bf16.mxu0 0
    %2641 = vmatmul.mubr.bf16.gmra.mrb[0].mxu0 %v2329
    %v2642 = vpop.f32.mrb[0].mxu0
    %v2643 = vadd.f32 0.0, %v2642
    %v2644 = vpop.f32.mrb[0].mxu0
    %v2645 = vpop.f32.mrb[0].mxu0
    %v2646 = vpop.f32.mrb[0].mxu0
    %2647 = vdwg.mxu0
    %v2648 = vadd.f32 %v2607, %v2643
    %v2649 = vxor.u32 %v2648, 2147483648
    %v2650 = vmul.f32 %v2649, 1.442695
    %v2651 = vpow.pop %v2650
    %v2652 = vadd.f32 %v2651, 1.0
    %v2653 = vrcp.pop %v2652
    %v2654 = vmul.f32 1.0, %v2653
    %v2655 = vtanh.pop %v2648
    %v2656 = vmul.f32 %v2654, %v2317
    %2658 = vrot.lane.b32.xlu0 %v2655, 32
    %v2659 = vpop.permute.xlu0 %2658
    %v2661 = vmul.f32 %v2654, %v2659
    %2663 = vrot.lane.b32.xlu0 %v2661, 32
    %v2664 = vpop.permute.xlu0 %2663
    %v2666 = vadd.f32 %v2656, %v2664
    %v2667 = vtanh.pop %v2666
    %2669 = vrot.lane.b32.xlu0 %v2667, 32
    %v2670 = vpop.permute.xlu0 %2669
    %v2672 = vmul.f32 %v2654, %v2670
    %v2673 = vpack.c.bf16 %v2672, %v2672
    %2675 = vrot.lane.b32.xlu0 %v2673, 64
    %v2676 = vpop.permute.xlu0 %2675
    %v2678 = vsel %vm73, %v2676, 0
    %2680 = vmatprep.subr.bf16.mxu0 0
    %2681 = vmatpush1.bf16.msra.mxu0 %v332
    %2682 = vmatprep.subr.bf16.mxu0 0
    %2683 = vmatpush1.bf16.msra.mxu0 %v333
    %2684 = vmatprep.subr.bf16.mxu0 0
    %2685 = vmatpush1.bf16.msra.mxu0 0
    %2686 = vmatprep.subr.bf16.mxu0 0
    %2687 = vmatpush1.bf16.msra.mxu0 0
    %2688 = vmatprep.subr.bf16.mxu0 0
    %2689 = vmatpush1.bf16.msra.mxu0 0
    %2690 = vmatprep.subr.bf16.mxu0 0
    %2691 = vmatpush1.bf16.msra.mxu0 0
    %2692 = vmatprep.subr.bf16.mxu0 0
    %2693 = vmatpush1.bf16.msra.mxu0 0
    %2694 = vmatprep.subr.bf16.mxu0 0
    %2695 = vmatpush1.bf16.msra.mxu0 0
    %2696 = vmatprep.subr.bf16.mxu0 0
    %2697 = vmatpush1.bf16.msra.mxu0 0
    %2698 = vmatprep.subr.bf16.mxu0 0
    %2699 = vmatpush1.bf16.msra.mxu0 0
    %2700 = vmatprep.subr.bf16.mxu0 0
    %2701 = vmatpush1.bf16.msra.mxu0 0
    %2702 = vmatprep.subr.bf16.mxu0 0
    %2703 = vmatpush1.bf16.msra.mxu0 0
    %2704 = vmatprep.subr.bf16.mxu0 0
    %2705 = vmatpush1.bf16.msra.mxu0 0
    %2706 = vmatprep.subr.bf16.mxu0 0
    %2707 = vmatpush1.bf16.msra.mxu0 0
    %2708 = vmatprep.subr.bf16.mxu0 0
    %2709 = vmatpush1.bf16.msra.mxu0 0
    %2710 = vmatprep.subr.bf16.mxu0 0
    %2711 = vmatpush1.bf16.msra.mxu0 0
    %2712 = vmatprep.mubr.bf16.mxu0 0
    %2713 = vmatmul.mubr.bf16.gmra.mrb[0].mxu0 %v2678
    %v2714 = vpop.f32.mrb[0].mxu0
    %v2715 = vadd.f32 0.0, %v2714
    %v2716 = vpop.f32.mrb[0].mxu0
    %v2717 = vpop.f32.mrb[0].mxu0
    %v2718 = vpop.f32.mrb[0].mxu0
    %2719 = vdwg.mxu0
    %v2720 = vadd.f32 %v382, %v2715
    %2721 = vmatprep.subr.bf16.mxu0 0
    %2722 = vmatpush1.bf16.msra.mxu0 %v396
    %2723 = vmatprep.subr.bf16.mxu0 0
    %2724 = vmatpush1.bf16.msra.mxu0 %v397
    %2725 = vmatprep.subr.bf16.mxu0 0
    %2726 = vmatpush1.bf16.msra.mxu0 0
    %2727 = vmatprep.subr.bf16.mxu0 0
    %2728 = vmatpush1.bf16.msra.mxu0 0
    %2729 = vmatprep.subr.bf16.mxu0 0
    %2730 = vmatpush1.bf16.msra.mxu0 0
    %2731 = vmatprep.subr.bf16.mxu0 0
    %2732 = vmatpush1.bf16.msra.mxu0 0
    %2733 = vmatprep.subr.bf16.mxu0 0
    %2734 = vmatpush1.bf16.msra.mxu0 0
    %2735 = vmatprep.subr.bf16.mxu0 0
    %2736 = vmatpush1.bf16.msra.mxu0 0
    %2737 = vmatprep.subr.bf16.mxu0 0
    %2738 = vmatpush1.bf16.msra.mxu0 0
    %2739 = vmatprep.subr.bf16.mxu0 0
    %2740 = vmatpush1.bf16.msra.mxu0 0
    %2741 = vmatprep.subr.bf16.mxu0 0
    %2742 = vmatpush1.bf16.msra.mxu0 0
    %2743 = vmatprep.subr.bf16.mxu0 0
    %2744 = vmatpush1.bf16.msra.mxu0 0
    %2745 = vmatprep.subr.bf16.mxu0 0
    %2746 = vmatpush1.bf16.msra.mxu0 0
    %2747 = vmatprep.subr.bf16.mxu0 0
    %2748 = vmatpush1.bf16.msra.mxu0 0
    %2749 = vmatprep.subr.bf16.mxu0 0
    %2750 = vmatpush1.bf16.msra.mxu0 0
    %2751 = vmatprep.subr.bf16.mxu0 0
    %2752 = vmatpush1.bf16.msra.mxu0 0
    %2753 = vmatprep.mubr.bf16.mxu0 0
    %2754 = vmatmul.mubr.bf16.gmra.mrb[0].mxu0 %v2442
    %v2755 = vpop.f32.mrb[0].mxu0
    %v2756 = vadd.f32 0.0, %v2755
    %v2757 = vpop.f32.mrb[0].mxu0
    %v2758 = vpop.f32.mrb[0].mxu0
    %v2759 = vpop.f32.mrb[0].mxu0
    %2760 = vdwg.mxu0
    %v2761 = vadd.f32 %v2720, %v2756
    %v2762 = vxor.u32 %v2761, 2147483648
    %v2763 = vmul.f32 %v2762, 1.442695
    %v2764 = vpow.pop %v2763
    %v2765 = vadd.f32 %v2764, 1.0
    %v2766 = vrcp.pop %v2765
    %v2767 = vmul.f32 1.0, %v2766
    %v2768 = vtanh.pop %v2761
    %v2769 = vmul.f32 %v2767, %v2430
    %2771 = vrot.lane.b32.xlu0 %v2768, 32
    %v2772 = vpop.permute.xlu0 %2771
    %v2774 = vmul.f32 %v2767, %v2772
    %2776 = vrot.lane.b32.xlu0 %v2774, 32
    %v2777 = vpop.permute.xlu0 %2776
    %v2779 = vadd.f32 %v2769, %v2777
    %v2780 = vtanh.pop %v2779
    %2782 = vrot.lane.b32.xlu0 %v2780, 32
    %v2783 = vpop.permute.xlu0 %2782
    %v2785 = vmul.f32 %v2767, %v2783
    %v2786 = vpack.c.bf16 %v2785, %v2785
    %2788 = vrot.lane.b32.xlu0 %v2786, 64
    %v2789 = vpop.permute.xlu0 %2788
    %v2791 = vsel %vm73, %v2789, 0
    %2793 = vmatprep.subr.bf16.mxu0 0
    %2794 = vmatpush1.bf16.msra.mxu0 %v2078
    %2795 = vmatprep.subr.bf16.mxu0 0
    %2796 = vmatpush1.bf16.msra.mxu0 %v2079
    %2797 = vmatprep.subr.bf16.mxu0 0
    %2798 = vmatpush1.bf16.msra.mxu0 0
    %2799 = vmatprep.subr.bf16.mxu0 0
    %2800 = vmatpush1.bf16.msra.mxu0 0
    %2801 = vmatprep.subr.bf16.mxu0 0
    %2802 = vmatpush1.bf16.msra.mxu0 0
    %2803 = vmatprep.subr.bf16.mxu0 0
    %2804 = vmatpush1.bf16.msra.mxu0 0
    %2805 = vmatprep.subr.bf16.mxu0 0
    %2806 = vmatpush1.bf16.msra.mxu0 0
    %2807 = vmatprep.subr.bf16.mxu0 0
    %2808 = vmatpush1.bf16.msra.mxu0 0
    %2809 = vmatprep.subr.bf16.mxu0 0
    %2810 = vmatpush1.bf16.msra.mxu0 0
    %2811 = vmatprep.subr.bf16.mxu0 0
    %2812 = vmatpush1.bf16.msra.mxu0 0
    %2813 = vmatprep.subr.bf16.mxu0 0
    %2814 = vmatpush1.bf16.msra.mxu0 0
    %2815 = vmatprep.subr.bf16.mxu0 0
    %2816 = vmatpush1.bf16.msra.mxu0 0
    %2817 = vmatprep.subr.bf16.mxu0 0
    %2818 = vmatpush1.bf16.msra.mxu0 0
    %2819 = vmatprep.subr.bf16.mxu0 0
    %2820 = vmatpush1.bf16.msra.mxu0 0
    %2821 = vmatprep.subr.bf16.mxu0 0
    %2822 = vmatpush1.bf16.msra.mxu0 0
    %2823 = vmatprep.subr.bf16.mxu0 0
    %2824 = vmatpush1.bf16.msra.mxu0 0
    %2825 = vmatprep.mubr.bf16.mxu0 0
    %2826 = vmatmul.mubr.bf16.gmra.mrb[0].mxu0 %v2791
    %v2827 = vpop.f32.mrb[0].mxu0
    %v2828 = vadd.f32 %v2066, %v2827
    %v2829 = vpop.f32.mrb[0].mxu0
    %v2830 = vpop.f32.mrb[0].mxu0
    %v2831 = vpop.f32.mrb[0].mxu0
    %2832 = vdwg.mxu0
    %v2833 = vmax.f32 %v2828, 0.0
    %vm2834 = vcmp.ne.f32.partialorder %v2828, %v2828
    %v2835 = vadd.f32 %v2828, 0.0
    %v2836 = vand.u32 2147483647, %v2828
    %v2837 = vsub.f32 0.0, %v2836
    %v2838 = vmul.f32 %v2837, 1.442695
    %v2839 = vpow.pop %v2838
    %v2840 = vadd.f32 %v2839, 1.0
    %v2841 = vlog2.pop %v2840
    %v2842 = vmul.f32 %v2841, 0.6931472
    %v2843 = vmul.f32 -0.5, %v2839
    %v2844 = vadd.f32 %v2843, 1.0
    %v2845 = vmul.f32 %v2844, %v2839
    %v2846 = vand.u32 2147483647, %v2839
    %vm2847 = vcmp.lt.f32.partialorder %v2846, 0.0004427343
    %v2848 = vsel %vm2847, %v2845, %v2842
    %v2849 = vadd.f32 %v2833, %v2848
    %v2850 = vsel %vm2834, %v2835, %v2849
    %2851 = vrot.lane.b32.xlu0 %v229, 113
    %v2852 = vpop.permute.xlu0 %2851
    %v2854 = vmul.f32 %v2850, %v2852
    %2856 = vrot.lane.b32.xlu0 %v2854, 127
    %v2857 = vpop.permute.xlu0 %2856
    %v2859 = vadd.f32 %v2828, %v2857
    %2861 = vrot.lane.b32.xlu0 %v2859, 13
    %v2862 = vpop.permute.xlu0 %2861
    %v2864 = vadd.f32 %v2515, %v2862
    %vm2865 = vcmp.gt.f32.partialorder %v2859, %v231
    %v2866 = vadd.f32 %v2518, 1.0
    %v2867 = vsel %vm2865, 0.0, %v2866
    %v2868 = vsub.f32 %v2864, %v2156
    %v2869 = vmul.f32 %v2868, 0.5
    %v2870 = vsub.f32 %v2864, %v2165
    %v2871 = vmul.f32 %v2870, 0.25
    %2872 = vrot.lane.b32.xlu0 %v2510, 1
    %v2873 = vpop.permute.xlu0 %2872
    %2876 = vrot.lane.b32.xlu0 %v2869, 118
    %v2877 = vpop.permute.xlu0 %2876
    %2879 = vrot.lane.b32.xlu0 %v2520, 119
    %v2880 = vpop.permute.xlu0 %2879
    %2883 = vrot.lane.b32.xlu0 %v2871, 121
    %v2884 = vpop.permute.xlu0 %2883
    %2886 = vrot.lane.b32.xlu0 %v2522, 122
    %v2887 = vpop.permute.xlu0 %2886
    %2890 = vrot.lane.b32.xlu0 %v2867, 9
    %v2891 = vpop.permute.xlu0 %2890
    %v2893 = vsel %vm1800, %v2859, %v2873
    %v2894 = vsel %vm1802, %v2893, %v1775
    %v2895 = vsel %vm1804, %v2894, %v2877
    %v2896 = vsel %vm1806, %v2895, %v2880
    %v2897 = vsel %vm1808, %v2896, %v1782
    %v2898 = vsel %vm1810, %v2897, %v2884
    %v2899 = vsel %vm1812, %v2898, %v2887
    %v2900 = vsel %vm1814, %v2899, %v1792
    %v2901 = vsel %vm1816, %v2900, %v2891
    %v2902 = vsel %vm1818, %v2901, 0.0
    %v2903 = vpack.c.bf16 %v2902, %v2902
    %v2905 = vsel %vm173, %v2903, 0
    %2907 = vmatprep.subr.bf16.mxu0 0
    %2908 = vmatpush1.bf16.msra.mxu0 %v1827
    %2909 = vmatprep.subr.bf16.mxu0 0
    %2910 = vmatpush1.bf16.msra.mxu0 0
    %2911 = vmatprep.subr.bf16.mxu0 0
    %2912 = vmatpush1.bf16.msra.mxu0 0
    %2913 = vmatprep.subr.bf16.mxu0 0
    %2914 = vmatpush1.bf16.msra.mxu0 0
    %2915 = vmatprep.subr.bf16.mxu0 0
    %2916 = vmatpush1.bf16.msra.mxu0 0
    %2917 = vmatprep.subr.bf16.mxu0 0
    %2918 = vmatpush1.bf16.msra.mxu0 0
    %2919 = vmatprep.subr.bf16.mxu0 0
    %2920 = vmatpush1.bf16.msra.mxu0 0
    %2921 = vmatprep.subr.bf16.mxu0 0
    %2922 = vmatpush1.bf16.msra.mxu0 0
    %2923 = vmatprep.subr.bf16.mxu0 0
    %2924 = vmatpush1.bf16.msra.mxu0 0
    %2925 = vmatprep.subr.bf16.mxu0 0
    %2926 = vmatpush1.bf16.msra.mxu0 0
    %2927 = vmatprep.subr.bf16.mxu0 0
    %2928 = vmatpush1.bf16.msra.mxu0 0
    %2929 = vmatprep.subr.bf16.mxu0 0
    %2930 = vmatpush1.bf16.msra.mxu0 0
    %2931 = vmatprep.subr.bf16.mxu0 0
    %2932 = vmatpush1.bf16.msra.mxu0 0
    %2933 = vmatprep.subr.bf16.mxu0 0
    %2934 = vmatpush1.bf16.msra.mxu0 0
    %2935 = vmatprep.subr.bf16.mxu0 0
    %2936 = vmatpush1.bf16.msra.mxu0 0
    %2937 = vmatprep.subr.bf16.mxu0 0
    %2938 = vmatpush1.bf16.msra.mxu0 0
    %2939 = vmatprep.mubr.bf16.mxu0 0
    %2940 = vmatmul.mubr.bf16.gmra.mrb[0].mxu0 %v2905
    %v2941 = vpop.f32.mrb[0].mxu0
    %v2942 = vadd.f32 0.0, %v2941
    %v2943 = vpop.f32.mrb[0].mxu0
    %v2944 = vpop.f32.mrb[0].mxu0
    %v2945 = vpop.f32.mrb[0].mxu0
    %2946 = vdwg.mxu0
    %v2947 = vadd.f32 %v226, %v2942
    %2948 = vmatprep.subr.bf16.mxu0 0
    %2949 = vmatpush1.bf16.msra.mxu0 %v244
    %2950 = vmatprep.subr.bf16.mxu0 0
    %2951 = vmatpush1.bf16.msra.mxu0 %v245
    %2952 = vmatprep.subr.bf16.mxu0 0
    %2953 = vmatpush1.bf16.msra.mxu0 0
    %2954 = vmatprep.subr.bf16.mxu0 0
    %2955 = vmatpush1.bf16.msra.mxu0 0
    %2956 = vmatprep.subr.bf16.mxu0 0
    %2957 = vmatpush1.bf16.msra.mxu0 0
    %2958 = vmatprep.subr.bf16.mxu0 0
    %2959 = vmatpush1.bf16.msra.mxu0 0
    %2960 = vmatprep.subr.bf16.mxu0 0
    %2961 = vmatpush1.bf16.msra.mxu0 0
    %2962 = vmatprep.subr.bf16.mxu0 0
    %2963 = vmatpush1.bf16.msra.mxu0 0
    %2964 = vmatprep.subr.bf16.mxu0 0
    %2965 = vmatpush1.bf16.msra.mxu0 0
    %2966 = vmatprep.subr.bf16.mxu0 0
    %2967 = vmatpush1.bf16.msra.mxu0 0
    %2968 = vmatprep.subr.bf16.mxu0 0
    %2969 = vmatpush1.bf16.msra.mxu0 0
    %2970 = vmatprep.subr.bf16.mxu0 0
    %2971 = vmatpush1.bf16.msra.mxu0 0
    %2972 = vmatprep.subr.bf16.mxu0 0
    %2973 = vmatpush1.bf16.msra.mxu0 0
    %2974 = vmatprep.subr.bf16.mxu0 0
    %2975 = vmatpush1.bf16.msra.mxu0 0
    %2976 = vmatprep.subr.bf16.mxu0 0
    %2977 = vmatpush1.bf16.msra.mxu0 0
    %2978 = vmatprep.subr.bf16.mxu0 0
    %2979 = vmatpush1.bf16.msra.mxu0 0
    %2980 = vmatprep.mubr.bf16.mxu0 0
    %2981 = vmatmul.mubr.bf16.gmra.mrb[0].mxu0 %v2678
    %v2982 = vpop.f32.mrb[0].mxu0
    %v2983 = vadd.f32 0.0, %v2982
    %v2984 = vpop.f32.mrb[0].mxu0
    %v2985 = vpop.f32.mrb[0].mxu0
    %v2986 = vpop.f32.mrb[0].mxu0
    %2987 = vdwg.mxu0
    %v2988 = vadd.f32 %v2947, %v2983
    %v2989 = vxor.u32 %v2988, 2147483648
    %v2990 = vmul.f32 %v2989, 1.442695
    %v2991 = vpow.pop %v2990
    %v2992 = vadd.f32 %v2991, 1.0
    %v2993 = vrcp.pop %v2992
    %v2994 = vmul.f32 1.0, %v2993
    %v2995 = vtanh.pop %v2988
    %v2996 = vmul.f32 %v2994, %v2666
    %2998 = vrot.lane.b32.xlu0 %v2995, 32
    %v2999 = vpop.permute.xlu0 %2998
    %v3001 = vmul.f32 %v2994, %v2999
    %3003 = vrot.lane.b32.xlu0 %v3001, 32
    %v3004 = vpop.permute.xlu0 %3003
    %v3006 = vadd.f32 %v2996, %v3004
    %v3007 = vtanh.pop %v3006
    %3009 = vrot.lane.b32.xlu0 %v3007, 32
    %v3010 = vpop.permute.xlu0 %3009
    %v3012 = vmul.f32 %v2994, %v3010
    %v3013 = vpack.c.bf16 %v3012, %v3012
    %3015 = vrot.lane.b32.xlu0 %v3013, 64
    %v3016 = vpop.permute.xlu0 %3015
    %v3018 = vsel %vm73, %v3016, 0
    %3020 = vmatprep.subr.bf16.mxu0 0
    %3021 = vmatpush1.bf16.msra.mxu0 %v332
    %3022 = vmatprep.subr.bf16.mxu0 0
    %3023 = vmatpush1.bf16.msra.mxu0 %v333
    %3024 = vmatprep.subr.bf16.mxu0 0
    %3025 = vmatpush1.bf16.msra.mxu0 0
    %3026 = vmatprep.subr.bf16.mxu0 0
    %3027 = vmatpush1.bf16.msra.mxu0 0
    %3028 = vmatprep.subr.bf16.mxu0 0
    %3029 = vmatpush1.bf16.msra.mxu0 0
    %3030 = vmatprep.subr.bf16.mxu0 0
    %3031 = vmatpush1.bf16.msra.mxu0 0
    %3032 = vmatprep.subr.bf16.mxu0 0
    %3033 = vmatpush1.bf16.msra.mxu0 0
    %3034 = vmatprep.subr.bf16.mxu0 0
    %3035 = vmatpush1.bf16.msra.mxu0 0
    %3036 = vmatprep.subr.bf16.mxu0 0
    %3037 = vmatpush1.bf16.msra.mxu0 0
    %3038 = vmatprep.subr.bf16.mxu0 0
    %3039 = vmatpush1.bf16.msra.mxu0 0
    %3040 = vmatprep.subr.bf16.mxu0 0
    %3041 = vmatpush1.bf16.msra.mxu0 0
    %3042 = vmatprep.subr.bf16.mxu0 0
    %3043 = vmatpush1.bf16.msra.mxu0 0
    %3044 = vmatprep.subr.bf16.mxu0 0
    %3045 = vmatpush1.bf16.msra.mxu0 0
    %3046 = vmatprep.subr.bf16.mxu0 0
    %3047 = vmatpush1.bf16.msra.mxu0 0
    %3048 = vmatprep.subr.bf16.mxu0 0
    %3049 = vmatpush1.bf16.msra.mxu0 0
    %3050 = vmatprep.subr.bf16.mxu0 0
    %3051 = vmatpush1.bf16.msra.mxu0 0
    %3052 = vmatprep.mubr.bf16.mxu0 0
    %3053 = vmatmul.mubr.bf16.gmra.mrb[0].mxu0 %v3018
    %v3054 = vpop.f32.mrb[0].mxu0
    %v3055 = vadd.f32 0.0, %v3054
    %v3056 = vpop.f32.mrb[0].mxu0
    %v3057 = vpop.f32.mrb[0].mxu0
    %v3058 = vpop.f32.mrb[0].mxu0
    %3059 = vdwg.mxu0
    %v3060 = vadd.f32 %v382, %v3055
    %3061 = vmatprep.subr.bf16.mxu0 0
    %3062 = vmatpush1.bf16.msra.mxu0 %v396
    %3063 = vmatprep.subr.bf16.mxu0 0
    %3064 = vmatpush1.bf16.msra.mxu0 %v397
    %3065 = vmatprep.subr.bf16.mxu0 0
    %3066 = vmatpush1.bf16.msra.mxu0 0
    %3067 = vmatprep.subr.bf16.mxu0 0
    %3068 = vmatpush1.bf16.msra.mxu0 0
    %3069 = vmatprep.subr.bf16.mxu0 0
    %3070 = vmatpush1.bf16.msra.mxu0 0
    %3071 = vmatprep.subr.bf16.mxu0 0
    %3072 = vmatpush1.bf16.msra.mxu0 0
    %3073 = vmatprep.subr.bf16.mxu0 0
    %3074 = vmatpush1.bf16.msra.mxu0 0
    %3075 = vmatprep.subr.bf16.mxu0 0
    %3076 = vmatpush1.bf16.msra.mxu0 0
    %3077 = vmatprep.subr.bf16.mxu0 0
    %3078 = vmatpush1.bf16.msra.mxu0 0
    %3079 = vmatprep.subr.bf16.mxu0 0
    %3080 = vmatpush1.bf16.msra.mxu0 0
    %3081 = vmatprep.subr.bf16.mxu0 0
    %3082 = vmatpush1.bf16.msra.mxu0 0
    %3083 = vmatprep.subr.bf16.mxu0 0
    %3084 = vmatpush1.bf16.msra.mxu0 0
    %3085 = vmatprep.subr.bf16.mxu0 0
    %3086 = vmatpush1.bf16.msra.mxu0 0
    %3087 = vmatprep.subr.bf16.mxu0 0
    %3088 = vmatpush1.bf16.msra.mxu0 0
    %3089 = vmatprep.subr.bf16.mxu0 0
    %3090 = vmatpush1.bf16.msra.mxu0 0
    %3091 = vmatprep.subr.bf16.mxu0 0
    %3092 = vmatpush1.bf16.msra.mxu0 0
    %3093 = vmatprep.mubr.bf16.mxu0 0
    %3094 = vmatmul.mubr.bf16.gmra.mrb[0].mxu0 %v2791
    %v3095 = vpop.f32.mrb[0].mxu0
    %v3096 = vadd.f32 0.0, %v3095
    %v3097 = vpop.f32.mrb[0].mxu0
    %v3098 = vpop.f32.mrb[0].mxu0
    %v3099 = vpop.f32.mrb[0].mxu0
    %3100 = vdwg.mxu0
    %v3101 = vadd.f32 %v3060, %v3096
    %v3102 = vxor.u32 %v3101, 2147483648
    %v3103 = vmul.f32 %v3102, 1.442695
    %v3104 = vpow.pop %v3103
    %v3105 = vadd.f32 %v3104, 1.0
    %v3106 = vrcp.pop %v3105
    %v3107 = vmul.f32 1.0, %v3106
    %v3108 = vtanh.pop %v3101
    %v3109 = vmul.f32 %v3107, %v2779
    %3111 = vrot.lane.b32.xlu0 %v3108, 32
    %v3112 = vpop.permute.xlu0 %3111
    %v3114 = vmul.f32 %v3107, %v3112
    %3116 = vrot.lane.b32.xlu0 %v3114, 32
    %v3117 = vpop.permute.xlu0 %3116
    %v3119 = vadd.f32 %v3109, %v3117
    %v3120 = vtanh.pop %v3119
    %3122 = vrot.lane.b32.xlu0 %v3120, 32
    %v3123 = vpop.permute.xlu0 %3122
    %v3125 = vmul.f32 %v3107, %v3123
    %v3126 = vpack.c.bf16 %v3125, %v3125
    %3128 = vrot.lane.b32.xlu0 %v3126, 64
    %v3129 = vpop.permute.xlu0 %3128
    %v3131 = vsel %vm73, %v3129, 0
    %3133 = vmatprep.subr.bf16.mxu0 0
    %3134 = vmatpush1.bf16.msra.mxu0 %v2078
    %3135 = vmatprep.subr.bf16.mxu0 0
    %3136 = vmatpush1.bf16.msra.mxu0 %v2079
    %3137 = vmatprep.subr.bf16.mxu0 0
    %3138 = vmatpush1.bf16.msra.mxu0 0
    %3139 = vmatprep.subr.bf16.mxu0 0
    %3140 = vmatpush1.bf16.msra.mxu0 0
    %3141 = vmatprep.subr.bf16.mxu0 0
    %3142 = vmatpush1.bf16.msra.mxu0 0
    %3143 = vmatprep.subr.bf16.mxu0 0
    %3144 = vmatpush1.bf16.msra.mxu0 0
    %3145 = vmatprep.subr.bf16.mxu0 0
    %3146 = vmatpush1.bf16.msra.mxu0 0
    %3147 = vmatprep.subr.bf16.mxu0 0
    %3148 = vmatpush1.bf16.msra.mxu0 0
    %3149 = vmatprep.subr.bf16.mxu0 0
    %3150 = vmatpush1.bf16.msra.mxu0 0
    %3151 = vmatprep.subr.bf16.mxu0 0
    %3152 = vmatpush1.bf16.msra.mxu0 0
    %3153 = vmatprep.subr.bf16.mxu0 0
    %3154 = vmatpush1.bf16.msra.mxu0 0
    %3155 = vmatprep.subr.bf16.mxu0 0
    %3156 = vmatpush1.bf16.msra.mxu0 0
    %3157 = vmatprep.subr.bf16.mxu0 0
    %3158 = vmatpush1.bf16.msra.mxu0 0
    %3159 = vmatprep.subr.bf16.mxu0 0
    %3160 = vmatpush1.bf16.msra.mxu0 0
    %3161 = vmatprep.subr.bf16.mxu0 0
    %3162 = vmatpush1.bf16.msra.mxu0 0
    %3163 = vmatprep.subr.bf16.mxu0 0
    %3164 = vmatpush1.bf16.msra.mxu0 0
    %3165 = vmatprep.mubr.bf16.mxu0 0
    %3166 = vmatmul.mubr.bf16.gmra.mrb[0].mxu0 %v3131
    %v3167 = vpop.f32.mrb[0].mxu0
    %v3168 = vadd.f32 %v2066, %v3167
    %v3169 = vpop.f32.mrb[0].mxu0
    %v3170 = vpop.f32.mrb[0].mxu0
    %v3171 = vpop.f32.mrb[0].mxu0
    %3172 = vdwg.mxu0
    %v3173 = vmax.f32 %v3168, 0.0
    %vm3174 = vcmp.ne.f32.partialorder %v3168, %v3168
    %v3175 = vadd.f32 %v3168, 0.0
    %v3176 = vand.u32 2147483647, %v3168
    %v3177 = vsub.f32 0.0, %v3176
    %v3178 = vmul.f32 %v3177, 1.442695
    %v3179 = vpow.pop %v3178
    %v3180 = vadd.f32 %v3179, 1.0
    %v3181 = vlog2.pop %v3180
    %v3182 = vmul.f32 %v3181, 0.6931472
    %v3183 = vmul.f32 -0.5, %v3179
    %v3184 = vadd.f32 %v3183, 1.0
    %v3185 = vmul.f32 %v3184, %v3179
    %v3186 = vand.u32 2147483647, %v3179
    %vm3187 = vcmp.lt.f32.partialorder %v3186, 0.0004427343
    %v3188 = vsel %vm3187, %v3185, %v3182
    %v3189 = vadd.f32 %v3173, %v3188
    %v3190 = vsel %vm3174, %v3175, %v3189
    %3191 = vrot.lane.b32.xlu0 %v229, 112
    %v3192 = vpop.permute.xlu0 %3191
    %v3194 = vmul.f32 %v3190, %v3192
    %3196 = vrot.lane.b32.xlu0 %v3194, 127
    %v3197 = vpop.permute.xlu0 %3196
    %v3199 = vadd.f32 %v3168, %v3197
    %3200 = vrot.lane.b32.xlu0 %v2859, 2
    %v3201 = vpop.permute.xlu0 %3200
    %3204 = vrot.lane.b32.xlu0 %v3199, 3
    %v3205 = vpop.permute.xlu0 %3204
    %v3207 = vsel %vm1800, %v2151, %v2873
    %v3208 = vsel %vm1802, %v3207, %v3201
    %v3209 = vsel %vm1804, %v3208, %v3205
    %3210 = vset.pattern.permute.xlu0 0
    %3211 = vperm.xlu0 %3210, %v229
    %v3212 = vpop.permute.xlu0 %3211
    %v3214 = vmul.f32 %v3209, %v3212
    %3215 = vst.msk [vmem:[#allocation2] sm:$0xff] %vm1806, %v3214
    // Predicated region
    $region22: #{deepar_prediction_forward.1} parent=1 // pred_check
      _
    $region23: #{deepar_prediction_forward.1} parent=1 // pred_check_branch
      %3217 = sbr.rel (0) target = $region25
    $region24: #{deepar_prediction_forward.1} parent=1 // pred_region
      %s3219 = ssub.s32 128, 128
      %3220 = vsyncadd [#allocation3], %s3219
      %s3222 = sshll.u32 [#allocation2], 4
      %s3223 = int_to_ptr.vmem [resolvable:$true] %s3222
      %3225 = dma.vmem_to_hbm [thread:$0]  %s3223, 128, %s5, [#allocation3]
    $region25: #{deepar_prediction_forward.1} parent=1 // pred_fallthru
      _
    // Predicated region
    $region26: #{deepar_prediction_forward.1} parent=1 // pred_check
      _
    $region27: #{deepar_prediction_forward.1} parent=1 // pred_check_branch
      %3227 = sbr.rel (0) target = $region29
    $region28: #{deepar_prediction_forward.1} parent=1 // pred_region
      %3228 = dma.done [#allocation3], 128
    $region29: #{deepar_prediction_forward.1} parent=1 // pred_fallthru
      _
    %3229 = vsyncpa [#allocation3], 1

</llo_original>
